<compile_context>
chip_gen: v6e
topology: v6e:2x2x1
jax: 0.10.0
libtpu: 0.0.40
codegen_flags: <defaults>
</compile_context>

<pallas_src>
from functools import partial

import jax
import jax.numpy as jnp
from jax.experimental import pallas as pl
from jax.experimental.pallas import tpu as pltpu

BN_EPS = 1e-5


def _round_up(x, m):
    return ((x + m - 1) // m) * m


def _vmem_limit(per_step_bytes):
    # ~2x headroom over the per-step footprint, floor 24 MiB, cap 48 MiB (OK on all gens).
    return int(min(max(2 * per_step_bytes + (4 << 20), 24 << 20), 48 << 20))


# ----------------------------- Pallas kernels ------------------------------ #

def _conv_stats_kernel(p_ref, w_ref, y_ref, sum_ref, sumsq_ref):
    """Pass 1: y = patches @ W (bf16 x bf16 -> f32 acc, bf16 store) + per-tile sum/sumsq."""
    y = jnp.dot(p_ref[...], w_ref[...], preferred_element_type=jnp.float32)
    y_ref[...] = y.astype(y_ref.dtype)                       # bf16 writeback
    sum_ref[...] = jnp.sum(y, axis=0, keepdims=True)[None]   # (1,1,Cpad) per-tile partial
    sumsq_ref[...] = jnp.sum(y * y, axis=0, keepdims=True)[None]


def _conv_stats_fused_sc_kernel(p_ref, w_ref, wsc_ref,
                                y_ref, sum_ref, sumsq_ref,
                                ysc_ref, sc_sum_ref, sc_sumsq_ref, *, cin_pad):
    """Pass 1 for conv1 + fused 1x1 projection shortcut (centre tap of the 3x3 patches)."""
    y = jnp.dot(p_ref[...], w_ref[...], preferred_element_type=jnp.float32)
    y_ref[...] = y.astype(y_ref.dtype)
    sum_ref[...] = jnp.sum(y, axis=0, keepdims=True)[None]
    sumsq_ref[...] = jnp.sum(y * y, axis=0, keepdims=True)[None]

    # 1x1 stride-s shortcut input == centre tap (index 4) of the stride-s 3x3 patches.
    center = p_ref[:, 4 * cin_pad:5 * cin_pad]                # lane-aligned static slice
    ysc = jnp.dot(center, wsc_ref[...], preferred_element_type=jnp.float32)
    ysc_ref[...] = ysc.astype(ysc_ref.dtype)
    sc_sum_ref[...] = jnp.sum(ysc, axis=0, keepdims=True)[None]
    sc_sumsq_ref[...] = jnp.sum(ysc * ysc, axis=0, keepdims=True)[None]


def _bn_relu_kernel(y_ref, scale_ref, shift_ref, o_ref):
    """Pass 2 (conv1): out = relu(y*scale + shift)."""
    out = y_ref[...].astype(jnp.float32) * scale_ref[...] + shift_ref[...]
    o_ref[...] = jnp.maximum(out, 0.0).astype(o_ref.dtype)


def _bn_add_relu_kernel(y_ref, scale_ref, shift_ref, sc_ref, sc_scale_ref, sc_shift_ref, o_ref):
    """Pass 2 (conv2 + shortcut): out = relu(y*s + t + sc*ss + st)."""
    out = y_ref[...].astype(jnp.float32) * scale_ref[...] + shift_ref[...]
    out = out + sc_ref[...].astype(jnp.float32) * sc_scale_ref[...] + sc_shift_ref[...]
    o_ref[...] = jnp.maximum(out, 0.0).astype(o_ref.dtype)


# ----------------------------- pallas_call wrappers ------------------------ #

def _reduce_stats(a):
    return jnp.sum(a[:, 0, :], axis=0, keepdims=True)         # (nt,1,C) -> (1,C)


def conv_stats(p_bf16, w_bf16, tm):
    mpad, kpad = p_bf16.shape
    cpad = w_bf16.shape[1]
    nt = mpad // tm
    step_bytes = 2 * tm * kpad * 2 + 2 * kpad * cpad * 2 + 2 * tm * cpad * 2 + 4 * cpad * 4
    flops = 2 * mpad * kpad * cpad + 3 * mpad * cpad
    bytes_accessed = mpad * kpad * 2 + kpad * cpad * 2 + mpad * cpad * 2 + 2 * nt * cpad * 4
    y, s, sq = pl.pallas_call(
        _conv_stats_kernel,
        out_shape=(jax.ShapeDtypeStruct((mpad, cpad), jnp.bfloat16),
                   jax.ShapeDtypeStruct((nt, 1, cpad), jnp.float32),
                   jax.ShapeDtypeStruct((nt, 1, cpad), jnp.float32)),
        grid=(nt,),
        in_specs=[pl.BlockSpec((tm, kpad), lambda i: (i, 0)),
                  pl.BlockSpec((kpad, cpad), lambda i: (0, 0))],
        out_specs=(pl.BlockSpec((tm, cpad), lambda i: (i, 0)),
                   pl.BlockSpec((1, 1, cpad), lambda i: (i, 0, 0)),
                   pl.BlockSpec((1, 1, cpad), lambda i: (i, 0, 0))),
        compiler_params=pltpu.CompilerParams(
            dimension_semantics=("parallel",),                 # per-tile partials -> parallel
            vmem_limit_bytes=_vmem_limit(step_bytes)),
        cost_estimate=pl.CostEstimate(flops=int(flops), transcendentals=0,
                                      bytes_accessed=int(bytes_accessed)),
    )(p_bf16, w_bf16)
    return y, _reduce_stats(s), _reduce_stats(sq)


def conv_stats_fused_sc(p_bf16, w_bf16, wsc_bf16, tm, cin_pad):
    mpad, kpad = p_bf16.shape
    cpad = w_bf16.shape[1]
    nt = mpad // tm
    step_bytes = (2 * tm * kpad * 2 + 2 * kpad * cpad * 2 + 2 * cin_pad * cpad * 2
                  + 4 * tm * cpad * 2 + 8 * cpad * 4)
    flops = 2 * mpad * (kpad + cin_pad) * cpad + 6 * mpad * cpad
    bytes_accessed = (mpad * kpad * 2 + (kpad + cin_pad) * cpad * 2
                      + 2 * mpad * cpad * 2 + 4 * nt * cpad * 4)
    y, s, sq, ysc, ssc, sqsc = pl.pallas_call(
        partial(_conv_stats_fused_sc_kernel, cin_pad=cin_pad),
        out_shape=(jax.ShapeDtypeStruct((mpad, cpad), jnp.bfloat16),
                   jax.ShapeDtypeStruct((nt, 1, cpad), jnp.float32),
                   jax.ShapeDtypeStruct((nt, 1, cpad), jnp.float32),
                   jax.ShapeDtypeStruct((mpad, cpad), jnp.bfloat16),
                   jax.ShapeDtypeStruct((nt, 1, cpad), jnp.float32),
                   jax.ShapeDtypeStruct((nt, 1, cpad), jnp.float32)),
        grid=(nt,),
        in_specs=[pl.BlockSpec((tm, kpad), lambda i: (i, 0)),
                  pl.BlockSpec((kpad, cpad), lambda i: (0, 0)),
                  pl.BlockSpec((cin_pad, cpad), lambda i: (0, 0))],
        out_specs=(pl.BlockSpec((tm, cpad), lambda i: (i, 0)),
                   pl.BlockSpec((1, 1, cpad), lambda i: (i, 0, 0)),
                   pl.BlockSpec((1, 1, cpad), lambda i: (i, 0, 0)),
                   pl.BlockSpec((tm, cpad), lambda i: (i, 0)),
                   pl.BlockSpec((1, 1, cpad), lambda i: (i, 0, 0)),
                   pl.BlockSpec((1, 1, cpad), lambda i: (i, 0, 0))),
        compiler_params=pltpu.CompilerParams(
            dimension_semantics=("parallel",),
            vmem_limit_bytes=_vmem_limit(step_bytes)),
        cost_estimate=pl.CostEstimate(flops=int(flops), transcendentals=0,
                                      bytes_accessed=int(bytes_accessed)),
    )(p_bf16, w_bf16, wsc_bf16)
    return y, _reduce_stats(s), _reduce_stats(sq), ysc, _reduce_stats(ssc), _reduce_stats(sqsc)


def bn_relu_apply(y, scale, shift, tm, out_dtype):
    mpad, cpad = y.shape
    io_itemsize = y.dtype.itemsize + jnp.dtype(out_dtype).itemsize
    step_bytes = 2 * tm * cpad * io_itemsize + 2 * cpad * 4
    return pl.pallas_call(
        _bn_relu_kernel,
        out_shape=jax.ShapeDtypeStruct((mpad, cpad), out_dtype),
        grid=(mpad // tm,),
        in_specs=[pl.BlockSpec((tm, cpad), lambda i: (i, 0)),
                  pl.BlockSpec((1, cpad), lambda i: (0, 0)),
                  pl.BlockSpec((1, cpad), lambda i: (0, 0))],
        out_specs=pl.BlockSpec((tm, cpad), lambda i: (i, 0)),
        compiler_params=pltpu.CompilerParams(
            dimension_semantics=("parallel",),
            vmem_limit_bytes=_vmem_limit(step_bytes)),
        cost_estimate=pl.CostEstimate(flops=int(3 * mpad * cpad), transcendentals=0,
                                      bytes_accessed=int(mpad * cpad * io_itemsize + 2 * cpad * 4)),
    )(y, scale, shift)


def bn_add_relu_apply(y, scale, shift, sc, sc_scale, sc_shift, tm, out_dtype):
    mpad, cpad = y.shape
    io_itemsize = y.dtype.itemsize + sc.dtype.itemsize + jnp.dtype(out_dtype).itemsize
    step_bytes = 2 * tm * cpad * io_itemsize + 4 * cpad * 4
    return pl.pallas_call(
        _bn_add_relu_kernel,
        out_shape=jax.ShapeDtypeStruct((mpad, cpad), out_dtype),
        grid=(mpad // tm,),
        in_specs=[pl.BlockSpec((tm, cpad), lambda i: (i, 0)),
                  pl.BlockSpec((1, cpad), lambda i: (0, 0)),
                  pl.BlockSpec((1, cpad), lambda i: (0, 0)),
                  pl.BlockSpec((tm, cpad), lambda i: (i, 0)),
                  pl.BlockSpec((1, cpad), lambda i: (0, 0)),
                  pl.BlockSpec((1, cpad), lambda i: (0, 0))],
        out_specs=pl.BlockSpec((tm, cpad), lambda i: (i, 0)),
        compiler_params=pltpu.CompilerParams(
            dimension_semantics=("parallel",),
            vmem_limit_bytes=_vmem_limit(step_bytes)),
        cost_estimate=pl.CostEstimate(flops=int(6 * mpad * cpad), transcendentals=0,
                                      bytes_accessed=int(mpad * cpad * io_itemsize + 4 * cpad * 4)),
    )(y, scale, shift, sc, sc_scale, sc_shift)


# ------------------------------- JAX glue ----------------------------------- #

def im2col_tap_padded(x_nhwc, ksize, stride, pad, cin_pad, mpad):
    """Patches (Mpad, k*k*cin_pad): tap-major, each tap's channel block zero-padded to cin_pad."""
    N, H, W, C = x_nhwc.shape
    xp = jnp.pad(x_nhwc, ((0, 0), (pad, pad), (pad, pad), (0, 0)))
    Ho = (H + 2 * pad - ksize) // stride + 1
    Wo = (W + 2 * pad - ksize) // stride + 1
    taps = []
    for i in range(ksize):
        for j in range(ksize):
            taps.append(xp[:, i:i + (Ho - 1) * stride + 1:stride,
                              j:j + (Wo - 1) * stride + 1:stride, :])
    patches = jnp.stack(taps, axis=3)                          # (N, Ho, Wo, k*k, C)
    patches = jnp.pad(patches, ((0, 0), (0, 0), (0, 0), (0, 0), (0, cin_pad - C)))
    M = N * Ho * Wo
    patches = patches.reshape(M, ksize * ksize * cin_pad)
    patches = jnp.pad(patches, ((0, mpad - M), (0, 0)))
    return patches, Ho, Wo


def weight_matrix_3x3(w_oihw, cin_pad, cpad):
    """(Cout, Cin, 3, 3) -> (9*cin_pad, cpad), tap-major rows matching im2col_tap_padded."""
    cout, cin, kh, kw = w_oihw.shape
    w = jnp.transpose(w_oihw, (2, 3, 1, 0))                    # (kh, kw, Cin, Cout)
    w = jnp.pad(w, ((0, 0), (0, 0), (0, cin_pad - cin), (0, cpad - cout)))
    return w.reshape(kh * kw * cin_pad, cpad).astype(jnp.bfloat16)


def weight_matrix_1x1(w_oihw, cin_pad, cpad):
    cout, cin = w_oihw.shape[0], w_oihw.shape[1]
    w = jnp.transpose(w_oihw.reshape(cout, cin), (1, 0))       # (Cin, Cout)
    w = jnp.pad(w, ((0, cin_pad - cin), (0, cpad - cout)))
    return w.astype(jnp.bfloat16)


def _pad_vec(v, cpad):
    v = v.reshape(-1).astype(jnp.float32)
    return jnp.pad(v, (0, cpad - v.shape[0])).reshape(1, cpad)


def _bn_fold(sum_, sumsq, count, gamma_pad, beta_pad, eps=BN_EPS):
    """Fold batch-stats BN into one scale/shift (f32). Biased variance, like PyTorch training."""
    mean = sum_ / count
    var = jnp.maximum(sumsq / count - mean * mean, 0.0)
    invstd = jax.lax.rsqrt(var + eps)
    scale = gamma_pad * invstd
    shift = beta_pad - mean * scale
    return scale, shift


@partial(jax.jit, static_argnames=("stride",))
def resblock_forward(params, x_nchw, stride):
    N, Cin, H, W = x_nchw.shape
    Cout = params["w1"].shape[0]
    Cpad = _round_up(Cout, 128)
    Cin_pad = _round_up(Cin, 128)

    Ho = (H + 2 - 3) // stride + 1
    Wo = (W + 2 - 3) // stride + 1
    M = N * Ho * Wo
    tm = min(512, _round_up(M, 16))                  # bf16 rows pack 2/sublane -> multiple of 16
    Mpad = _round_up(M, tm)
    nt = Mpad // tm
    ep_f = next(f for f in (8, 4, 2, 1) if nt % f == 0 and tm * f <= 2048)
    tm_ep = tm * ep_f                                # bigger streaming tile for the epilogues

    x_nhwc = jnp.transpose(x_nchw, (0, 2, 3, 1)).astype(jnp.float32)
    x_bf16 = x_nhwc.astype(jnp.bfloat16)

    # ---- conv1 (3x3, stride) pass 1, with the 1x1 projection shortcut fused in ----
    p1, _, _ = im2col_tap_padded(x_bf16, 3, stride, 1, Cin_pad, Mpad)
    w1m = weight_matrix_3x3(params["w1"], Cin_pad, Cpad)

    if "w_sc" in params:                             # projection shortcut: fused matmul + stats
        wscm = weight_matrix_1x1(params["w_sc"], Cin_pad, Cpad)
        y1, s1, ss1, ysc, s_sc, ss_sc = conv_stats_fused_sc(p1, w1m, wscm, tm, Cin_pad)
        sc_scale, sc_shift = _bn_fold(s_sc, ss_sc, M,
                                      _pad_vec(params["g_sc"], Cpad),
                                      _pad_vec(params["b_sc"], Cpad))
    else:                                            # identity shortcut (stride=1, Cin==Cout)
        y1, s1, ss1 = conv_stats(p1, w1m, tm)
        if Cin == Cpad and M == Mpad:
            ysc = x_nhwc.reshape(M, Cin)             # no pad copy when already lane-dense
        else:
            ysc = jnp.pad(x_nhwc.reshape(M, Cin), ((0, Mpad - M), (0, Cpad - Cin)))
        sc_scale = jnp.ones((1, Cpad), jnp.float32)
        sc_shift = jnp.zeros((1, Cpad), jnp.float32)

    sc1, sh1 = _bn_fold(s1, ss1, M, _pad_vec(params["g1"], Cpad), _pad_vec(params["b1"], Cpad))
    out1 = bn_relu_apply(y1, sc1, sh1, tm_ep, jnp.bfloat16)     # bf16 -> feeds conv2 patches
    out1_nhwc = out1[:M, :Cout].reshape(N, Ho, Wo, Cout)

    # ---- conv2 (3x3, stride 1) pass 1 + fused BN/add/ReLU epilogue ----
    p2, _, _ = im2col_tap_padded(out1_nhwc, 3, 1, 1, Cpad, Mpad)
    w2m = weight_matrix_3x3(params["w2"], Cpad, Cpad)
    y2, s2, ss2 = conv_stats(p2, w2m, tm)
    sc2, sh2 = _bn_fold(s2, ss2, M, _pad_vec(params["g2"], Cpad), _pad_vec(params["b2"], Cpad))
    out = bn_add_relu_apply(y2, sc2, sh2, ysc, sc_scale, sc_shift, tm_ep, jnp.float32)

    out_nhwc = out[:M, :Cout].reshape(N, Ho, Wo, Cout)
    return jnp.transpose(out_nhwc, (0, 3, 1, 2))                # back to NCHW


def init_resblock_params(in_channels, out_channels, stride, key):
    k1, k2, k3 = jax.random.split(key, 3)
    params = {
        "w1": 0.1 * jax.random.normal(k1, (out_channels, in_channels, 3, 3), jnp.float32),
        "g1": jnp.ones((out_channels,), jnp.float32),
        "b1": jnp.zeros((out_channels,), jnp.float32),
        "w2": 0.1 * jax.random.normal(k2, (out_channels, out_channels, 3, 3), jnp.float32),
        "g2": jnp.ones((out_channels,), jnp.float32),
        "b2": jnp.zeros((out_channels,), jnp.float32),
    }
    if stride != 1 or in_channels != out_channels:
        params["w_sc"] = 0.1 * jax.random.normal(k3, (out_channels, in_channels, 1, 1), jnp.float32)
        params["g_sc"] = jnp.ones((out_channels,), jnp.float32)
        params["b_sc"] = jnp.zeros((out_channels,), jnp.float32)
    return params


# Pure-JAX f32 reference of the PyTorch module (training-mode BN), for a sanity check.
def _ref_forward(params, x_nchw, stride):
    def conv(x, w, s, p):
        return jax.lax.conv_general_dilated(x, w, (s, s), [(p, p), (p, p)],
                                            dimension_numbers=("NCHW", "OIHW", "NCHW"))

    def bn(y, g, b):
        mean = jnp.mean(y, axis=(0, 2, 3), keepdims=True)
        var = jnp.mean((y - mean) ** 2, axis=(0, 2, 3), keepdims=True)
        return (g.reshape(1, -1, 1, 1) * (y - mean) * jax.lax.rsqrt(var + BN_EPS)
                + b.reshape(1, -1, 1, 1))

    out = jax.nn.relu(bn(conv(x_nchw, params["w1"], stride, 1), params["g1"], params["b1"]))
    out = bn(conv(out, params["w2"], 1, 1), params["g2"], params["b2"])
    if "w_sc" in params:
        sc = bn(conv(x_nchw, params["w_sc"], stride, 0), params["g_sc"], params["b_sc"])
    else:
        sc = x_nchw
    return jax.nn.relu(out + sc)


def _run_case(key, N, Cin, H, W, Cout, stride):
    kx, kp = jax.random.split(key)
    x = jax.random.normal(kx, (N, Cin, H, W), jnp.float32)
    params = init_resblock_params(Cin, Cout, stride, kp)

    y = jax.block_until_ready(resblock_forward(params, x, stride=stride))

    expected_shape = (N, Cout, (H + 2 - 3) // stride + 1, (W + 2 - 3) // stride + 1)
    assert y.shape == expected_shape, (y.shape, expected_shape)
    assert bool(jnp.all(jnp.isfinite(y)))
    assert bool(jnp.all(y >= 0.0))                    # final ReLU

    # Loose tolerance: the Pallas path uses bf16 MXU operands / bf16 intermediates
    # (f32 accumulation and f32 BN statistics).
    y_ref = _ref_forward(params, x, stride)
    max_err = float(jnp.max(jnp.abs(y - y_ref)))
    assert max_err < 0.15, f"max abs err vs f32 reference too large: {max_err}"


if __name__ == "__main__":
    key = jax.random.PRNGKey(0)
    k1, k2 = jax.random.split(key)

    # Case 1: projection shortcut (stride 2, channel change) — exercises the fused-shortcut kernel.
    _run_case(k1, N=2, Cin=4, H=16, W=16, Cout=8, stride=2)
    # Case 2: identity shortcut (stride 1, same channels) — exercises the plain pass-1 kernel.
    _run_case(k2, N=2, Cin=8, H=8, W=8, Cout=8, stride=1)

    print("KERNEL_OK")
</pallas_src>

<mosaic_0001>
module attributes {stable_mosaic.version = 11 : i64} {
  func.func @_bn_relu_kernel(%arg0: i32, %arg1: memref<128x128xbf16, #tpu.memory_space<vmem>>, %arg2: memref<1x128xf32, #tpu.memory_space<vmem>>, %arg3: memref<1x128xf32, #tpu.memory_space<vmem>>, %arg4: memref<128x128xbf16, #tpu.memory_space<vmem>>) attributes {dimension_semantics = [#tpu.dimension_semantics<parallel>], iteration_bounds = array<i64: 1>, scalar_prefetch = 0 : i64, scratch_operands = 0 : i64, tpu.core_type = #tpu.core_type<tc>, window_params = [{transform_indices = @transform_0, window_bounds = array<i64: 128, 128>}, {pipeline_mode = #tpu.pipeline_mode<synchronous>, transform_indices = @transform_1, window_bounds = array<i64: 1, 128>}, {pipeline_mode = #tpu.pipeline_mode<synchronous>, transform_indices = @transform_2, window_bounds = array<i64: 1, 128>}, {transform_indices = @transform_3, window_bounds = array<i64: 128, 128>}]} {
    %c0 = arith.constant 0 : index
    %c0_0 = arith.constant 0 : index
    %0 = vector.load %arg1[%c0, %c0_0] : memref<128x128xbf16, #tpu.memory_space<vmem>>, vector<128x128xbf16>
    %1 = arith.extf %0 : vector<128x128xbf16> to vector<128x128xf32>
    %c0_1 = arith.constant 0 : index
    %c0_2 = arith.constant 0 : index
    %2 = vector.load %arg2[%c0_1, %c0_2] : memref<1x128xf32, #tpu.memory_space<vmem>>, vector<1x128xf32>
    %3 = vector.broadcast %2 : vector<1x128xf32> to vector<128x128xf32>
    %4 = arith.mulf %1, %3 : vector<128x128xf32>
    %c0_3 = arith.constant 0 : index
    %c0_4 = arith.constant 0 : index
    %5 = vector.load %arg3[%c0_3, %c0_4] : memref<1x128xf32, #tpu.memory_space<vmem>>, vector<1x128xf32>
    %6 = vector.broadcast %5 : vector<1x128xf32> to vector<128x128xf32>
    %7 = arith.addf %4, %6 : vector<128x128xf32>
    %cst = arith.constant 0.000000e+00 : f32
    %8 = vector.broadcast %cst : f32 to vector<128x128xf32>
    %9 = arith.maximumf %7, %8 : vector<128x128xf32>
    %10 = arith.truncf %9 : vector<128x128xf32> to vector<128x128xbf16>
    %c0_5 = arith.constant 0 : index
    %c0_6 = arith.constant 0 : index
    %11 = vector.load %arg4[%c0_5, %c0_6] : memref<128x128xbf16, #tpu.memory_space<vmem>>, vector<128x128xbf16>
    tpu.vector_store %arg4[%c0_5, %c0_6], %10 {strides = array<i32>} : memref<128x128xbf16, #tpu.memory_space<vmem>>, vector<128x128xbf16>,
    return
  }
  func.func @transform_0(%arg0: i32) -> (i32, i32) {
    %c0_i32 = arith.constant 0 : i32
    %c0_i32_0 = arith.constant 0 : i32
    return %arg0, %c0_i32 : i32, i32
  }
  func.func @transform_1(%arg0: i32) -> (i32, i32) {
    %c0_i32 = arith.constant 0 : i32
    %c0_i32_0 = arith.constant 0 : i32
    %c0_i32_1 = arith.constant 0 : i32
    return %c0_i32, %c0_i32_0 : i32, i32
  }
  func.func @transform_2(%arg0: i32) -> (i32, i32) {
    %c0_i32 = arith.constant 0 : i32
    %c0_i32_0 = arith.constant 0 : i32
    %c0_i32_1 = arith.constant 0 : i32
    return %c0_i32, %c0_i32_0 : i32, i32
  }
  func.func @transform_3(%arg0: i32) -> (i32, i32) {
    %c0_i32 = arith.constant 0 : i32
    %c0_i32_0 = arith.constant 0 : i32
    return %arg0, %c0_i32 : i32, i32
  }
}

module attributes {stable_mosaic.version = 11 : i64} {
  func.func @_conv_stats_fused_sc_kernel(%arg0: i32, %arg1: memref<128x1152xbf16, #tpu.memory_space<vmem>>, %arg2: memref<1152x128xbf16, #tpu.memory_space<vmem>>, %arg3: memref<128x128xbf16, #tpu.memory_space<vmem>>, %arg4: memref<128x128xbf16, #tpu.memory_space<vmem>>, %arg5: memref<1x1x128xf32, #tpu.memory_space<vmem>>, %arg6: memref<1x1x128xf32, #tpu.memory_space<vmem>>, %arg7: memref<128x128xbf16, #tpu.memory_space<vmem>>, %arg8: memref<1x1x128xf32, #tpu.memory_space<vmem>>, %arg9: memref<1x1x128xf32, #tpu.memory_space<vmem>>) attributes {dimension_semantics = [#tpu.dimension_semantics<parallel>], iteration_bounds = array<i64: 1>, scalar_prefetch = 0 : i64, scratch_operands = 0 : i64, tpu.core_type = #tpu.core_type<tc>, window_params = [{transform_indices = @transform_0, window_bounds = array<i64: 128, 1152>}, {pipeline_mode = #tpu.pipeline_mode<synchronous>, transform_indices = @transform_1, window_bounds = array<i64: 1152, 128>}, {pipeline_mode = #tpu.pipeline_mode<synchronous>, transform_indices = @transform_2, window_bounds = array<i64: 128, 128>}, {transform_indices = @transform_3, window_bounds = array<i64: 128, 128>}, {transform_indices = @transform_4, window_bounds = array<i64: 1, 1, 128>}, {transform_indices = @transform_5, window_bounds = array<i64: 1, 1, 128>}, {transform_indices = @transform_6, window_bounds = array<i64: 128, 128>}, {transform_indices = @transform_7, window_bounds = array<i64: 1, 1, 128>}, {transform_indices = @transform_8, window_bounds = array<i64: 1, 1, 128>}]} {
    %c0 = arith.constant 0 : index
    %c0_0 = arith.constant 0 : index
    %0 = vector.load %arg1[%c0, %c0_0] : memref<128x1152xbf16, #tpu.memory_space<vmem>>, vector<128x1152xbf16>
    %c0_1 = arith.constant 0 : index
    %c0_2 = arith.constant 0 : index
    %1 = vector.load %arg2[%c0_1, %c0_2] : memref<1152x128xbf16, #tpu.memory_space<vmem>>, vector<1152x128xbf16>
    %cst = arith.constant dense<0.000000e+00> : vector<128x128xf32>
    %2 = tpu.matmul %0, %1, %cst {dimension_numbers = #tpu.dot_dimension_numbers<[1], [0], [0], [1], [0, 0, 1, 1], [], []>} : vector<128x1152xbf16>, vector<1152x128xbf16>, vector<128x128xf32> -> vector<128x128xf32>
    %3 = arith.truncf %2 : vector<128x128xf32> to vector<128x128xbf16>
    %c0_3 = arith.constant 0 : index
    %c0_4 = arith.constant 0 : index
    %4 = vector.load %arg4[%c0_3, %c0_4] : memref<128x128xbf16, #tpu.memory_space<vmem>>, vector<128x128xbf16>
    tpu.vector_store %arg4[%c0_3, %c0_4], %3 {strides = array<i32>} : memref<128x128xbf16, #tpu.memory_space<vmem>>, vector<128x128xbf16>,
    %cst_5 = arith.constant dense<0.000000e+00> : vector<128xf32>
    %5 = vector.multi_reduction <add>, %2, %cst_5 [0] : vector<128x128xf32> to vector<128xf32>
    %6 = vector.shape_cast %5 : vector<128xf32> to vector<1x128xf32>
    %7 = vector.shape_cast %6 : vector<1x128xf32> to vector<1x1x128xf32>
    %c0_6 = arith.constant 0 : index
    %c0_7 = arith.constant 0 : index
    %c0_8 = arith.constant 0 : index
    %8 = vector.load %arg5[%c0_6, %c0_7, %c0_8] : memref<1x1x128xf32, #tpu.memory_space<vmem>>, vector<1x1x128xf32>
    tpu.vector_store %arg5[%c0_6, %c0_7, %c0_8], %7 {strides = array<i32>} : memref<1x1x128xf32, #tpu.memory_space<vmem>>, vector<1x1x128xf32>,
    %9 = arith.mulf %2, %2 : vector<128x128xf32>
    %cst_9 = arith.constant dense<0.000000e+00> : vector<128xf32>
    %10 = vector.multi_reduction <add>, %9, %cst_9 [0] : vector<128x128xf32> to vector<128xf32>
    %11 = vector.shape_cast %10 : vector<128xf32> to vector<1x128xf32>
    %12 = vector.shape_cast %11 : vector<1x128xf32> to vector<1x1x128xf32>
    %c0_10 = arith.constant 0 : index
    %c0_11 = arith.constant 0 : index
    %c0_12 = arith.constant 0 : index
    %13 = vector.load %arg6[%c0_10, %c0_11, %c0_12] : memref<1x1x128xf32, #tpu.memory_space<vmem>>, vector<1x1x128xf32>
    tpu.vector_store %arg6[%c0_10, %c0_11, %c0_12], %12 {strides = array<i32>} : memref<1x1x128xf32, #tpu.memory_space<vmem>>, vector<1x1x128xf32>,
    %c0_13 = arith.constant 0 : index
    %c512 = arith.constant 512 : index
    %14 = vector.load %arg1[%c0_13, %c512] : memref<128x1152xbf16, #tpu.memory_space<vmem>>, vector<128x128xbf16>
    %c0_14 = arith.constant 0 : index
    %c0_15 = arith.constant 0 : index
    %15 = vector.load %arg3[%c0_14, %c0_15] : memref<128x128xbf16, #tpu.memory_space<vmem>>, vector<128x128xbf16>
    %cst_16 = arith.constant dense<0.000000e+00> : vector<128x128xf32>
    %16 = tpu.matmul %14, %15, %cst_16 {dimension_numbers = #tpu.dot_dimension_numbers<[1], [0], [0], [1], [0, 0, 1, 1], [], []>} : vector<128x128xbf16>, vector<128x128xbf16>, vector<128x128xf32> -> vector<128x128xf32>
    %17 = arith.truncf %16 : vector<128x128xf32> to vector<128x128xbf16>
    %c0_17 = arith.constant 0 : index
    %c0_18 = arith.constant 0 : index
    %18 = vector.load %arg7[%c0_17, %c0_18] : memref<128x128xbf16, #tpu.memory_space<vmem>>, vector<128x128xbf16>
    tpu.vector_store %arg7[%c0_17, %c0_18], %17 {strides = array<i32>} : memref<128x128xbf16, #tpu.memory_space<vmem>>, vector<128x128xbf16>,
    %cst_19 = arith.constant dense<0.000000e+00> : vector<128xf32>
    %19 = vector.multi_reduction <add>, %16, %cst_19 [0] : vector<128x128xf32> to vector<128xf32>
    %20 = vector.shape_cast %19 : vector<128xf32> to vector<1x128xf32>
    %21 = vector.shape_cast %20 : vector<1x128xf32> to vector<1x1x128xf32>
    %c0_20 = arith.constant 0 : index
    %c0_21 = arith.constant 0 : index
    %c0_22 = arith.constant 0 : index
    %22 = vector.load %arg8[%c0_20, %c0_21, %c0_22] : memref<1x1x128xf32, #tpu.memory_space<vmem>>, vector<1x1x128xf32>
    tpu.vector_store %arg8[%c0_20, %c0_21, %c0_22], %21 {strides = array<i32>} : memref<1x1x128xf32, #tpu.memory_space<vmem>>, vector<1x1x128xf32>,
    %23 = arith.mulf %16, %16 : vector<128x128xf32>
    %cst_23 = arith.constant dense<0.000000e+00> : vector<128xf32>
    %24 = vector.multi_reduction <add>, %23, %cst_23 [0] : vector<128x128xf32> to vector<128xf32>
    %25 = vector.shape_cast %24 : vector<128xf32> to vector<1x128xf32>
    %26 = vector.shape_cast %25 : vector<1x128xf32> to vector<1x1x128xf32>
    %c0_24 = arith.constant 0 : index
    %c0_25 = arith.constant 0 : index
    %c0_26 = arith.constant 0 : index
    %27 = vector.load %arg9[%c0_24, %c0_25, %c0_26] : memref<1x1x128xf32, #tpu.memory_space<vmem>>, vector<1x1x128xf32>
    tpu.vector_store %arg9[%c0_24, %c0_25, %c0_26], %26 {strides = array<i32>} : memref<1x1x128xf32, #tpu.memory_space<vmem>>, vector<1x1x128xf32>,
    return
  }
  func.func @transform_0(%arg0: i32) -> (i32, i32) {
    %c0_i32 = arith.constant 0 : i32
    %c0_i32_0 = arith.constant 0 : i32
    return %arg0, %c0_i32 : i32, i32
  }
  func.func @transform_1(%arg0: i32) -> (i32, i32) {
    %c0_i32 = arith.constant 0 : i32
    %c0_i32_0 = arith.constant 0 : i32
    %c0_i32_1 = arith.constant 0 : i32
    return %c0_i32, %c0_i32_0 : i32, i32
  }
  func.func @transform_2(%arg0: i32) -> (i32, i32) {
    %c0_i32 = arith.constant 0 : i32
    %c0_i32_0 = arith.constant 0 : i32
    %c0_i32_1 = arith.constant 0 : i32
    return %c0_i32, %c0_i32_0 : i32, i32
  }
  func.func @transform_3(%arg0: i32) -> (i32, i32) {
    %c0_i32 = arith.constant 0 : i32
    %c0_i32_0 = arith.constant 0 : i32
    return %arg0, %c0_i32 : i32, i32
  }
  func.func @transform_4(%arg0: i32) -> (i32, i32, i32) {
    %c0_i32 = arith.constant 0 : i32
    %c0_i32_0 = arith.constant 0 : i32
    %c0_i32_1 = arith.constant 0 : i32
    return %arg0, %c0_i32, %c0_i32_0 : i32, i32, i32
  }
  func.func @transform_5(%arg0: i32) -> (i32, i32, i32) {
    %c0_i32 = arith.constant 0 : i32
    %c0_i32_0 = arith.constant 0 : i32
    %c0_i32_1 = arith.constant 0 : i32
    return %arg0, %c0_i32, %c0_i32_0 : i32, i32, i32
  }
  func.func @transform_6(%arg0: i32) -> (i32, i32) {
    %c0_i32 = arith.constant 0 : i32
    %c0_i32_0 = arith.constant 0 : i32
    return %arg0, %c0_i32 : i32, i32
  }
  func.func @transform_7(%arg0: i32) -> (i32, i32, i32) {
    %c0_i32 = arith.constant 0 : i32
    %c0_i32_0 = arith.constant 0 : i32
    %c0_i32_1 = arith.constant 0 : i32
    return %arg0, %c0_i32, %c0_i32_0 : i32, i32, i32
  }
  func.func @transform_8(%arg0: i32) -> (i32, i32, i32) {
    %c0_i32 = arith.constant 0 : i32
    %c0_i32_0 = arith.constant 0 : i32
    %c0_i32_1 = arith.constant 0 : i32
    return %arg0, %c0_i32, %c0_i32_0 : i32, i32, i32
  }
}

module attributes {stable_mosaic.version = 11 : i64} {
  func.func @_conv_stats_kernel(%arg0: i32, %arg1: memref<128x1152xbf16, #tpu.memory_space<vmem>>, %arg2: memref<1152x128xbf16, #tpu.memory_space<vmem>>, %arg3: memref<128x128xbf16, #tpu.memory_space<vmem>>, %arg4: memref<1x1x128xf32, #tpu.memory_space<vmem>>, %arg5: memref<1x1x128xf32, #tpu.memory_space<vmem>>) attributes {dimension_semantics = [#tpu.dimension_semantics<parallel>], iteration_bounds = array<i64: 1>, scalar_prefetch = 0 : i64, scratch_operands = 0 : i64, tpu.core_type = #tpu.core_type<tc>, window_params = [{transform_indices = @transform_0, window_bounds = array<i64: 128, 1152>}, {pipeline_mode = #tpu.pipeline_mode<synchronous>, transform_indices = @transform_1, window_bounds = array<i64: 1152, 128>}, {transform_indices = @transform_2, window_bounds = array<i64: 128, 128>}, {transform_indices = @transform_3, window_bounds = array<i64: 1, 1, 128>}, {transform_indices = @transform_4, window_bounds = array<i64: 1, 1, 128>}]} {
    %c0 = arith.constant 0 : index
    %c0_0 = arith.constant 0 : index
    %0 = vector.load %arg1[%c0, %c0_0] : memref<128x1152xbf16, #tpu.memory_space<vmem>>, vector<128x1152xbf16>
    %c0_1 = arith.constant 0 : index
    %c0_2 = arith.constant 0 : index
    %1 = vector.load %arg2[%c0_1, %c0_2] : memref<1152x128xbf16, #tpu.memory_space<vmem>>, vector<1152x128xbf16>
    %cst = arith.constant dense<0.000000e+00> : vector<128x128xf32>
    %2 = tpu.matmul %0, %1, %cst {dimension_numbers = #tpu.dot_dimension_numbers<[1], [0], [0], [1], [0, 0, 1, 1], [], []>} : vector<128x1152xbf16>, vector<1152x128xbf16>, vector<128x128xf32> -> vector<128x128xf32>
    %3 = arith.truncf %2 : vector<128x128xf32> to vector<128x128xbf16>
    %c0_3 = arith.constant 0 : index
    %c0_4 = arith.constant 0 : index
    %4 = vector.load %arg3[%c0_3, %c0_4] : memref<128x128xbf16, #tpu.memory_space<vmem>>, vector<128x128xbf16>
    tpu.vector_store %arg3[%c0_3, %c0_4], %3 {strides = array<i32>} : memref<128x128xbf16, #tpu.memory_space<vmem>>, vector<128x128xbf16>,
    %cst_5 = arith.constant dense<0.000000e+00> : vector<128xf32>
    %5 = vector.multi_reduction <add>, %2, %cst_5 [0] : vector<128x128xf32> to vector<128xf32>
    %6 = vector.shape_cast %5 : vector<128xf32> to vector<1x128xf32>
    %7 = vector.shape_cast %6 : vector<1x128xf32> to vector<1x1x128xf32>
    %c0_6 = arith.constant 0 : index
    %c0_7 = arith.constant 0 : index
    %c0_8 = arith.constant 0 : index
    %8 = vector.load %arg4[%c0_6, %c0_7, %c0_8] : memref<1x1x128xf32, #tpu.memory_space<vmem>>, vector<1x1x128xf32>
    tpu.vector_store %arg4[%c0_6, %c0_7, %c0_8], %7 {strides = array<i32>} : memref<1x1x128xf32, #tpu.memory_space<vmem>>, vector<1x1x128xf32>,
    %9 = arith.mulf %2, %2 : vector<128x128xf32>
    %cst_9 = arith.constant dense<0.000000e+00> : vector<128xf32>
    %10 = vector.multi_reduction <add>, %9, %cst_9 [0] : vector<128x128xf32> to vector<128xf32>
    %11 = vector.shape_cast %10 : vector<128xf32> to vector<1x128xf32>
    %12 = vector.shape_cast %11 : vector<1x128xf32> to vector<1x1x128xf32>
    %c0_10 = arith.constant 0 : index
    %c0_11 = arith.constant 0 : index
    %c0_12 = arith.constant 0 : index
    %13 = vector.load %arg5[%c0_10, %c0_11, %c0_12] : memref<1x1x128xf32, #tpu.memory_space<vmem>>, vector<1x1x128xf32>
    tpu.vector_store %arg5[%c0_10, %c0_11, %c0_12], %12 {strides = array<i32>} : memref<1x1x128xf32, #tpu.memory_space<vmem>>, vector<1x1x128xf32>,
    return
  }
  func.func @transform_0(%arg0: i32) -> (i32, i32) {
    %c0_i32 = arith.constant 0 : i32
    %c0_i32_0 = arith.constant 0 : i32
    return %arg0, %c0_i32 : i32, i32
  }
  func.func @transform_1(%arg0: i32) -> (i32, i32) {
    %c0_i32 = arith.constant 0 : i32
    %c0_i32_0 = arith.constant 0 : i32
    %c0_i32_1 = arith.constant 0 : i32
    return %c0_i32, %c0_i32_0 : i32, i32
  }
  func.func @transform_2(%arg0: i32) -> (i32, i32) {
    %c0_i32 = arith.constant 0 : i32
    %c0_i32_0 = arith.constant 0 : i32
    return %arg0, %c0_i32 : i32, i32
  }
  func.func @transform_3(%arg0: i32) -> (i32, i32, i32) {
    %c0_i32 = arith.constant 0 : i32
    %c0_i32_0 = arith.constant 0 : i32
    %c0_i32_1 = arith.constant 0 : i32
    return %arg0, %c0_i32, %c0_i32_0 : i32, i32, i32
  }
  func.func @transform_4(%arg0: i32) -> (i32, i32, i32) {
    %c0_i32 = arith.constant 0 : i32
    %c0_i32_0 = arith.constant 0 : i32
    %c0_i32_1 = arith.constant 0 : i32
    return %arg0, %c0_i32, %c0_i32_0 : i32, i32, i32
  }
}

module attributes {stable_mosaic.version = 11 : i64} {
  func.func @_bn_add_relu_kernel(%arg0: i32, %arg1: memref<128x128xbf16, #tpu.memory_space<vmem>>, %arg2: memref<1x128xf32, #tpu.memory_space<vmem>>, %arg3: memref<1x128xf32, #tpu.memory_space<vmem>>, %arg4: memref<128x128xbf16, #tpu.memory_space<vmem>>, %arg5: memref<1x128xf32, #tpu.memory_space<vmem>>, %arg6: memref<1x128xf32, #tpu.memory_space<vmem>>, %arg7: memref<128x128xf32, #tpu.memory_space<vmem>>) attributes {dimension_semantics = [#tpu.dimension_semantics<parallel>], iteration_bounds = array<i64: 1>, scalar_prefetch = 0 : i64, scratch_operands = 0 : i64, tpu.core_type = #tpu.core_type<tc>, window_params = [{transform_indices = @transform_0, window_bounds = array<i64: 128, 128>}, {pipeline_mode = #tpu.pipeline_mode<synchronous>, transform_indices = @transform_1, window_bounds = array<i64: 1, 128>}, {pipeline_mode = #tpu.pipeline_mode<synchronous>, transform_indices = @transform_2, window_bounds = array<i64: 1, 128>}, {transform_indices = @transform_3, window_bounds = array<i64: 128, 128>}, {pipeline_mode = #tpu.pipeline_mode<synchronous>, transform_indices = @transform_4, window_bounds = array<i64: 1, 128>}, {pipeline_mode = #tpu.pipeline_mode<synchronous>, transform_indices = @transform_5, window_bounds = array<i64: 1, 128>}, {transform_indices = @transform_6, window_bounds = array<i64: 128, 128>}]} {
    %c0 = arith.constant 0 : index
    %c0_0 = arith.constant 0 : index
    %0 = vector.load %arg1[%c0, %c0_0] : memref<128x128xbf16, #tpu.memory_space<vmem>>, vector<128x128xbf16>
    %1 = arith.extf %0 : vector<128x128xbf16> to vector<128x128xf32>
    %c0_1 = arith.constant 0 : index
    %c0_2 = arith.constant 0 : index
    %2 = vector.load %arg2[%c0_1, %c0_2] : memref<1x128xf32, #tpu.memory_space<vmem>>, vector<1x128xf32>
    %3 = vector.broadcast %2 : vector<1x128xf32> to vector<128x128xf32>
    %4 = arith.mulf %1, %3 : vector<128x128xf32>
    %c0_3 = arith.constant 0 : index
    %c0_4 = arith.constant 0 : index
    %5 = vector.load %arg3[%c0_3, %c0_4] : memref<1x128xf32, #tpu.memory_space<vmem>>, vector<1x128xf32>
    %6 = vector.broadcast %5 : vector<1x128xf32> to vector<128x128xf32>
    %7 = arith.addf %4, %6 : vector<128x128xf32>
    %c0_5 = arith.constant 0 : index
    %c0_6 = arith.constant 0 : index
    %8 = vector.load %arg4[%c0_5, %c0_6] : memref<128x128xbf16, #tpu.memory_space<vmem>>, vector<128x128xbf16>
    %9 = arith.extf %8 : vector<128x128xbf16> to vector<128x128xf32>
    %c0_7 = arith.constant 0 : index
    %c0_8 = arith.constant 0 : index
    %10 = vector.load %arg5[%c0_7, %c0_8] : memref<1x128xf32, #tpu.memory_space<vmem>>, vector<1x128xf32>
    %11 = vector.broadcast %10 : vector<1x128xf32> to vector<128x128xf32>
    %12 = arith.mulf %9, %11 : vector<128x128xf32>
    %13 = arith.addf %7, %12 : vector<128x128xf32>
    %c0_9 = arith.constant 0 : index
    %c0_10 = arith.constant 0 : index
    %14 = vector.load %arg6[%c0_9, %c0_10] : memref<1x128xf32, #tpu.memory_space<vmem>>, vector<1x128xf32>
    %15 = vector.broadcast %14 : vector<1x128xf32> to vector<128x128xf32>
    %16 = arith.addf %13, %15 : vector<128x128xf32>
    %cst = arith.constant 0.000000e+00 : f32
    %17 = vector.broadcast %cst : f32 to vector<128x128xf32>
    %18 = arith.maximumf %16, %17 : vector<128x128xf32>
    %c0_11 = arith.constant 0 : index
    %c0_12 = arith.constant 0 : index
    %19 = vector.load %arg7[%c0_11, %c0_12] : memref<128x128xf32, #tpu.memory_space<vmem>>, vector<128x128xf32>
    tpu.vector_store %arg7[%c0_11, %c0_12], %18 {strides = array<i32>} : memref<128x128xf32, #tpu.memory_space<vmem>>, vector<128x128xf32>,
    return
  }
  func.func @transform_0(%arg0: i32) -> (i32, i32) {
    %c0_i32 = arith.constant 0 : i32
    %c0_i32_0 = arith.constant 0 : i32
    return %arg0, %c0_i32 : i32, i32
  }
  func.func @transform_1(%arg0: i32) -> (i32, i32) {
    %c0_i32 = arith.constant 0 : i32
    %c0_i32_0 = arith.constant 0 : i32
    %c0_i32_1 = arith.constant 0 : i32
    return %c0_i32, %c0_i32_0 : i32, i32
  }
  func.func @transform_2(%arg0: i32) -> (i32, i32) {
    %c0_i32 = arith.constant 0 : i32
    %c0_i32_0 = arith.constant 0 : i32
    %c0_i32_1 = arith.constant 0 : i32
    return %c0_i32, %c0_i32_0 : i32, i32
  }
  func.func @transform_3(%arg0: i32) -> (i32, i32) {
    %c0_i32 = arith.constant 0 : i32
    %c0_i32_0 = arith.constant 0 : i32
    return %arg0, %c0_i32 : i32, i32
  }
  func.func @transform_4(%arg0: i32) -> (i32, i32) {
    %c0_i32 = arith.constant 0 : i32
    %c0_i32_0 = arith.constant 0 : i32
    %c0_i32_1 = arith.constant 0 : i32
    return %c0_i32, %c0_i32_0 : i32, i32
  }
  func.func @transform_5(%arg0: i32) -> (i32, i32) {
    %c0_i32 = arith.constant 0 : i32
    %c0_i32_0 = arith.constant 0 : i32
    %c0_i32_1 = arith.constant 0 : i32
    return %c0_i32, %c0_i32_0 : i32, i32
  }
  func.func @transform_6(%arg0: i32) -> (i32, i32) {
    %c0_i32 = arith.constant 0 : i32
    %c0_i32_0 = arith.constant 0 : i32
    return %arg0, %c0_i32 : i32, i32
  }
}

</mosaic_0001>

<llo_original>
// kernel: resblock_forward.5
$region0: #{resblock_forward.5}
  #allocation0 [shape = 'u32[]', space=smem, size = 0x4, offset = 0x4, fixed_abs, tag = 'smem constant byte address 0x4 - core index']
  #allocation1 [shape = 'u32[144,128]{1,0:T(1,128)}', space=vmem, size = 0x12000, scoped, tag = 'internal scratch']
  %s0 = inlined_call_operand.vmem [shape: bf16[128,128], index: 0, kind: input, shape index: {}]
  %s1 = inlined_call_operand.vmem [shape: f32[1,128], index: 1, kind: input, shape index: {}]
  %s2 = inlined_call_operand.vmem [shape: f32[1,128], index: 2, kind: input, shape index: {}]
  %s3 = inlined_call_operand.vmem [shape: bf16[128,128], index: 3, kind: output, shape index: {}]
  %s4 = sld [smem:[#allocation0]]
  $region22: #{resblock_forward.5} parent=0
    _
  %s6 = ssub.s32 1, %s4
  %s7 = scalar_select 0, %s6, %s4
  // Predicated region
  $region2: #{resblock_forward.5} parent=0 // pred_check
    _
  $region3: #{resblock_forward.5} parent=0 // pred_check_branch
    %9 = sbr.rel (0) target = $region5
  $region4: #{resblock_forward.5} parent=0 // pred_region
    _
  $region5: #{resblock_forward.5} parent=0 // pred_fallthru
    _
  // Predicated region
  $region6: #{resblock_forward.5} parent=0 // pred_check
    _
  $region7: #{resblock_forward.5} parent=0 // pred_check_branch
    %11 = sbr.rel (0) target = $region9
  $region8: #{resblock_forward.5} parent=0 // pred_region
    _
  $region9: #{resblock_forward.5} parent=0 // pred_fallthru
    _
  // Predicated region
  $region10: #{resblock_forward.5} parent=0 // pred_check
    _
  $region11: #{resblock_forward.5} parent=0 // pred_check_branch
    %13 = sbr.rel (0) target = $region13
  $region12: #{resblock_forward.5} parent=0 // pred_region
    _
  $region13: #{resblock_forward.5} parent=0 // pred_fallthru
    _
  %v14 = vld [vmem:[%s0] sm:$0xf]
  %v15 = vld [vmem:[%s0 + $0x4] sm:$0xf]
  %v16 = vld [vmem:[%s0 + $0x8] sm:$0xf]
  %v17 = vld [vmem:[%s0 + $0xc] sm:$0xf]
  %v18 = vld [vmem:[%s0 + $0x10] sm:$0xf]
  %v19 = vld [vmem:[%s0 + $0x14] sm:$0xf]
  %v20 = vld [vmem:[%s0 + $0x18] sm:$0xf]
  %v21 = vld [vmem:[%s0 + $0x1c] sm:$0xf]
  %v22 = vld [vmem:[%s0 + $0x20] sm:$0xf]
  %v23 = vld [vmem:[%s0 + $0x24] sm:$0xf]
  %v24 = vld [vmem:[%s0 + $0x28] sm:$0xf]
  %v25 = vld [vmem:[%s0 + $0x2c] sm:$0xf]
  %v26 = vld [vmem:[%s0 + $0x30] sm:$0xf]
  %v27 = vld [vmem:[%s0 + $0x34] sm:$0xf]
  %v28 = vld [vmem:[%s0 + $0x38] sm:$0xf]
  %v29 = vld [vmem:[%s0 + $0x3c] sm:$0xf]
  %v30 = vunpack.c.l.bf16 %v14
  %v31 = vunpack.c.l.bf16 %v15
  %v32 = vunpack.c.l.bf16 %v16
  %v33 = vunpack.c.l.bf16 %v17
  %v34 = vunpack.c.l.bf16 %v18
  %v35 = vunpack.c.l.bf16 %v19
  %v36 = vunpack.c.l.bf16 %v20
  %v37 = vunpack.c.l.bf16 %v21
  %v38 = vunpack.c.l.bf16 %v22
  %v39 = vunpack.c.l.bf16 %v23
  %v40 = vunpack.c.l.bf16 %v24
  %v41 = vunpack.c.l.bf16 %v25
  %v42 = vunpack.c.l.bf16 %v26
  %v43 = vunpack.c.l.bf16 %v27
  %v44 = vunpack.c.l.bf16 %v28
  %v45 = vunpack.c.l.bf16 %v29
  %v46 = vld [vmem:[%s1] sm:$0x1]
  %v48 = vlaneseq
  %v49 = vshrl.u32 %v48, 7
  %v50 = vsub.s32 0, %v49
  %v51 = vrot.slane %v46, %v50
  %v53 = vmul.f32 %v30, %v51
  %v54 = vmul.f32 %v31, %v51
  %v55 = vmul.f32 %v32, %v51
  %v56 = vmul.f32 %v33, %v51
  %v57 = vmul.f32 %v34, %v51
  %v58 = vmul.f32 %v35, %v51
  %v59 = vmul.f32 %v36, %v51
  %v60 = vmul.f32 %v37, %v51
  %v61 = vmul.f32 %v38, %v51
  %v62 = vmul.f32 %v39, %v51
  %v63 = vmul.f32 %v40, %v51
  %v64 = vmul.f32 %v41, %v51
  %v65 = vmul.f32 %v42, %v51
  %v66 = vmul.f32 %v43, %v51
  %v67 = vmul.f32 %v44, %v51
  %v68 = vmul.f32 %v45, %v51
  %v69 = vld [vmem:[%s2] sm:$0x1]
  %v71 = vlaneseq
  %v72 = vshrl.u32 %v71, 7
  %v73 = vsub.s32 0, %v72
  %v74 = vrot.slane %v69, %v73
  %v76 = vadd.f32 %v53, %v74
  %v77 = vadd.f32 %v54, %v74
  %v78 = vadd.f32 %v55, %v74
  %v79 = vadd.f32 %v56, %v74
  %v80 = vadd.f32 %v57, %v74
  %v81 = vadd.f32 %v58, %v74
  %v82 = vadd.f32 %v59, %v74
  %v83 = vadd.f32 %v60, %v74
  %v84 = vadd.f32 %v61, %v74
  %v85 = vadd.f32 %v62, %v74
  %v86 = vadd.f32 %v63, %v74
  %v87 = vadd.f32 %v64, %v74
  %v88 = vadd.f32 %v65, %v74
  %v89 = vadd.f32 %v66, %v74
  %v90 = vadd.f32 %v67, %v74
  %v91 = vadd.f32 %v68, %v74
  %v92 = vmax.f32 %v76, 0.0
  %v93 = vmax.f32 %v77, 0.0
  %v94 = vmax.f32 %v78, 0.0
  %v95 = vmax.f32 %v79, 0.0
  %v96 = vmax.f32 %v80, 0.0
  %v97 = vmax.f32 %v81, 0.0
  %v98 = vmax.f32 %v82, 0.0
  %v99 = vmax.f32 %v83, 0.0
  %v100 = vmax.f32 %v84, 0.0
  %v101 = vmax.f32 %v85, 0.0
  %v102 = vmax.f32 %v86, 0.0
  %v103 = vmax.f32 %v87, 0.0
  %v104 = vmax.f32 %v88, 0.0
  %v105 = vmax.f32 %v89, 0.0
  %v106 = vmax.f32 %v90, 0.0
  %v107 = vmax.f32 %v91, 0.0
  %v108 = vpack.c.bf16 %v93, %v92
  %v109 = vpack.c.bf16 %v95, %v94
  %v110 = vpack.c.bf16 %v97, %v96
  %v111 = vpack.c.bf16 %v99, %v98
  %v112 = vpack.c.bf16 %v101, %v100
  %v113 = vpack.c.bf16 %v103, %v102
  %v114 = vpack.c.bf16 %v105, %v104
  %v115 = vpack.c.bf16 %v107, %v106
  %v124 = vunpack.c.l.b16 %v108
  %v125 = vunpack.c.h.b16 %v108
  %v126 = vunpack.c.l.b16 %v109
  %v127 = vunpack.c.h.b16 %v109
  %v128 = vunpack.c.l.b16 %v110
  %v129 = vunpack.c.h.b16 %v110
  %v130 = vunpack.c.l.b16 %v111
  %v131 = vunpack.c.h.b16 %v111
  %v132 = vunpack.c.l.b16 %v112
  %v133 = vunpack.c.h.b16 %v112
  %v134 = vunpack.c.l.b16 %v113
  %v135 = vunpack.c.h.b16 %v113
  %v136 = vunpack.c.l.b16 %v114
  %v137 = vunpack.c.h.b16 %v114
  %v138 = vunpack.c.l.b16 %v115
  %v139 = vunpack.c.h.b16 %v115
  %v140 = vpack.c.b16 %v124, %v124
  %v141 = vpack.c.b16 %v125, %v125
  %v142 = vpack.c.b16 %v126, %v126
  %v143 = vpack.c.b16 %v127, %v127
  %v144 = vpack.c.b16 %v128, %v128
  %v145 = vpack.c.b16 %v129, %v129
  %v146 = vpack.c.b16 %v130, %v130
  %v147 = vpack.c.b16 %v131, %v131
  %v148 = vpack.c.b16 %v132, %v132
  %v149 = vpack.c.b16 %v133, %v133
  %v150 = vpack.c.b16 %v134, %v134
  %v151 = vpack.c.b16 %v135, %v135
  %v152 = vpack.c.b16 %v136, %v136
  %v153 = vpack.c.b16 %v137, %v137
  %v154 = vpack.c.b16 %v138, %v138
  %v155 = vpack.c.b16 %v139, %v139
  %172 = vst [vmem:[%s3] sm:$0xf] %v140
  %173 = vst [vmem:[%s3 + $0x4] sm:$0xf] %v141
  %174 = vst [vmem:[%s3 + $0x8] sm:$0xf] %v142
  %175 = vst [vmem:[%s3 + $0xc] sm:$0xf] %v143
  %176 = vst [vmem:[%s3 + $0x10] sm:$0xf] %v144
  %177 = vst [vmem:[%s3 + $0x14] sm:$0xf] %v145
  %178 = vst [vmem:[%s3 + $0x18] sm:$0xf] %v146
  %179 = vst [vmem:[%s3 + $0x1c] sm:$0xf] %v147
  %180 = vst [vmem:[%s3 + $0x20] sm:$0xf] %v148
  %181 = vst [vmem:[%s3 + $0x24] sm:$0xf] %v149
  %182 = vst [vmem:[%s3 + $0x28] sm:$0xf] %v150
  %183 = vst [vmem:[%s3 + $0x2c] sm:$0xf] %v151
  %184 = vst [vmem:[%s3 + $0x30] sm:$0xf] %v152
  %185 = vst [vmem:[%s3 + $0x34] sm:$0xf] %v153
  %186 = vst [vmem:[%s3 + $0x38] sm:$0xf] %v154
  %187 = vst [vmem:[%s3 + $0x3c] sm:$0xf] %v155
  // Predicated region
  $region14: #{resblock_forward.5} parent=0 // pred_check
    _
  $region15: #{resblock_forward.5} parent=0 // pred_check_branch
    %189 = sbr.rel (0) target = $region17
  $region16: #{resblock_forward.5} parent=0 // pred_region
    _
  $region17: #{resblock_forward.5} parent=0 // pred_fallthru
    _
  // Predicated region
  $region18: #{resblock_forward.5} parent=0 // pred_check
    _
  $region19: #{resblock_forward.5} parent=0 // pred_check_branch
    %191 = sbr.rel (0) target = $region21
  $region20: #{resblock_forward.5} parent=0 // pred_region
    _
  $region21: #{resblock_forward.5} parent=0 // pred_fallthru
    _

// kernel: resblock_forward.7
$region0: #{resblock_forward.7}
  #allocation0 [shape = 'u32[]', space=smem, size = 0x4, offset = 0x4, fixed_abs, tag = 'smem constant byte address 0x4 - core index']
  #allocation1 [shape = 'u32[144,128]{1,0:T(1,128)}', space=vmem, size = 0x12000, scoped, tag = 'internal scratch']
  %s0 = inlined_call_operand.vmem [shape: bf16[128,128], index: 0, kind: input, shape index: {}]
  %s1 = inlined_call_operand.vmem [shape: f32[1,128], index: 1, kind: input, shape index: {}]
  %s2 = inlined_call_operand.vmem [shape: f32[1,128], index: 2, kind: input, shape index: {}]
  %s3 = inlined_call_operand.vmem [shape: bf16[128,128], index: 3, kind: input, shape index: {}]
  %s4 = inlined_call_operand.vmem [shape: f32[1,128], index: 4, kind: input, shape index: {}]
  %s5 = inlined_call_operand.vmem [shape: f32[1,128], index: 5, kind: input, shape index: {}]
  %s6 = inlined_call_operand.vmem [shape: f32[128,128], index: 6, kind: output, shape index: {}]
  %s7 = sld [smem:[#allocation0]]
  $region34: #{resblock_forward.7} parent=0
    _
  %s9 = ssub.s32 1, %s7
  %s10 = scalar_select 0, %s9, %s7
  // Predicated region
  $region2: #{resblock_forward.7} parent=0 // pred_check
    _
  $region3: #{resblock_forward.7} parent=0 // pred_check_branch
    %12 = sbr.rel (0) target = $region5
  $region4: #{resblock_forward.7} parent=0 // pred_region
    _
  $region5: #{resblock_forward.7} parent=0 // pred_fallthru
    _
  // Predicated region
  $region6: #{resblock_forward.7} parent=0 // pred_check
    _
  $region7: #{resblock_forward.7} parent=0 // pred_check_branch
    %14 = sbr.rel (0) target = $region9
  $region8: #{resblock_forward.7} parent=0 // pred_region
    _
  $region9: #{resblock_forward.7} parent=0 // pred_fallthru
    _
  // Predicated region
  $region10: #{resblock_forward.7} parent=0 // pred_check
    _
  $region11: #{resblock_forward.7} parent=0 // pred_check_branch
    %16 = sbr.rel (0) target = $region13
  $region12: #{resblock_forward.7} parent=0 // pred_region
    _
  $region13: #{resblock_forward.7} parent=0 // pred_fallthru
    _
  // Predicated region
  $region14: #{resblock_forward.7} parent=0 // pred_check
    _
  $region15: #{resblock_forward.7} parent=0 // pred_check_branch
    %18 = sbr.rel (0) target = $region17
  $region16: #{resblock_forward.7} parent=0 // pred_region
    _
  $region17: #{resblock_forward.7} parent=0 // pred_fallthru
    _
  // Predicated region
  $region18: #{resblock_forward.7} parent=0 // pred_check
    _
  $region19: #{resblock_forward.7} parent=0 // pred_check_branch
    %20 = sbr.rel (0) target = $region21
  $region20: #{resblock_forward.7} parent=0 // pred_region
    _
  $region21: #{resblock_forward.7} parent=0 // pred_fallthru
    _
  // Predicated region
  $region22: #{resblock_forward.7} parent=0 // pred_check
    _
  $region23: #{resblock_forward.7} parent=0 // pred_check_branch
    %22 = sbr.rel (0) target = $region25
  $region24: #{resblock_forward.7} parent=0 // pred_region
    _
  $region25: #{resblock_forward.7} parent=0 // pred_fallthru
    _
  %v23 = vld [vmem:[%s0] sm:$0xf]
  %v24 = vld [vmem:[%s0 + $0x4] sm:$0xf]
  %v25 = vld [vmem:[%s0 + $0x8] sm:$0xf]
  %v26 = vld [vmem:[%s0 + $0xc] sm:$0xf]
  %v27 = vld [vmem:[%s0 + $0x10] sm:$0xf]
  %v28 = vld [vmem:[%s0 + $0x14] sm:$0xf]
  %v29 = vld [vmem:[%s0 + $0x18] sm:$0xf]
  %v30 = vld [vmem:[%s0 + $0x1c] sm:$0xf]
  %v31 = vld [vmem:[%s0 + $0x20] sm:$0xf]
  %v32 = vld [vmem:[%s0 + $0x24] sm:$0xf]
  %v33 = vld [vmem:[%s0 + $0x28] sm:$0xf]
  %v34 = vld [vmem:[%s0 + $0x2c] sm:$0xf]
  %v35 = vld [vmem:[%s0 + $0x30] sm:$0xf]
  %v36 = vld [vmem:[%s0 + $0x34] sm:$0xf]
  %v37 = vld [vmem:[%s0 + $0x38] sm:$0xf]
  %v38 = vld [vmem:[%s0 + $0x3c] sm:$0xf]
  %v39 = vunpack.c.l.bf16 %v23
  %v40 = vunpack.c.l.bf16 %v24
  %v41 = vunpack.c.l.bf16 %v25
  %v42 = vunpack.c.l.bf16 %v26
  %v43 = vunpack.c.l.bf16 %v27
  %v44 = vunpack.c.l.bf16 %v28
  %v45 = vunpack.c.l.bf16 %v29
  %v46 = vunpack.c.l.bf16 %v30
  %v47 = vunpack.c.l.bf16 %v31
  %v48 = vunpack.c.l.bf16 %v32
  %v49 = vunpack.c.l.bf16 %v33
  %v50 = vunpack.c.l.bf16 %v34
  %v51 = vunpack.c.l.bf16 %v35
  %v52 = vunpack.c.l.bf16 %v36
  %v53 = vunpack.c.l.bf16 %v37
  %v54 = vunpack.c.l.bf16 %v38
  %v55 = vld [vmem:[%s1] sm:$0x1]
  %v57 = vlaneseq
  %v58 = vshrl.u32 %v57, 7
  %v59 = vsub.s32 0, %v58
  %v60 = vrot.slane %v55, %v59
  %v62 = vmul.f32 %v39, %v60
  %v63 = vmul.f32 %v40, %v60
  %v64 = vmul.f32 %v41, %v60
  %v65 = vmul.f32 %v42, %v60
  %v66 = vmul.f32 %v43, %v60
  %v67 = vmul.f32 %v44, %v60
  %v68 = vmul.f32 %v45, %v60
  %v69 = vmul.f32 %v46, %v60
  %v70 = vmul.f32 %v47, %v60
  %v71 = vmul.f32 %v48, %v60
  %v72 = vmul.f32 %v49, %v60
  %v73 = vmul.f32 %v50, %v60
  %v74 = vmul.f32 %v51, %v60
  %v75 = vmul.f32 %v52, %v60
  %v76 = vmul.f32 %v53, %v60
  %v77 = vmul.f32 %v54, %v60
  %v78 = vld [vmem:[%s2] sm:$0x1]
  %v80 = vlaneseq
  %v81 = vshrl.u32 %v80, 7
  %v82 = vsub.s32 0, %v81
  %v83 = vrot.slane %v78, %v82
  %v85 = vadd.f32 %v62, %v83
  %v86 = vadd.f32 %v63, %v83
  %v87 = vadd.f32 %v64, %v83
  %v88 = vadd.f32 %v65, %v83
  %v89 = vadd.f32 %v66, %v83
  %v90 = vadd.f32 %v67, %v83
  %v91 = vadd.f32 %v68, %v83
  %v92 = vadd.f32 %v69, %v83
  %v93 = vadd.f32 %v70, %v83
  %v94 = vadd.f32 %v71, %v83
  %v95 = vadd.f32 %v72, %v83
  %v96 = vadd.f32 %v73, %v83
  %v97 = vadd.f32 %v74, %v83
  %v98 = vadd.f32 %v75, %v83
  %v99 = vadd.f32 %v76, %v83
  %v100 = vadd.f32 %v77, %v83
  %v101 = vld [vmem:[%s3] sm:$0xf]
  %v102 = vld [vmem:[%s3 + $0x4] sm:$0xf]
  %v103 = vld [vmem:[%s3 + $0x8] sm:$0xf]
  %v104 = vld [vmem:[%s3 + $0xc] sm:$0xf]
  %v105 = vld [vmem:[%s3 + $0x10] sm:$0xf]
  %v106 = vld [vmem:[%s3 + $0x14] sm:$0xf]
  %v107 = vld [vmem:[%s3 + $0x18] sm:$0xf]
  %v108 = vld [vmem:[%s3 + $0x1c] sm:$0xf]
  %v109 = vld [vmem:[%s3 + $0x20] sm:$0xf]
  %v110 = vld [vmem:[%s3 + $0x24] sm:$0xf]
  %v111 = vld [vmem:[%s3 + $0x28] sm:$0xf]
  %v112 = vld [vmem:[%s3 + $0x2c] sm:$0xf]
  %v113 = vld [vmem:[%s3 + $0x30] sm:$0xf]
  %v114 = vld [vmem:[%s3 + $0x34] sm:$0xf]
  %v115 = vld [vmem:[%s3 + $0x38] sm:$0xf]
  %v116 = vld [vmem:[%s3 + $0x3c] sm:$0xf]
  %v117 = vunpack.c.l.bf16 %v101
  %v118 = vunpack.c.l.bf16 %v102
  %v119 = vunpack.c.l.bf16 %v103
  %v120 = vunpack.c.l.bf16 %v104
  %v121 = vunpack.c.l.bf16 %v105
  %v122 = vunpack.c.l.bf16 %v106
  %v123 = vunpack.c.l.bf16 %v107
  %v124 = vunpack.c.l.bf16 %v108
  %v125 = vunpack.c.l.bf16 %v109
  %v126 = vunpack.c.l.bf16 %v110
  %v127 = vunpack.c.l.bf16 %v111
  %v128 = vunpack.c.l.bf16 %v112
  %v129 = vunpack.c.l.bf16 %v113
  %v130 = vunpack.c.l.bf16 %v114
  %v131 = vunpack.c.l.bf16 %v115
  %v132 = vunpack.c.l.bf16 %v116
  %v133 = vld [vmem:[%s4] sm:$0x1]
  %v135 = vlaneseq
  %v136 = vshrl.u32 %v135, 7
  %v137 = vsub.s32 0, %v136
  %v138 = vrot.slane %v133, %v137
  %v140 = vmul.f32 %v117, %v138
  %v141 = vmul.f32 %v118, %v138
  %v142 = vmul.f32 %v119, %v138
  %v143 = vmul.f32 %v120, %v138
  %v144 = vmul.f32 %v121, %v138
  %v145 = vmul.f32 %v122, %v138
  %v146 = vmul.f32 %v123, %v138
  %v147 = vmul.f32 %v124, %v138
  %v148 = vmul.f32 %v125, %v138
  %v149 = vmul.f32 %v126, %v138
  %v150 = vmul.f32 %v127, %v138
  %v151 = vmul.f32 %v128, %v138
  %v152 = vmul.f32 %v129, %v138
  %v153 = vmul.f32 %v130, %v138
  %v154 = vmul.f32 %v131, %v138
  %v155 = vmul.f32 %v132, %v138
  %v156 = vadd.f32 %v85, %v140
  %v157 = vadd.f32 %v86, %v141
  %v158 = vadd.f32 %v87, %v142
  %v159 = vadd.f32 %v88, %v143
  %v160 = vadd.f32 %v89, %v144
  %v161 = vadd.f32 %v90, %v145
  %v162 = vadd.f32 %v91, %v146
  %v163 = vadd.f32 %v92, %v147
  %v164 = vadd.f32 %v93, %v148
  %v165 = vadd.f32 %v94, %v149
  %v166 = vadd.f32 %v95, %v150
  %v167 = vadd.f32 %v96, %v151
  %v168 = vadd.f32 %v97, %v152
  %v169 = vadd.f32 %v98, %v153
  %v170 = vadd.f32 %v99, %v154
  %v171 = vadd.f32 %v100, %v155
  %v172 = vld [vmem:[%s5] sm:$0x1]
  %v174 = vlaneseq
  %v175 = vshrl.u32 %v174, 7
  %v176 = vsub.s32 0, %v175
  %v177 = vrot.slane %v172, %v176
  %v179 = vadd.f32 %v156, %v177
  %v180 = vadd.f32 %v157, %v177
  %v181 = vadd.f32 %v158, %v177
  %v182 = vadd.f32 %v159, %v177
  %v183 = vadd.f32 %v160, %v177
  %v184 = vadd.f32 %v161, %v177
  %v185 = vadd.f32 %v162, %v177
  %v186 = vadd.f32 %v163, %v177
  %v187 = vadd.f32 %v164, %v177
  %v188 = vadd.f32 %v165, %v177
  %v189 = vadd.f32 %v166, %v177
  %v190 = vadd.f32 %v167, %v177
  %v191 = vadd.f32 %v168, %v177
  %v192 = vadd.f32 %v169, %v177
  %v193 = vadd.f32 %v170, %v177
  %v194 = vadd.f32 %v171, %v177
  %v195 = vmax.f32 %v179, 0.0
  %v196 = vmax.f32 %v180, 0.0
  %v197 = vmax.f32 %v181, 0.0
  %v198 = vmax.f32 %v182, 0.0
  %v199 = vmax.f32 %v183, 0.0
  %v200 = vmax.f32 %v184, 0.0
  %v201 = vmax.f32 %v185, 0.0
  %v202 = vmax.f32 %v186, 0.0
  %v203 = vmax.f32 %v187, 0.0
  %v204 = vmax.f32 %v188, 0.0
  %v205 = vmax.f32 %v189, 0.0
  %v206 = vmax.f32 %v190, 0.0
  %v207 = vmax.f32 %v191, 0.0
  %v208 = vmax.f32 %v192, 0.0
  %v209 = vmax.f32 %v193, 0.0
  %v210 = vmax.f32 %v194, 0.0
  %211 = vst [vmem:[%s6] sm:$0xff] %v195
  %212 = vst [vmem:[%s6 + $0x8] sm:$0xff] %v196
  %213 = vst [vmem:[%s6 + $0x10] sm:$0xff] %v197
  %214 = vst [vmem:[%s6 + $0x18] sm:$0xff] %v198
  %215 = vst [vmem:[%s6 + $0x20] sm:$0xff] %v199
  %216 = vst [vmem:[%s6 + $0x28] sm:$0xff] %v200
  %217 = vst [vmem:[%s6 + $0x30] sm:$0xff] %v201
  %218 = vst [vmem:[%s6 + $0x38] sm:$0xff] %v202
  %219 = vst [vmem:[%s6 + $0x40] sm:$0xff] %v203
  %220 = vst [vmem:[%s6 + $0x48] sm:$0xff] %v204
  %221 = vst [vmem:[%s6 + $0x50] sm:$0xff] %v205
  %222 = vst [vmem:[%s6 + $0x58] sm:$0xff] %v206
  %223 = vst [vmem:[%s6 + $0x60] sm:$0xff] %v207
  %224 = vst [vmem:[%s6 + $0x68] sm:$0xff] %v208
  %225 = vst [vmem:[%s6 + $0x70] sm:$0xff] %v209
  %226 = vst [vmem:[%s6 + $0x78] sm:$0xff] %v210
  // Predicated region
  $region26: #{resblock_forward.7} parent=0 // pred_check
    _
  $region27: #{resblock_forward.7} parent=0 // pred_check_branch
    %228 = sbr.rel (0) target = $region29
  $region28: #{resblock_forward.7} parent=0 // pred_region
    _
  $region29: #{resblock_forward.7} parent=0 // pred_fallthru
    _
  // Predicated region
  $region30: #{resblock_forward.7} parent=0 // pred_check
    _
  $region31: #{resblock_forward.7} parent=0 // pred_check_branch
    %230 = sbr.rel (0) target = $region33
  $region32: #{resblock_forward.7} parent=0 // pred_region
    _
  $region33: #{resblock_forward.7} parent=0 // pred_fallthru
    _

// kernel: resblock_forward.4
$region0: #{resblock_forward.4}
  #allocation0 [shape = 'u32[]', space=smem, size = 0x4, offset = 0x4, fixed_abs, tag = 'smem constant byte address 0x4 - core index']
  #allocation1 [shape = 'u32[144,128]{1,0:T(1,128)}', space=vmem, size = 0x12000, scoped, tag = 'internal scratch']
  %s0 = inlined_call_operand.vmem [shape: bf16[128,1152], index: 0, kind: input, shape index: {}]
  %s1 = inlined_call_operand.vmem [shape: bf16[1152,128], index: 1, kind: input, shape index: {}]
  %s2 = inlined_call_operand.vmem [shape: bf16[128,128], index: 2, kind: input, shape index: {}]
  %s3 = inlined_call_operand.vmem [shape: bf16[128,128], index: 3, kind: output, shape index: {0}]
  %s4 = inlined_call_operand.vmem [shape: f32[1,1,128], index: 4, kind: output, shape index: {1}]
  %s5 = inlined_call_operand.vmem [shape: f32[1,1,128], index: 5, kind: output, shape index: {2}]
  %s6 = inlined_call_operand.vmem [shape: bf16[128,128], index: 6, kind: output, shape index: {3}]
  %s7 = inlined_call_operand.vmem [shape: f32[1,1,128], index: 7, kind: output, shape index: {4}]
  %s8 = inlined_call_operand.vmem [shape: f32[1,1,128], index: 8, kind: output, shape index: {5}]
  %9 = xla_tuple %s3, %s4, %s5, %s6, %s7, %s8
  %s10 = sld [smem:[#allocation0]]
  $region62: #{resblock_forward.4} parent=0
    _
  %s12 = ssub.s32 1, %s10
  %s13 = scalar_select 0, %s12, %s10
  // Predicated region
  $region2: #{resblock_forward.4} parent=0 // pred_check
    _
  $region3: #{resblock_forward.4} parent=0 // pred_check_branch
    %15 = sbr.rel (0) target = $region5
  $region4: #{resblock_forward.4} parent=0 // pred_region
    _
  $region5: #{resblock_forward.4} parent=0 // pred_fallthru
    _
  // Predicated region
  $region6: #{resblock_forward.4} parent=0 // pred_check
    _
  $region7: #{resblock_forward.4} parent=0 // pred_check_branch
    %17 = sbr.rel (0) target = $region9
  $region8: #{resblock_forward.4} parent=0 // pred_region
    _
  $region9: #{resblock_forward.4} parent=0 // pred_fallthru
    _
  // Predicated region
  $region10: #{resblock_forward.4} parent=0 // pred_check
    _
  $region11: #{resblock_forward.4} parent=0 // pred_check_branch
    %19 = sbr.rel (0) target = $region13
  $region12: #{resblock_forward.4} parent=0 // pred_region
    _
  $region13: #{resblock_forward.4} parent=0 // pred_fallthru
    _
  %v21 = vld [vmem:[%s0] sm:$0xff]
  %v22 = vld [vmem:[%s0 + $0x8] sm:$0xff]
  %v23 = vld [vmem:[%s0 + $0x10] sm:$0xff]
  %v24 = vld [vmem:[%s0 + $0x18] sm:$0xff]
  %v25 = vld [vmem:[%s0 + $0x20] sm:$0xf]
  %v26 = vld [vmem:[%s0 + $0x24] sm:$0xff]
  %v27 = vld [vmem:[%s0 + $0x2c] sm:$0xff]
  %v28 = vld [vmem:[%s0 + $0x34] sm:$0xff]
  %v29 = vld [vmem:[%s0 + $0x3c] sm:$0xff]
  %v30 = vld [vmem:[%s0 + $0x44] sm:$0xf]
  %v31 = vld [vmem:[%s0 + $0x48] sm:$0xff]
  %v32 = vld [vmem:[%s0 + $0x50] sm:$0xff]
  %v33 = vld [vmem:[%s0 + $0x58] sm:$0xff]
  %v34 = vld [vmem:[%s0 + $0x60] sm:$0xff]
  %v35 = vld [vmem:[%s0 + $0x68] sm:$0xf]
  %v36 = vld [vmem:[%s0 + $0x6c] sm:$0xff]
  %v37 = vld [vmem:[%s0 + $0x74] sm:$0xff]
  %v38 = vld [vmem:[%s0 + $0x7c] sm:$0xff]
  %v39 = vld [vmem:[%s0 + $0x84] sm:$0xff]
  %v40 = vld [vmem:[%s0 + $0x8c] sm:$0xf]
  %v41 = vld [vmem:[%s0 + $0x90] sm:$0xff]
  %v42 = vld [vmem:[%s0 + $0x98] sm:$0xff]
  %v43 = vld [vmem:[%s0 + $0xa0] sm:$0xff]
  %v44 = vld [vmem:[%s0 + $0xa8] sm:$0xff]
  %v45 = vld [vmem:[%s0 + $0xb0] sm:$0xf]
  %v46 = vld [vmem:[%s0 + $0xb4] sm:$0xff]
  %v47 = vld [vmem:[%s0 + $0xbc] sm:$0xff]
  %v48 = vld [vmem:[%s0 + $0xc4] sm:$0xff]
  %v49 = vld [vmem:[%s0 + $0xcc] sm:$0xff]
  %v50 = vld [vmem:[%s0 + $0xd4] sm:$0xf]
  %v51 = vld [vmem:[%s0 + $0xd8] sm:$0xff]
  %v52 = vld [vmem:[%s0 + $0xe0] sm:$0xff]
  %v53 = vld [vmem:[%s0 + $0xe8] sm:$0xff]
  %v54 = vld [vmem:[%s0 + $0xf0] sm:$0xff]
  %v55 = vld [vmem:[%s0 + $0xf8] sm:$0xf]
  %v56 = vld [vmem:[%s0 + $0xfc] sm:$0xff]
  %v57 = vld [vmem:[%s0 + $0x104] sm:$0xff]
  %v58 = vld [vmem:[%s0 + $0x10c] sm:$0xff]
  %v59 = vld [vmem:[%s0 + $0x114] sm:$0xff]
  %v60 = vld [vmem:[%s0 + $0x11c] sm:$0xf]
  %v61 = vld [vmem:[%s0 + $0x120] sm:$0xff]
  %v62 = vld [vmem:[%s0 + $0x128] sm:$0xff]
  %v63 = vld [vmem:[%s0 + $0x130] sm:$0xff]
  %v64 = vld [vmem:[%s0 + $0x138] sm:$0xff]
  %v65 = vld [vmem:[%s0 + $0x140] sm:$0xf]
  %v66 = vld [vmem:[%s0 + $0x144] sm:$0xff]
  %v67 = vld [vmem:[%s0 + $0x14c] sm:$0xff]
  %v68 = vld [vmem:[%s0 + $0x154] sm:$0xff]
  %v69 = vld [vmem:[%s0 + $0x15c] sm:$0xff]
  %v70 = vld [vmem:[%s0 + $0x164] sm:$0xf]
  %v71 = vld [vmem:[%s0 + $0x168] sm:$0xff]
  %v72 = vld [vmem:[%s0 + $0x170] sm:$0xff]
  %v73 = vld [vmem:[%s0 + $0x178] sm:$0xff]
  %v74 = vld [vmem:[%s0 + $0x180] sm:$0xff]
  %v75 = vld [vmem:[%s0 + $0x188] sm:$0xf]
  %v76 = vld [vmem:[%s0 + $0x18c] sm:$0xff]
  %v77 = vld [vmem:[%s0 + $0x194] sm:$0xff]
  %v78 = vld [vmem:[%s0 + $0x19c] sm:$0xff]
  %v79 = vld [vmem:[%s0 + $0x1a4] sm:$0xff]
  %v80 = vld [vmem:[%s0 + $0x1ac] sm:$0xf]
  %v81 = vld [vmem:[%s0 + $0x1b0] sm:$0xff]
  %v82 = vld [vmem:[%s0 + $0x1b8] sm:$0xff]
  %v83 = vld [vmem:[%s0 + $0x1c0] sm:$0xff]
  %v84 = vld [vmem:[%s0 + $0x1c8] sm:$0xff]
  %v85 = vld [vmem:[%s0 + $0x1d0] sm:$0xf]
  %v86 = vld [vmem:[%s0 + $0x1d4] sm:$0xff]
  %v87 = vld [vmem:[%s0 + $0x1dc] sm:$0xff]
  %v88 = vld [vmem:[%s0 + $0x1e4] sm:$0xff]
  %v89 = vld [vmem:[%s0 + $0x1ec] sm:$0xff]
  %v90 = vld [vmem:[%s0 + $0x1f4] sm:$0xf]
  %v91 = vld [vmem:[%s0 + $0x1f8] sm:$0xff]
  %v92 = vld [vmem:[%s0 + $0x200] sm:$0xff]
  %v93 = vld [vmem:[%s0 + $0x208] sm:$0xff]
  %v94 = vld [vmem:[%s0 + $0x210] sm:$0xff]
  %v95 = vld [vmem:[%s0 + $0x218] sm:$0xf]
  %v96 = vld [vmem:[%s0 + $0x21c] sm:$0xff]
  %v97 = vld [vmem:[%s0 + $0x224] sm:$0xff]
  %v98 = vld [vmem:[%s0 + $0x22c] sm:$0xff]
  %v99 = vld [vmem:[%s0 + $0x234] sm:$0xff]
  %v100 = vld [vmem:[%s0 + $0x23c] sm:$0xf]
  %v101 = vld [vmem:[%s1] sm:$0xf]
  %v102 = vld [vmem:[%s1 + $0x4] sm:$0xf]
  %v103 = vld [vmem:[%s1 + $0x8] sm:$0xf]
  %v104 = vld [vmem:[%s1 + $0xc] sm:$0xf]
  %v105 = vld [vmem:[%s1 + $0x10] sm:$0xf]
  %v106 = vld [vmem:[%s1 + $0x14] sm:$0xf]
  %v107 = vld [vmem:[%s1 + $0x18] sm:$0xf]
  %v108 = vld [vmem:[%s1 + $0x1c] sm:$0xf]
  %v109 = vld [vmem:[%s1 + $0x20] sm:$0xf]
  %v110 = vld [vmem:[%s1 + $0x24] sm:$0xf]
  %v111 = vld [vmem:[%s1 + $0x28] sm:$0xf]
  %v112 = vld [vmem:[%s1 + $0x2c] sm:$0xf]
  %v113 = vld [vmem:[%s1 + $0x30] sm:$0xf]
  %v114 = vld [vmem:[%s1 + $0x34] sm:$0xf]
  %v115 = vld [vmem:[%s1 + $0x38] sm:$0xf]
  %v116 = vld [vmem:[%s1 + $0x3c] sm:$0xf]
  %v117 = vld [vmem:[%s1 + $0x40] sm:$0xf]
  %v118 = vld [vmem:[%s1 + $0x44] sm:$0xf]
  %v119 = vld [vmem:[%s1 + $0x48] sm:$0xf]
  %v120 = vld [vmem:[%s1 + $0x4c] sm:$0xf]
  %v121 = vld [vmem:[%s1 + $0x50] sm:$0xf]
  %v122 = vld [vmem:[%s1 + $0x54] sm:$0xf]
  %v123 = vld [vmem:[%s1 + $0x58] sm:$0xf]
  %v124 = vld [vmem:[%s1 + $0x5c] sm:$0xf]
  %v125 = vld [vmem:[%s1 + $0x60] sm:$0xf]
  %v126 = vld [vmem:[%s1 + $0x64] sm:$0xf]
  %v127 = vld [vmem:[%s1 + $0x68] sm:$0xf]
  %v128 = vld [vmem:[%s1 + $0x6c] sm:$0xf]
  %v129 = vld [vmem:[%s1 + $0x70] sm:$0xf]
  %v130 = vld [vmem:[%s1 + $0x74] sm:$0xf]
  %v131 = vld [vmem:[%s1 + $0x78] sm:$0xf]
  %v132 = vld [vmem:[%s1 + $0x7c] sm:$0xf]
  %v133 = vld [vmem:[%s1 + $0x80] sm:$0xf]
  %v134 = vld [vmem:[%s1 + $0x84] sm:$0xf]
  %v135 = vld [vmem:[%s1 + $0x88] sm:$0xf]
  %v136 = vld [vmem:[%s1 + $0x8c] sm:$0xf]
  %v137 = vld [vmem:[%s1 + $0x90] sm:$0xf]
  %v138 = vld [vmem:[%s1 + $0x94] sm:$0xf]
  %v139 = vld [vmem:[%s1 + $0x98] sm:$0xf]
  %v140 = vld [vmem:[%s1 + $0x9c] sm:$0xf]
  %v141 = vld [vmem:[%s1 + $0xa0] sm:$0xf]
  %v142 = vld [vmem:[%s1 + $0xa4] sm:$0xf]
  %v143 = vld [vmem:[%s1 + $0xa8] sm:$0xf]
  %v144 = vld [vmem:[%s1 + $0xac] sm:$0xf]
  %v145 = vld [vmem:[%s1 + $0xb0] sm:$0xf]
  %v146 = vld [vmem:[%s1 + $0xb4] sm:$0xf]
  %v147 = vld [vmem:[%s1 + $0xb8] sm:$0xf]
  %v148 = vld [vmem:[%s1 + $0xbc] sm:$0xf]
  %v149 = vld [vmem:[%s1 + $0xc0] sm:$0xf]
  %v150 = vld [vmem:[%s1 + $0xc4] sm:$0xf]
  %v151 = vld [vmem:[%s1 + $0xc8] sm:$0xf]
  %v152 = vld [vmem:[%s1 + $0xcc] sm:$0xf]
  %v153 = vld [vmem:[%s1 + $0xd0] sm:$0xf]
  %v154 = vld [vmem:[%s1 + $0xd4] sm:$0xf]
  %v155 = vld [vmem:[%s1 + $0xd8] sm:$0xf]
  %v156 = vld [vmem:[%s1 + $0xdc] sm:$0xf]
  %v157 = vld [vmem:[%s1 + $0xe0] sm:$0xf]
  %v158 = vld [vmem:[%s1 + $0xe4] sm:$0xf]
  %v159 = vld [vmem:[%s1 + $0xe8] sm:$0xf]
  %v160 = vld [vmem:[%s1 + $0xec] sm:$0xf]
  %v161 = vld [vmem:[%s1 + $0xf0] sm:$0xf]
  %v162 = vld [vmem:[%s1 + $0xf4] sm:$0xf]
  %v163 = vld [vmem:[%s1 + $0xf8] sm:$0xf]
  %v164 = vld [vmem:[%s1 + $0xfc] sm:$0xf]
  %v165 = vld [vmem:[%s1 + $0x100] sm:$0xf]
  %v166 = vld [vmem:[%s1 + $0x104] sm:$0xf]
  %v167 = vld [vmem:[%s1 + $0x108] sm:$0xf]
  %v168 = vld [vmem:[%s1 + $0x10c] sm:$0xf]
  %v169 = vld [vmem:[%s1 + $0x110] sm:$0xf]
  %v170 = vld [vmem:[%s1 + $0x114] sm:$0xf]
  %v171 = vld [vmem:[%s1 + $0x118] sm:$0xf]
  %v172 = vld [vmem:[%s1 + $0x11c] sm:$0xf]
  %v173 = vld [vmem:[%s1 + $0x120] sm:$0xf]
  %v174 = vld [vmem:[%s1 + $0x124] sm:$0xf]
  %v175 = vld [vmem:[%s1 + $0x128] sm:$0xf]
  %v176 = vld [vmem:[%s1 + $0x12c] sm:$0xf]
  %v177 = vld [vmem:[%s1 + $0x130] sm:$0xf]
  %v178 = vld [vmem:[%s1 + $0x134] sm:$0xf]
  %v179 = vld [vmem:[%s1 + $0x138] sm:$0xf]
  %v180 = vld [vmem:[%s1 + $0x13c] sm:$0xf]
  %v181 = vld [vmem:[%s1 + $0x140] sm:$0xf]
  %v182 = vld [vmem:[%s1 + $0x144] sm:$0xf]
  %v183 = vld [vmem:[%s1 + $0x148] sm:$0xf]
  %v184 = vld [vmem:[%s1 + $0x14c] sm:$0xf]
  %v185 = vld [vmem:[%s1 + $0x150] sm:$0xf]
  %v186 = vld [vmem:[%s1 + $0x154] sm:$0xf]
  %v187 = vld [vmem:[%s1 + $0x158] sm:$0xf]
  %v188 = vld [vmem:[%s1 + $0x15c] sm:$0xf]
  %v189 = vld [vmem:[%s1 + $0x160] sm:$0xf]
  %v190 = vld [vmem:[%s1 + $0x164] sm:$0xf]
  %v191 = vld [vmem:[%s1 + $0x168] sm:$0xf]
  %v192 = vld [vmem:[%s1 + $0x16c] sm:$0xf]
  %v193 = vld [vmem:[%s1 + $0x170] sm:$0xf]
  %v194 = vld [vmem:[%s1 + $0x174] sm:$0xf]
  %v195 = vld [vmem:[%s1 + $0x178] sm:$0xf]
  %v196 = vld [vmem:[%s1 + $0x17c] sm:$0xf]
  %v197 = vld [vmem:[%s1 + $0x180] sm:$0xf]
  %v198 = vld [vmem:[%s1 + $0x184] sm:$0xf]
  %v199 = vld [vmem:[%s1 + $0x188] sm:$0xf]
  %v200 = vld [vmem:[%s1 + $0x18c] sm:$0xf]
  %v201 = vld [vmem:[%s1 + $0x190] sm:$0xf]
  %v202 = vld [vmem:[%s1 + $0x194] sm:$0xf]
  %v203 = vld [vmem:[%s1 + $0x198] sm:$0xf]
  %v204 = vld [vmem:[%s1 + $0x19c] sm:$0xf]
  %v205 = vld [vmem:[%s1 + $0x1a0] sm:$0xf]
  %v206 = vld [vmem:[%s1 + $0x1a4] sm:$0xf]
  %v207 = vld [vmem:[%s1 + $0x1a8] sm:$0xf]
  %v208 = vld [vmem:[%s1 + $0x1ac] sm:$0xf]
  %v209 = vld [vmem:[%s1 + $0x1b0] sm:$0xf]
  %v210 = vld [vmem:[%s1 + $0x1b4] sm:$0xf]
  %v211 = vld [vmem:[%s1 + $0x1b8] sm:$0xf]
  %v212 = vld [vmem:[%s1 + $0x1bc] sm:$0xf]
  %v213 = vld [vmem:[%s1 + $0x1c0] sm:$0xf]
  %v214 = vld [vmem:[%s1 + $0x1c4] sm:$0xf]
  %v215 = vld [vmem:[%s1 + $0x1c8] sm:$0xf]
  %v216 = vld [vmem:[%s1 + $0x1cc] sm:$0xf]
  %v217 = vld [vmem:[%s1 + $0x1d0] sm:$0xf]
  %v218 = vld [vmem:[%s1 + $0x1d4] sm:$0xf]
  %v219 = vld [vmem:[%s1 + $0x1d8] sm:$0xf]
  %v220 = vld [vmem:[%s1 + $0x1dc] sm:$0xf]
  %v221 = vld [vmem:[%s1 + $0x1e0] sm:$0xf]
  %v222 = vld [vmem:[%s1 + $0x1e4] sm:$0xf]
  %v223 = vld [vmem:[%s1 + $0x1e8] sm:$0xf]
  %v224 = vld [vmem:[%s1 + $0x1ec] sm:$0xf]
  %v225 = vld [vmem:[%s1 + $0x1f0] sm:$0xf]
  %v226 = vld [vmem:[%s1 + $0x1f4] sm:$0xf]
  %v227 = vld [vmem:[%s1 + $0x1f8] sm:$0xf]
  %v228 = vld [vmem:[%s1 + $0x1fc] sm:$0xf]
  %v229 = vld [vmem:[%s1 + $0x200] sm:$0xf]
  %v230 = vld [vmem:[%s1 + $0x204] sm:$0xf]
  %v231 = vld [vmem:[%s1 + $0x208] sm:$0xf]
  %v232 = vld [vmem:[%s1 + $0x20c] sm:$0xf]
  %v233 = vld [vmem:[%s1 + $0x210] sm:$0xf]
  %v234 = vld [vmem:[%s1 + $0x214] sm:$0xf]
  %v235 = vld [vmem:[%s1 + $0x218] sm:$0xf]
  %v236 = vld [vmem:[%s1 + $0x21c] sm:$0xf]
  %v237 = vld [vmem:[%s1 + $0x220] sm:$0xf]
  %v238 = vld [vmem:[%s1 + $0x224] sm:$0xf]
  %v239 = vld [vmem:[%s1 + $0x228] sm:$0xf]
  %v240 = vld [vmem:[%s1 + $0x22c] sm:$0xf]
  %v241 = vld [vmem:[%s1 + $0x230] sm:$0xf]
  %v242 = vld [vmem:[%s1 + $0x234] sm:$0xf]
  %v243 = vld [vmem:[%s1 + $0x238] sm:$0xf]
  %v244 = vld [vmem:[%s1 + $0x23c] sm:$0xf]
  %v325 = vunpack.c.l.b16 %v21
  %v326 = vunpack.c.h.b16 %v21
  %v327 = vunpack.c.l.b16 %v22
  %v328 = vunpack.c.h.b16 %v22
  %v329 = vunpack.c.l.b16 %v23
  %v330 = vunpack.c.h.b16 %v23
  %v331 = vunpack.c.l.b16 %v24
  %v332 = vunpack.c.h.b16 %v24
  %v333 = vunpack.c.l.b16 %v25
  %v334 = vunpack.c.l.b16 %v26
  %v335 = vunpack.c.h.b16 %v26
  %v336 = vunpack.c.l.b16 %v27
  %v337 = vunpack.c.h.b16 %v27
  %v338 = vunpack.c.l.b16 %v28
  %v339 = vunpack.c.h.b16 %v28
  %v340 = vunpack.c.l.b16 %v29
  %v341 = vunpack.c.h.b16 %v29
  %v342 = vunpack.c.l.b16 %v30
  %v343 = vunpack.c.l.b16 %v31
  %v344 = vunpack.c.h.b16 %v31
  %v345 = vunpack.c.l.b16 %v32
  %v346 = vunpack.c.h.b16 %v32
  %v347 = vunpack.c.l.b16 %v33
  %v348 = vunpack.c.h.b16 %v33
  %v349 = vunpack.c.l.b16 %v34
  %v350 = vunpack.c.h.b16 %v34
  %v351 = vunpack.c.l.b16 %v35
  %v352 = vunpack.c.l.b16 %v36
  %v353 = vunpack.c.h.b16 %v36
  %v354 = vunpack.c.l.b16 %v37
  %v355 = vunpack.c.h.b16 %v37
  %v356 = vunpack.c.l.b16 %v38
  %v357 = vunpack.c.h.b16 %v38
  %v358 = vunpack.c.l.b16 %v39
  %v359 = vunpack.c.h.b16 %v39
  %v360 = vunpack.c.l.b16 %v40
  %v361 = vunpack.c.l.b16 %v41
  %v362 = vunpack.c.h.b16 %v41
  %v363 = vunpack.c.l.b16 %v42
  %v364 = vunpack.c.h.b16 %v42
  %v365 = vunpack.c.l.b16 %v43
  %v366 = vunpack.c.h.b16 %v43
  %v367 = vunpack.c.l.b16 %v44
  %v368 = vunpack.c.h.b16 %v44
  %v369 = vunpack.c.l.b16 %v45
  %v370 = vunpack.c.l.b16 %v46
  %v371 = vunpack.c.h.b16 %v46
  %v372 = vunpack.c.l.b16 %v47
  %v373 = vunpack.c.h.b16 %v47
  %v374 = vunpack.c.l.b16 %v48
  %v375 = vunpack.c.h.b16 %v48
  %v376 = vunpack.c.l.b16 %v49
  %v377 = vunpack.c.h.b16 %v49
  %v378 = vunpack.c.l.b16 %v50
  %v379 = vunpack.c.l.b16 %v51
  %v380 = vunpack.c.h.b16 %v51
  %v381 = vunpack.c.l.b16 %v52
  %v382 = vunpack.c.h.b16 %v52
  %v383 = vunpack.c.l.b16 %v53
  %v384 = vunpack.c.h.b16 %v53
  %v385 = vunpack.c.l.b16 %v54
  %v386 = vunpack.c.h.b16 %v54
  %v387 = vunpack.c.l.b16 %v55
  %v388 = vunpack.c.l.b16 %v56
  %v389 = vunpack.c.h.b16 %v56
  %v390 = vunpack.c.l.b16 %v57
  %v391 = vunpack.c.h.b16 %v57
  %v392 = vunpack.c.l.b16 %v58
  %v393 = vunpack.c.h.b16 %v58
  %v394 = vunpack.c.l.b16 %v59
  %v395 = vunpack.c.h.b16 %v59
  %v396 = vunpack.c.l.b16 %v60
  %v397 = vunpack.c.l.b16 %v61
  %v398 = vunpack.c.h.b16 %v61
  %v399 = vunpack.c.l.b16 %v62
  %v400 = vunpack.c.h.b16 %v62
  %v401 = vunpack.c.l.b16 %v63
  %v402 = vunpack.c.h.b16 %v63
  %v403 = vunpack.c.l.b16 %v64
  %v404 = vunpack.c.h.b16 %v64
  %v405 = vunpack.c.l.b16 %v65
  %v406 = vunpack.c.l.b16 %v66
  %v407 = vunpack.c.h.b16 %v66
  %v408 = vunpack.c.l.b16 %v67
  %v409 = vunpack.c.h.b16 %v67
  %v410 = vunpack.c.l.b16 %v68
  %v411 = vunpack.c.h.b16 %v68
  %v412 = vunpack.c.l.b16 %v69
  %v413 = vunpack.c.h.b16 %v69
  %v414 = vunpack.c.l.b16 %v70
  %v415 = vunpack.c.l.b16 %v71
  %v416 = vunpack.c.h.b16 %v71
  %v417 = vunpack.c.l.b16 %v72
  %v418 = vunpack.c.h.b16 %v72
  %v419 = vunpack.c.l.b16 %v73
  %v420 = vunpack.c.h.b16 %v73
  %v421 = vunpack.c.l.b16 %v74
  %v422 = vunpack.c.h.b16 %v74
  %v423 = vunpack.c.l.b16 %v75
  %v424 = vunpack.c.l.b16 %v76
  %v425 = vunpack.c.h.b16 %v76
  %v426 = vunpack.c.l.b16 %v77
  %v427 = vunpack.c.h.b16 %v77
  %v428 = vunpack.c.l.b16 %v78
  %v429 = vunpack.c.h.b16 %v78
  %v430 = vunpack.c.l.b16 %v79
  %v431 = vunpack.c.h.b16 %v79
  %v432 = vunpack.c.l.b16 %v80
  %v433 = vunpack.c.l.b16 %v81
  %v434 = vunpack.c.h.b16 %v81
  %v435 = vunpack.c.l.b16 %v82
  %v436 = vunpack.c.h.b16 %v82
  %v437 = vunpack.c.l.b16 %v83
  %v438 = vunpack.c.h.b16 %v83
  %v439 = vunpack.c.l.b16 %v84
  %v440 = vunpack.c.h.b16 %v84
  %v441 = vunpack.c.l.b16 %v85
  %v442 = vunpack.c.l.b16 %v86
  %v443 = vunpack.c.h.b16 %v86
  %v444 = vunpack.c.l.b16 %v87
  %v445 = vunpack.c.h.b16 %v87
  %v446 = vunpack.c.l.b16 %v88
  %v447 = vunpack.c.h.b16 %v88
  %v448 = vunpack.c.l.b16 %v89
  %v449 = vunpack.c.h.b16 %v89
  %v450 = vunpack.c.l.b16 %v90
  %v451 = vunpack.c.l.b16 %v91
  %v452 = vunpack.c.h.b16 %v91
  %v453 = vunpack.c.l.b16 %v92
  %v454 = vunpack.c.h.b16 %v92
  %v455 = vunpack.c.l.b16 %v93
  %v456 = vunpack.c.h.b16 %v93
  %v457 = vunpack.c.l.b16 %v94
  %v458 = vunpack.c.h.b16 %v94
  %v459 = vunpack.c.l.b16 %v95
  %v460 = vunpack.c.l.b16 %v96
  %v461 = vunpack.c.h.b16 %v96
  %v462 = vunpack.c.l.b16 %v97
  %v463 = vunpack.c.h.b16 %v97
  %v464 = vunpack.c.l.b16 %v98
  %v465 = vunpack.c.h.b16 %v98
  %v466 = vunpack.c.l.b16 %v99
  %v467 = vunpack.c.h.b16 %v99
  %v468 = vunpack.c.l.b16 %v100
  %v469 = vpack.c.b16 %v334, %v325
  %v470 = vpack.c.b16 %v335, %v326
  %v471 = vpack.c.b16 %v336, %v327
  %v472 = vpack.c.b16 %v337, %v328
  %v473 = vpack.c.b16 %v338, %v329
  %v474 = vpack.c.b16 %v339, %v330
  %v475 = vpack.c.b16 %v340, %v331
  %v476 = vpack.c.b16 %v341, %v332
  %v477 = vpack.c.b16 %v342, %v333
  %v478 = vpack.c.b16 %v352, %v343
  %v479 = vpack.c.b16 %v353, %v344
  %v480 = vpack.c.b16 %v354, %v345
  %v481 = vpack.c.b16 %v355, %v346
  %v482 = vpack.c.b16 %v356, %v347
  %v483 = vpack.c.b16 %v357, %v348
  %v484 = vpack.c.b16 %v358, %v349
  %v485 = vpack.c.b16 %v359, %v350
  %v486 = vpack.c.b16 %v360, %v351
  %v487 = vpack.c.b16 %v370, %v361
  %v488 = vpack.c.b16 %v371, %v362
  %v489 = vpack.c.b16 %v372, %v363
  %v490 = vpack.c.b16 %v373, %v364
  %v491 = vpack.c.b16 %v374, %v365
  %v492 = vpack.c.b16 %v375, %v366
  %v493 = vpack.c.b16 %v376, %v367
  %v494 = vpack.c.b16 %v377, %v368
  %v495 = vpack.c.b16 %v378, %v369
  %v496 = vpack.c.b16 %v388, %v379
  %v497 = vpack.c.b16 %v389, %v380
  %v498 = vpack.c.b16 %v390, %v381
  %v499 = vpack.c.b16 %v391, %v382
  %v500 = vpack.c.b16 %v392, %v383
  %v501 = vpack.c.b16 %v393, %v384
  %v502 = vpack.c.b16 %v394, %v385
  %v503 = vpack.c.b16 %v395, %v386
  %v504 = vpack.c.b16 %v396, %v387
  %v505 = vpack.c.b16 %v406, %v397
  %v506 = vpack.c.b16 %v407, %v398
  %v507 = vpack.c.b16 %v408, %v399
  %v508 = vpack.c.b16 %v409, %v400
  %v509 = vpack.c.b16 %v410, %v401
  %v510 = vpack.c.b16 %v411, %v402
  %v511 = vpack.c.b16 %v412, %v403
  %v512 = vpack.c.b16 %v413, %v404
  %v513 = vpack.c.b16 %v414, %v405
  %v514 = vpack.c.b16 %v424, %v415
  %v515 = vpack.c.b16 %v425, %v416
  %v516 = vpack.c.b16 %v426, %v417
  %v517 = vpack.c.b16 %v427, %v418
  %v518 = vpack.c.b16 %v428, %v419
  %v519 = vpack.c.b16 %v429, %v420
  %v520 = vpack.c.b16 %v430, %v421
  %v521 = vpack.c.b16 %v431, %v422
  %v522 = vpack.c.b16 %v432, %v423
  %v523 = vpack.c.b16 %v442, %v433
  %v524 = vpack.c.b16 %v443, %v434
  %v525 = vpack.c.b16 %v444, %v435
  %v526 = vpack.c.b16 %v445, %v436
  %v527 = vpack.c.b16 %v446, %v437
  %v528 = vpack.c.b16 %v447, %v438
  %v529 = vpack.c.b16 %v448, %v439
  %v530 = vpack.c.b16 %v449, %v440
  %v531 = vpack.c.b16 %v450, %v441
  %v532 = vpack.c.b16 %v460, %v451
  %v533 = vpack.c.b16 %v461, %v452
  %v534 = vpack.c.b16 %v462, %v453
  %v535 = vpack.c.b16 %v463, %v454
  %v536 = vpack.c.b16 %v464, %v455
  %v537 = vpack.c.b16 %v465, %v456
  %v538 = vpack.c.b16 %v466, %v457
  %v539 = vpack.c.b16 %v467, %v458
  %v540 = vpack.c.b16 %v468, %v459
  %v757 = vunpack.c.l.b16 %v101
  %v758 = vunpack.c.l.b16 %v102
  %v759 = vunpack.c.l.b16 %v103
  %v760 = vunpack.c.l.b16 %v104
  %v761 = vunpack.c.l.b16 %v105
  %v762 = vunpack.c.l.b16 %v106
  %v763 = vunpack.c.l.b16 %v107
  %v764 = vunpack.c.l.b16 %v108
  %v765 = vunpack.c.l.b16 %v109
  %v766 = vunpack.c.l.b16 %v110
  %v767 = vunpack.c.l.b16 %v111
  %v768 = vunpack.c.l.b16 %v112
  %v769 = vunpack.c.l.b16 %v113
  %v770 = vunpack.c.l.b16 %v114
  %v771 = vunpack.c.l.b16 %v115
  %v772 = vunpack.c.l.b16 %v116
  %v773 = vunpack.c.l.b16 %v117
  %v774 = vunpack.c.l.b16 %v118
  %v775 = vunpack.c.l.b16 %v119
  %v776 = vunpack.c.l.b16 %v120
  %v777 = vunpack.c.l.b16 %v121
  %v778 = vunpack.c.l.b16 %v122
  %v779 = vunpack.c.l.b16 %v123
  %v780 = vunpack.c.l.b16 %v124
  %v781 = vunpack.c.l.b16 %v125
  %v782 = vunpack.c.l.b16 %v126
  %v783 = vunpack.c.l.b16 %v127
  %v784 = vunpack.c.l.b16 %v128
  %v785 = vunpack.c.l.b16 %v129
  %v786 = vunpack.c.l.b16 %v130
  %v787 = vunpack.c.l.b16 %v131
  %v788 = vunpack.c.l.b16 %v132
  %v789 = vunpack.c.l.b16 %v133
  %v790 = vunpack.c.l.b16 %v134
  %v791 = vunpack.c.l.b16 %v135
  %v792 = vunpack.c.l.b16 %v136
  %v793 = vunpack.c.l.b16 %v137
  %v794 = vunpack.c.l.b16 %v138
  %v795 = vunpack.c.l.b16 %v139
  %v796 = vunpack.c.l.b16 %v140
  %v797 = vunpack.c.l.b16 %v141
  %v798 = vunpack.c.l.b16 %v142
  %v799 = vunpack.c.l.b16 %v143
  %v800 = vunpack.c.l.b16 %v144
  %v801 = vunpack.c.l.b16 %v145
  %v802 = vunpack.c.l.b16 %v146
  %v803 = vunpack.c.l.b16 %v147
  %v804 = vunpack.c.l.b16 %v148
  %v805 = vunpack.c.l.b16 %v149
  %v806 = vunpack.c.l.b16 %v150
  %v807 = vunpack.c.l.b16 %v151
  %v808 = vunpack.c.l.b16 %v152
  %v809 = vunpack.c.l.b16 %v153
  %v810 = vunpack.c.l.b16 %v154
  %v811 = vunpack.c.l.b16 %v155
  %v812 = vunpack.c.l.b16 %v156
  %v813 = vunpack.c.l.b16 %v157
  %v814 = vunpack.c.l.b16 %v158
  %v815 = vunpack.c.l.b16 %v159
  %v816 = vunpack.c.l.b16 %v160
  %v817 = vunpack.c.l.b16 %v161
  %v818 = vunpack.c.l.b16 %v162
  %v819 = vunpack.c.l.b16 %v163
  %v820 = vunpack.c.l.b16 %v164
  %v821 = vunpack.c.l.b16 %v165
  %v822 = vunpack.c.l.b16 %v166
  %v823 = vunpack.c.l.b16 %v167
  %v824 = vunpack.c.l.b16 %v168
  %v825 = vunpack.c.l.b16 %v169
  %v826 = vunpack.c.l.b16 %v170
  %v827 = vunpack.c.l.b16 %v171
  %v828 = vunpack.c.l.b16 %v172
  %v829 = vunpack.c.l.b16 %v173
  %v830 = vunpack.c.l.b16 %v174
  %v831 = vunpack.c.l.b16 %v175
  %v832 = vunpack.c.l.b16 %v176
  %v833 = vunpack.c.l.b16 %v177
  %v834 = vunpack.c.l.b16 %v178
  %v835 = vunpack.c.l.b16 %v179
  %v836 = vunpack.c.l.b16 %v180
  %v837 = vunpack.c.l.b16 %v181
  %v838 = vunpack.c.l.b16 %v182
  %v839 = vunpack.c.l.b16 %v183
  %v840 = vunpack.c.l.b16 %v184
  %v841 = vunpack.c.l.b16 %v185
  %v842 = vunpack.c.l.b16 %v186
  %v843 = vunpack.c.l.b16 %v187
  %v844 = vunpack.c.l.b16 %v188
  %v845 = vunpack.c.l.b16 %v189
  %v846 = vunpack.c.l.b16 %v190
  %v847 = vunpack.c.l.b16 %v191
  %v848 = vunpack.c.l.b16 %v192
  %v849 = vunpack.c.l.b16 %v193
  %v850 = vunpack.c.l.b16 %v194
  %v851 = vunpack.c.l.b16 %v195
  %v852 = vunpack.c.l.b16 %v196
  %v853 = vunpack.c.l.b16 %v197
  %v854 = vunpack.c.l.b16 %v198
  %v855 = vunpack.c.l.b16 %v199
  %v856 = vunpack.c.l.b16 %v200
  %v857 = vunpack.c.l.b16 %v201
  %v858 = vunpack.c.l.b16 %v202
  %v859 = vunpack.c.l.b16 %v203
  %v860 = vunpack.c.l.b16 %v204
  %v861 = vunpack.c.l.b16 %v205
  %v862 = vunpack.c.l.b16 %v206
  %v863 = vunpack.c.l.b16 %v207
  %v864 = vunpack.c.l.b16 %v208
  %v865 = vunpack.c.l.b16 %v209
  %v866 = vunpack.c.l.b16 %v210
  %v867 = vunpack.c.l.b16 %v211
  %v868 = vunpack.c.l.b16 %v212
  %v869 = vunpack.c.l.b16 %v213
  %v870 = vunpack.c.l.b16 %v214
  %v871 = vunpack.c.l.b16 %v215
  %v872 = vunpack.c.l.b16 %v216
  %v873 = vunpack.c.l.b16 %v217
  %v874 = vunpack.c.l.b16 %v218
  %v875 = vunpack.c.l.b16 %v219
  %v876 = vunpack.c.l.b16 %v220
  %v877 = vunpack.c.l.b16 %v221
  %v878 = vunpack.c.l.b16 %v222
  %v879 = vunpack.c.l.b16 %v223
  %v880 = vunpack.c.l.b16 %v224
  %v881 = vunpack.c.l.b16 %v225
  %v882 = vunpack.c.l.b16 %v226
  %v883 = vunpack.c.l.b16 %v227
  %v884 = vunpack.c.l.b16 %v228
  %v885 = vunpack.c.l.b16 %v229
  %v886 = vunpack.c.l.b16 %v230
  %v887 = vunpack.c.l.b16 %v231
  %v888 = vunpack.c.l.b16 %v232
  %v889 = vunpack.c.l.b16 %v233
  %v890 = vunpack.c.l.b16 %v234
  %v891 = vunpack.c.l.b16 %v235
  %v892 = vunpack.c.l.b16 %v236
  %v893 = vunpack.c.l.b16 %v237
  %v894 = vunpack.c.l.b16 %v238
  %v895 = vunpack.c.l.b16 %v239
  %v896 = vunpack.c.l.b16 %v240
  %v897 = vunpack.c.l.b16 %v241
  %v898 = vunpack.c.l.b16 %v242
  %v899 = vunpack.c.l.b16 %v243
  %v900 = vunpack.c.l.b16 %v244
  %v901 = vpack.c.b16 %v758, %v757
  %v902 = vpack.c.b16 %v760, %v759
  %v903 = vpack.c.b16 %v762, %v761
  %v904 = vpack.c.b16 %v764, %v763
  %v905 = vpack.c.b16 %v766, %v765
  %v906 = vpack.c.b16 %v768, %v767
  %v907 = vpack.c.b16 %v770, %v769
  %v908 = vpack.c.b16 %v772, %v771
  %v909 = vpack.c.b16 %v774, %v773
  %v910 = vpack.c.b16 %v776, %v775
  %v911 = vpack.c.b16 %v778, %v777
  %v912 = vpack.c.b16 %v780, %v779
  %v913 = vpack.c.b16 %v782, %v781
  %v914 = vpack.c.b16 %v784, %v783
  %v915 = vpack.c.b16 %v786, %v785
  %v916 = vpack.c.b16 %v788, %v787
  %v917 = vpack.c.b16 %v790, %v789
  %v918 = vpack.c.b16 %v792, %v791
  %v919 = vpack.c.b16 %v794, %v793
  %v920 = vpack.c.b16 %v796, %v795
  %v921 = vpack.c.b16 %v798, %v797
  %v922 = vpack.c.b16 %v800, %v799
  %v923 = vpack.c.b16 %v802, %v801
  %v924 = vpack.c.b16 %v804, %v803
  %v925 = vpack.c.b16 %v806, %v805
  %v926 = vpack.c.b16 %v808, %v807
  %v927 = vpack.c.b16 %v810, %v809
  %v928 = vpack.c.b16 %v812, %v811
  %v929 = vpack.c.b16 %v814, %v813
  %v930 = vpack.c.b16 %v816, %v815
  %v931 = vpack.c.b16 %v818, %v817
  %v932 = vpack.c.b16 %v820, %v819
  %v933 = vpack.c.b16 %v822, %v821
  %v934 = vpack.c.b16 %v824, %v823
  %v935 = vpack.c.b16 %v826, %v825
  %v936 = vpack.c.b16 %v828, %v827
  %v937 = vpack.c.b16 %v830, %v829
  %v938 = vpack.c.b16 %v832, %v831
  %v939 = vpack.c.b16 %v834, %v833
  %v940 = vpack.c.b16 %v836, %v835
  %v941 = vpack.c.b16 %v838, %v837
  %v942 = vpack.c.b16 %v840, %v839
  %v943 = vpack.c.b16 %v842, %v841
  %v944 = vpack.c.b16 %v844, %v843
  %v945 = vpack.c.b16 %v846, %v845
  %v946 = vpack.c.b16 %v848, %v847
  %v947 = vpack.c.b16 %v850, %v849
  %v948 = vpack.c.b16 %v852, %v851
  %v949 = vpack.c.b16 %v854, %v853
  %v950 = vpack.c.b16 %v856, %v855
  %v951 = vpack.c.b16 %v858, %v857
  %v952 = vpack.c.b16 %v860, %v859
  %v953 = vpack.c.b16 %v862, %v861
  %v954 = vpack.c.b16 %v864, %v863
  %v955 = vpack.c.b16 %v866, %v865
  %v956 = vpack.c.b16 %v868, %v867
  %v957 = vpack.c.b16 %v870, %v869
  %v958 = vpack.c.b16 %v872, %v871
  %v959 = vpack.c.b16 %v874, %v873
  %v960 = vpack.c.b16 %v876, %v875
  %v961 = vpack.c.b16 %v878, %v877
  %v962 = vpack.c.b16 %v880, %v879
  %v963 = vpack.c.b16 %v882, %v881
  %v964 = vpack.c.b16 %v884, %v883
  %v965 = vpack.c.b16 %v886, %v885
  %v966 = vpack.c.b16 %v888, %v887
  %v967 = vpack.c.b16 %v890, %v889
  %v968 = vpack.c.b16 %v892, %v891
  %v969 = vpack.c.b16 %v894, %v893
  %v970 = vpack.c.b16 %v896, %v895
  %v971 = vpack.c.b16 %v898, %v897
  %v972 = vpack.c.b16 %v900, %v899
  %1045 = vmatprep.subr.bf16.mxu0 0
  %1046 = vmatpush1.bf16.msra.mxu0 %v908
  %1047 = vmatprep.subr.bf16.mxu0 0
  %1048 = vmatpush1.bf16.msra.mxu0 %v907
  %1049 = vmatprep.subr.bf16.mxu0 0
  %1050 = vmatpush1.bf16.msra.mxu0 %v906
  %1051 = vmatprep.subr.bf16.mxu0 0
  %1052 = vmatpush1.bf16.msra.mxu0 %v905
  %1053 = vmatprep.subr.bf16.mxu0 0
  %1054 = vmatpush1.bf16.msra.mxu0 %v904
  %1055 = vmatprep.subr.bf16.mxu0 0
  %1056 = vmatpush1.bf16.msra.mxu0 %v903
  %1057 = vmatprep.subr.bf16.mxu0 0
  %1058 = vmatpush1.bf16.msra.mxu0 %v902
  %1059 = vmatprep.subr.bf16.mxu0 0
  %1060 = vmatpush1.bf16.msra.mxu0 %v901
  %1061 = vmatprep.subr.bf16.mxu0 0
  %1062 = vmatpush2.bf16.msra.mxu0 %v916
  %1063 = vmatprep.subr.bf16.mxu0 0
  %1064 = vmatpush2.bf16.msra.mxu0 %v915
  %1065 = vmatprep.subr.bf16.mxu0 0
  %1066 = vmatpush2.bf16.msra.mxu0 %v914
  %1067 = vmatprep.subr.bf16.mxu0 0
  %1068 = vmatpush2.bf16.msra.mxu0 %v913
  %1069 = vmatprep.subr.bf16.mxu0 0
  %1070 = vmatpush2.bf16.msra.mxu0 %v912
  %1071 = vmatprep.subr.bf16.mxu0 0
  %1072 = vmatpush2.bf16.msra.mxu0 %v911
  %1073 = vmatprep.subr.bf16.mxu0 0
  %1074 = vmatpush2.bf16.msra.mxu0 %v910
  %1075 = vmatprep.subr.bf16.mxu0 0
  %1076 = vmatpush2.bf16.msra.mxu0 %v909
  %1077 = vmatprep.mubr.bf16.mxu0 %v470
  %1078 = vmatmul.mubr.bf16.gmra.mxu0 %v469
  %v1079 = vpop.f32.mrf.mxu0
  %v1080 = vadd.f32 0.0, %v1079
  %v1081 = vpop.f32.mrf.mxu0
  %v1082 = vpop.f32.mrf.mxu0
  %v1083 = vadd.f32 0.0, %v1082
  %v1084 = vpop.f32.mrf.mxu0
  %1085 = vmatprep.mubr.bf16.mxu0 %v479
  %1086 = vmatmul.mubr.bf16.gmra.mxu0 %v478
  %v1087 = vpop.f32.mrf.mxu0
  %v1088 = vadd.f32 0.0, %v1087
  %v1089 = vpop.f32.mrf.mxu0
  %v1090 = vpop.f32.mrf.mxu0
  %v1091 = vadd.f32 0.0, %v1090
  %v1092 = vpop.f32.mrf.mxu0
  %1093 = vmatprep.mubr.bf16.mxu0 %v488
  %1094 = vmatmul.mubr.bf16.gmra.mxu0 %v487
  %v1095 = vpop.f32.mrf.mxu0
  %v1096 = vadd.f32 0.0, %v1095
  %v1097 = vpop.f32.mrf.mxu0
  %v1098 = vpop.f32.mrf.mxu0
  %v1099 = vadd.f32 0.0, %v1098
  %v1100 = vpop.f32.mrf.mxu0
  %1101 = vmatprep.mubr.bf16.mxu0 %v497
  %1102 = vmatmul.mubr.bf16.gmra.mxu0 %v496
  %v1103 = vpop.f32.mrf.mxu0
  %v1104 = vadd.f32 0.0, %v1103
  %v1105 = vpop.f32.mrf.mxu0
  %v1106 = vpop.f32.mrf.mxu0
  %v1107 = vadd.f32 0.0, %v1106
  %v1108 = vpop.f32.mrf.mxu0
  %1109 = vmatprep.mubr.bf16.mxu0 %v506
  %1110 = vmatmul.mubr.bf16.gmra.mxu0 %v505
  %v1111 = vpop.f32.mrf.mxu0
  %v1112 = vadd.f32 0.0, %v1111
  %v1113 = vpop.f32.mrf.mxu0
  %v1114 = vpop.f32.mrf.mxu0
  %v1115 = vadd.f32 0.0, %v1114
  %v1116 = vpop.f32.mrf.mxu0
  %1117 = vmatprep.mubr.bf16.mxu0 %v515
  %1118 = vmatmul.mubr.bf16.gmra.mxu0 %v514
  %v1119 = vpop.f32.mrf.mxu0
  %v1120 = vadd.f32 0.0, %v1119
  %v1121 = vpop.f32.mrf.mxu0
  %v1122 = vpop.f32.mrf.mxu0
  %v1123 = vadd.f32 0.0, %v1122
  %v1124 = vpop.f32.mrf.mxu0
  %1125 = vmatprep.mubr.bf16.mxu0 %v524
  %1126 = vmatmul.mubr.bf16.gmra.mxu0 %v523
  %v1127 = vpop.f32.mrf.mxu0
  %v1128 = vadd.f32 0.0, %v1127
  %v1129 = vpop.f32.mrf.mxu0
  %v1130 = vpop.f32.mrf.mxu0
  %v1131 = vadd.f32 0.0, %v1130
  %v1132 = vpop.f32.mrf.mxu0
  %1133 = vmatprep.mubr.bf16.mxu0 %v533
  %1134 = vmatmul.mubr.bf16.gmra.mxu0 %v532
  %v1135 = vpop.f32.mrf.mxu0
  %v1136 = vadd.f32 0.0, %v1135
  %v1137 = vpop.f32.mrf.mxu0
  %v1138 = vpop.f32.mrf.mxu0
  %v1139 = vadd.f32 0.0, %v1138
  %v1140 = vpop.f32.mrf.mxu0
  %1141 = vdwg.mxu0
  %1142 = vmatprep.subr.bf16.mxu0 0
  %1143 = vmatpush1.bf16.msra.mxu0 %v924
  %1144 = vmatprep.subr.bf16.mxu0 0
  %1145 = vmatpush1.bf16.msra.mxu0 %v923
  %1146 = vmatprep.subr.bf16.mxu0 0
  %1147 = vmatpush1.bf16.msra.mxu0 %v922
  %1148 = vmatprep.subr.bf16.mxu0 0
  %1149 = vmatpush1.bf16.msra.mxu0 %v921
  %1150 = vmatprep.subr.bf16.mxu0 0
  %1151 = vmatpush1.bf16.msra.mxu0 %v920
  %1152 = vmatprep.subr.bf16.mxu0 0
  %1153 = vmatpush1.bf16.msra.mxu0 %v919
  %1154 = vmatprep.subr.bf16.mxu0 0
  %1155 = vmatpush1.bf16.msra.mxu0 %v918
  %1156 = vmatprep.subr.bf16.mxu0 0
  %1157 = vmatpush1.bf16.msra.mxu0 %v917
  %1158 = vmatprep.subr.bf16.mxu0 0
  %1159 = vmatpush2.bf16.msra.mxu0 %v932
  %1160 = vmatprep.subr.bf16.mxu0 0
  %1161 = vmatpush2.bf16.msra.mxu0 %v931
  %1162 = vmatprep.subr.bf16.mxu0 0
  %1163 = vmatpush2.bf16.msra.mxu0 %v930
  %1164 = vmatprep.subr.bf16.mxu0 0
  %1165 = vmatpush2.bf16.msra.mxu0 %v929
  %1166 = vmatprep.subr.bf16.mxu0 0
  %1167 = vmatpush2.bf16.msra.mxu0 %v928
  %1168 = vmatprep.subr.bf16.mxu0 0
  %1169 = vmatpush2.bf16.msra.mxu0 %v927
  %1170 = vmatprep.subr.bf16.mxu0 0
  %1171 = vmatpush2.bf16.msra.mxu0 %v926
  %1172 = vmatprep.subr.bf16.mxu0 0
  %1173 = vmatpush2.bf16.msra.mxu0 %v925
  %1174 = vmatprep.mubr.bf16.mxu0 %v472
  %1175 = vmatmul.mubr.bf16.gmra.mxu0 %v471
  %v1176 = vpop.f32.mrf.mxu0
  %v1177 = vadd.f32 %v1080, %v1176
  %v1178 = vpop.f32.mrf.mxu0
  %v1179 = vpop.f32.mrf.mxu0
  %v1180 = vadd.f32 %v1083, %v1179
  %v1181 = vpop.f32.mrf.mxu0
  %1182 = vmatprep.mubr.bf16.mxu0 %v481
  %1183 = vmatmul.mubr.bf16.gmra.mxu0 %v480
  %v1184 = vpop.f32.mrf.mxu0
  %v1185 = vadd.f32 %v1088, %v1184
  %v1186 = vpop.f32.mrf.mxu0
  %v1187 = vpop.f32.mrf.mxu0
  %v1188 = vadd.f32 %v1091, %v1187
  %v1189 = vpop.f32.mrf.mxu0
  %1190 = vmatprep.mubr.bf16.mxu0 %v490
  %1191 = vmatmul.mubr.bf16.gmra.mxu0 %v489
  %v1192 = vpop.f32.mrf.mxu0
  %v1193 = vadd.f32 %v1096, %v1192
  %v1194 = vpop.f32.mrf.mxu0
  %v1195 = vpop.f32.mrf.mxu0
  %v1196 = vadd.f32 %v1099, %v1195
  %v1197 = vpop.f32.mrf.mxu0
  %1198 = vmatprep.mubr.bf16.mxu0 %v499
  %1199 = vmatmul.mubr.bf16.gmra.mxu0 %v498
  %v1200 = vpop.f32.mrf.mxu0
  %v1201 = vadd.f32 %v1104, %v1200
  %v1202 = vpop.f32.mrf.mxu0
  %v1203 = vpop.f32.mrf.mxu0
  %v1204 = vadd.f32 %v1107, %v1203
  %v1205 = vpop.f32.mrf.mxu0
  %1206 = vmatprep.mubr.bf16.mxu0 %v508
  %1207 = vmatmul.mubr.bf16.gmra.mxu0 %v507
  %v1208 = vpop.f32.mrf.mxu0
  %v1209 = vadd.f32 %v1112, %v1208
  %v1210 = vpop.f32.mrf.mxu0
  %v1211 = vpop.f32.mrf.mxu0
  %v1212 = vadd.f32 %v1115, %v1211
  %v1213 = vpop.f32.mrf.mxu0
  %1214 = vmatprep.mubr.bf16.mxu0 %v517
  %1215 = vmatmul.mubr.bf16.gmra.mxu0 %v516
  %v1216 = vpop.f32.mrf.mxu0
  %v1217 = vadd.f32 %v1120, %v1216
  %v1218 = vpop.f32.mrf.mxu0
  %v1219 = vpop.f32.mrf.mxu0
  %v1220 = vadd.f32 %v1123, %v1219
  %v1221 = vpop.f32.mrf.mxu0
  %1222 = vmatprep.mubr.bf16.mxu0 %v526
  %1223 = vmatmul.mubr.bf16.gmra.mxu0 %v525
  %v1224 = vpop.f32.mrf.mxu0
  %v1225 = vadd.f32 %v1128, %v1224
  %v1226 = vpop.f32.mrf.mxu0
  %v1227 = vpop.f32.mrf.mxu0
  %v1228 = vadd.f32 %v1131, %v1227
  %v1229 = vpop.f32.mrf.mxu0
  %1230 = vmatprep.mubr.bf16.mxu0 %v535
  %1231 = vmatmul.mubr.bf16.gmra.mxu0 %v534
  %v1232 = vpop.f32.mrf.mxu0
  %v1233 = vadd.f32 %v1136, %v1232
  %v1234 = vpop.f32.mrf.mxu0
  %v1235 = vpop.f32.mrf.mxu0
  %v1236 = vadd.f32 %v1139, %v1235
  %v1237 = vpop.f32.mrf.mxu0
  %1238 = vdwg.mxu0
  %1239 = vmatprep.subr.bf16.mxu0 0
  %1240 = vmatpush1.bf16.msra.mxu0 %v940
  %1241 = vmatprep.subr.bf16.mxu0 0
  %1242 = vmatpush1.bf16.msra.mxu0 %v939
  %1243 = vmatprep.subr.bf16.mxu0 0
  %1244 = vmatpush1.bf16.msra.mxu0 %v938
  %1245 = vmatprep.subr.bf16.mxu0 0
  %1246 = vmatpush1.bf16.msra.mxu0 %v937
  %1247 = vmatprep.subr.bf16.mxu0 0
  %1248 = vmatpush1.bf16.msra.mxu0 %v936
  %1249 = vmatprep.subr.bf16.mxu0 0
  %1250 = vmatpush1.bf16.msra.mxu0 %v935
  %1251 = vmatprep.subr.bf16.mxu0 0
  %1252 = vmatpush1.bf16.msra.mxu0 %v934
  %1253 = vmatprep.subr.bf16.mxu0 0
  %1254 = vmatpush1.bf16.msra.mxu0 %v933
  %1255 = vmatprep.subr.bf16.mxu0 0
  %1256 = vmatpush2.bf16.msra.mxu0 %v948
  %1257 = vmatprep.subr.bf16.mxu0 0
  %1258 = vmatpush2.bf16.msra.mxu0 %v947
  %1259 = vmatprep.subr.bf16.mxu0 0
  %1260 = vmatpush2.bf16.msra.mxu0 %v946
  %1261 = vmatprep.subr.bf16.mxu0 0
  %1262 = vmatpush2.bf16.msra.mxu0 %v945
  %1263 = vmatprep.subr.bf16.mxu0 0
  %1264 = vmatpush2.bf16.msra.mxu0 %v944
  %1265 = vmatprep.subr.bf16.mxu0 0
  %1266 = vmatpush2.bf16.msra.mxu0 %v943
  %1267 = vmatprep.subr.bf16.mxu0 0
  %1268 = vmatpush2.bf16.msra.mxu0 %v942
  %1269 = vmatprep.subr.bf16.mxu0 0
  %1270 = vmatpush2.bf16.msra.mxu0 %v941
  %1271 = vmatprep.mubr.bf16.mxu0 %v474
  %1272 = vmatmul.mubr.bf16.gmra.mxu0 %v473
  %v1273 = vpop.f32.mrf.mxu0
  %v1274 = vadd.f32 %v1177, %v1273
  %v1275 = vpop.f32.mrf.mxu0
  %v1276 = vpop.f32.mrf.mxu0
  %v1277 = vadd.f32 %v1180, %v1276
  %v1278 = vpop.f32.mrf.mxu0
  %1279 = vmatprep.mubr.bf16.mxu0 %v483
  %1280 = vmatmul.mubr.bf16.gmra.mxu0 %v482
  %v1281 = vpop.f32.mrf.mxu0
  %v1282 = vadd.f32 %v1185, %v1281
  %v1283 = vpop.f32.mrf.mxu0
  %v1284 = vpop.f32.mrf.mxu0
  %v1285 = vadd.f32 %v1188, %v1284
  %v1286 = vpop.f32.mrf.mxu0
  %1287 = vmatprep.mubr.bf16.mxu0 %v492
  %1288 = vmatmul.mubr.bf16.gmra.mxu0 %v491
  %v1289 = vpop.f32.mrf.mxu0
  %v1290 = vadd.f32 %v1193, %v1289
  %v1291 = vpop.f32.mrf.mxu0
  %v1292 = vpop.f32.mrf.mxu0
  %v1293 = vadd.f32 %v1196, %v1292
  %v1294 = vpop.f32.mrf.mxu0
  %1295 = vmatprep.mubr.bf16.mxu0 %v501
  %1296 = vmatmul.mubr.bf16.gmra.mxu0 %v500
  %v1297 = vpop.f32.mrf.mxu0
  %v1298 = vadd.f32 %v1201, %v1297
  %v1299 = vpop.f32.mrf.mxu0
  %v1300 = vpop.f32.mrf.mxu0
  %v1301 = vadd.f32 %v1204, %v1300
  %v1302 = vpop.f32.mrf.mxu0
  %1303 = vmatprep.mubr.bf16.mxu0 %v510
  %1304 = vmatmul.mubr.bf16.gmra.mxu0 %v509
  %v1305 = vpop.f32.mrf.mxu0
  %v1306 = vadd.f32 %v1209, %v1305
  %v1307 = vpop.f32.mrf.mxu0
  %v1308 = vpop.f32.mrf.mxu0
  %v1309 = vadd.f32 %v1212, %v1308
  %v1310 = vpop.f32.mrf.mxu0
  %1311 = vmatprep.mubr.bf16.mxu0 %v519
  %1312 = vmatmul.mubr.bf16.gmra.mxu0 %v518
  %v1313 = vpop.f32.mrf.mxu0
  %v1314 = vadd.f32 %v1217, %v1313
  %v1315 = vpop.f32.mrf.mxu0
  %v1316 = vpop.f32.mrf.mxu0
  %v1317 = vadd.f32 %v1220, %v1316
  %v1318 = vpop.f32.mrf.mxu0
  %1319 = vmatprep.mubr.bf16.mxu0 %v528
  %1320 = vmatmul.mubr.bf16.gmra.mxu0 %v527
  %v1321 = vpop.f32.mrf.mxu0
  %v1322 = vadd.f32 %v1225, %v1321
  %v1323 = vpop.f32.mrf.mxu0
  %v1324 = vpop.f32.mrf.mxu0
  %v1325 = vadd.f32 %v1228, %v1324
  %v1326 = vpop.f32.mrf.mxu0
  %1327 = vmatprep.mubr.bf16.mxu0 %v537
  %1328 = vmatmul.mubr.bf16.gmra.mxu0 %v536
  %v1329 = vpop.f32.mrf.mxu0
  %v1330 = vadd.f32 %v1233, %v1329
  %v1331 = vpop.f32.mrf.mxu0
  %v1332 = vpop.f32.mrf.mxu0
  %v1333 = vadd.f32 %v1236, %v1332
  %v1334 = vpop.f32.mrf.mxu0
  %1335 = vdwg.mxu0
  %1336 = vmatprep.subr.bf16.mxu0 0
  %1337 = vmatpush1.bf16.msra.mxu0 %v956
  %1338 = vmatprep.subr.bf16.mxu0 0
  %1339 = vmatpush1.bf16.msra.mxu0 %v955
  %1340 = vmatprep.subr.bf16.mxu0 0
  %1341 = vmatpush1.bf16.msra.mxu0 %v954
  %1342 = vmatprep.subr.bf16.mxu0 0
  %1343 = vmatpush1.bf16.msra.mxu0 %v953
  %1344 = vmatprep.subr.bf16.mxu0 0
  %1345 = vmatpush1.bf16.msra.mxu0 %v952
  %1346 = vmatprep.subr.bf16.mxu0 0
  %1347 = vmatpush1.bf16.msra.mxu0 %v951
  %1348 = vmatprep.subr.bf16.mxu0 0
  %1349 = vmatpush1.bf16.msra.mxu0 %v950
  %1350 = vmatprep.subr.bf16.mxu0 0
  %1351 = vmatpush1.bf16.msra.mxu0 %v949
  %1352 = vmatprep.subr.bf16.mxu0 0
  %1353 = vmatpush2.bf16.msra.mxu0 %v964
  %1354 = vmatprep.subr.bf16.mxu0 0
  %1355 = vmatpush2.bf16.msra.mxu0 %v963
  %1356 = vmatprep.subr.bf16.mxu0 0
  %1357 = vmatpush2.bf16.msra.mxu0 %v962
  %1358 = vmatprep.subr.bf16.mxu0 0
  %1359 = vmatpush2.bf16.msra.mxu0 %v961
  %1360 = vmatprep.subr.bf16.mxu0 0
  %1361 = vmatpush2.bf16.msra.mxu0 %v960
  %1362 = vmatprep.subr.bf16.mxu0 0
  %1363 = vmatpush2.bf16.msra.mxu0 %v959
  %1364 = vmatprep.subr.bf16.mxu0 0
  %1365 = vmatpush2.bf16.msra.mxu0 %v958
  %1366 = vmatprep.subr.bf16.mxu0 0
  %1367 = vmatpush2.bf16.msra.mxu0 %v957
  %1368 = vmatprep.mubr.bf16.mxu0 %v476
  %1369 = vmatmul.mubr.bf16.gmra.mxu0 %v475
  %v1370 = vpop.f32.mrf.mxu0
  %v1371 = vadd.f32 %v1274, %v1370
  %v1372 = vpop.f32.mrf.mxu0
  %v1373 = vpop.f32.mrf.mxu0
  %v1374 = vadd.f32 %v1277, %v1373
  %v1375 = vpop.f32.mrf.mxu0
  %1376 = vmatprep.mubr.bf16.mxu0 %v485
  %1377 = vmatmul.mubr.bf16.gmra.mxu0 %v484
  %v1378 = vpop.f32.mrf.mxu0
  %v1379 = vadd.f32 %v1282, %v1378
  %v1380 = vpop.f32.mrf.mxu0
  %v1381 = vpop.f32.mrf.mxu0
  %v1382 = vadd.f32 %v1285, %v1381
  %v1383 = vpop.f32.mrf.mxu0
  %1384 = vmatprep.mubr.bf16.mxu0 %v494
  %1385 = vmatmul.mubr.bf16.gmra.mxu0 %v493
  %v1386 = vpop.f32.mrf.mxu0
  %v1387 = vadd.f32 %v1290, %v1386
  %v1388 = vpop.f32.mrf.mxu0
  %v1389 = vpop.f32.mrf.mxu0
  %v1390 = vadd.f32 %v1293, %v1389
  %v1391 = vpop.f32.mrf.mxu0
  %1392 = vmatprep.mubr.bf16.mxu0 %v503
  %1393 = vmatmul.mubr.bf16.gmra.mxu0 %v502
  %v1394 = vpop.f32.mrf.mxu0
  %v1395 = vadd.f32 %v1298, %v1394
  %v1396 = vpop.f32.mrf.mxu0
  %v1397 = vpop.f32.mrf.mxu0
  %v1398 = vadd.f32 %v1301, %v1397
  %v1399 = vpop.f32.mrf.mxu0
  %1400 = vmatprep.mubr.bf16.mxu0 %v512
  %1401 = vmatmul.mubr.bf16.gmra.mxu0 %v511
  %v1402 = vpop.f32.mrf.mxu0
  %v1403 = vadd.f32 %v1306, %v1402
  %v1404 = vpop.f32.mrf.mxu0
  %v1405 = vpop.f32.mrf.mxu0
  %v1406 = vadd.f32 %v1309, %v1405
  %v1407 = vpop.f32.mrf.mxu0
  %1408 = vmatprep.mubr.bf16.mxu0 %v521
  %1409 = vmatmul.mubr.bf16.gmra.mxu0 %v520
  %v1410 = vpop.f32.mrf.mxu0
  %v1411 = vadd.f32 %v1314, %v1410
  %v1412 = vpop.f32.mrf.mxu0
  %v1413 = vpop.f32.mrf.mxu0
  %v1414 = vadd.f32 %v1317, %v1413
  %v1415 = vpop.f32.mrf.mxu0
  %1416 = vmatprep.mubr.bf16.mxu0 %v530
  %1417 = vmatmul.mubr.bf16.gmra.mxu0 %v529
  %v1418 = vpop.f32.mrf.mxu0
  %v1419 = vadd.f32 %v1322, %v1418
  %v1420 = vpop.f32.mrf.mxu0
  %v1421 = vpop.f32.mrf.mxu0
  %v1422 = vadd.f32 %v1325, %v1421
  %v1423 = vpop.f32.mrf.mxu0
  %1424 = vmatprep.mubr.bf16.mxu0 %v539
  %1425 = vmatmul.mubr.bf16.gmra.mxu0 %v538
  %v1426 = vpop.f32.mrf.mxu0
  %v1427 = vadd.f32 %v1330, %v1426
  %v1428 = vpop.f32.mrf.mxu0
  %v1429 = vpop.f32.mrf.mxu0
  %v1430 = vadd.f32 %v1333, %v1429
  %v1431 = vpop.f32.mrf.mxu0
  %1432 = vdwg.mxu0
  %1433 = vmatprep.subr.bf16.mxu0 0
  %1434 = vmatpush1.bf16.msra.mxu0 %v972
  %1435 = vmatprep.subr.bf16.mxu0 0
  %1436 = vmatpush1.bf16.msra.mxu0 %v971
  %1437 = vmatprep.subr.bf16.mxu0 0
  %1438 = vmatpush1.bf16.msra.mxu0 %v970
  %1439 = vmatprep.subr.bf16.mxu0 0
  %1440 = vmatpush1.bf16.msra.mxu0 %v969
  %1441 = vmatprep.subr.bf16.mxu0 0
  %1442 = vmatpush1.bf16.msra.mxu0 %v968
  %1443 = vmatprep.subr.bf16.mxu0 0
  %1444 = vmatpush1.bf16.msra.mxu0 %v967
  %1445 = vmatprep.subr.bf16.mxu0 0
  %1446 = vmatpush1.bf16.msra.mxu0 %v966
  %1447 = vmatprep.subr.bf16.mxu0 0
  %1448 = vmatpush1.bf16.msra.mxu0 %v965
  %1449 = vmatprep.subr.bf16.mxu0 0
  %1450 = vmatpush2.bf16.msra.mxu0 0
  %1451 = vmatprep.subr.bf16.mxu0 0
  %1452 = vmatpush2.bf16.msra.mxu0 0
  %1453 = vmatprep.subr.bf16.mxu0 0
  %1454 = vmatpush2.bf16.msra.mxu0 0
  %1455 = vmatprep.subr.bf16.mxu0 0
  %1456 = vmatpush2.bf16.msra.mxu0 0
  %1457 = vmatprep.subr.bf16.mxu0 0
  %1458 = vmatpush2.bf16.msra.mxu0 0
  %1459 = vmatprep.subr.bf16.mxu0 0
  %1460 = vmatpush2.bf16.msra.mxu0 0
  %1461 = vmatprep.subr.bf16.mxu0 0
  %1462 = vmatpush2.bf16.msra.mxu0 0
  %1463 = vmatprep.subr.bf16.mxu0 0
  %1464 = vmatpush2.bf16.msra.mxu0 0
  %1465 = vmatprep.mubr.bf16.mxu0 0
  %1466 = vmatmul.mubr.bf16.gmra.mxu0 %v477
  %v1467 = vpop.f32.mrf.mxu0
  %v1468 = vadd.f32 %v1371, %v1467
  %v1469 = vpop.f32.mrf.mxu0
  %v1470 = vpop.f32.mrf.mxu0
  %v1471 = vadd.f32 %v1374, %v1470
  %v1472 = vpop.f32.mrf.mxu0
  %1473 = vmatprep.mubr.bf16.mxu0 0
  %1474 = vmatmul.mubr.bf16.gmra.mxu0 %v486
  %v1475 = vpop.f32.mrf.mxu0
  %v1476 = vadd.f32 %v1379, %v1475
  %v1477 = vpop.f32.mrf.mxu0
  %v1478 = vpop.f32.mrf.mxu0
  %v1479 = vadd.f32 %v1382, %v1478
  %v1480 = vpop.f32.mrf.mxu0
  %1481 = vmatprep.mubr.bf16.mxu0 0
  %1482 = vmatmul.mubr.bf16.gmra.mxu0 %v495
  %v1483 = vpop.f32.mrf.mxu0
  %v1484 = vadd.f32 %v1387, %v1483
  %v1485 = vpop.f32.mrf.mxu0
  %v1486 = vpop.f32.mrf.mxu0
  %v1487 = vadd.f32 %v1390, %v1486
  %v1488 = vpop.f32.mrf.mxu0
  %1489 = vmatprep.mubr.bf16.mxu0 0
  %1490 = vmatmul.mubr.bf16.gmra.mxu0 %v504
  %v1491 = vpop.f32.mrf.mxu0
  %v1492 = vadd.f32 %v1395, %v1491
  %v1493 = vpop.f32.mrf.mxu0
  %v1494 = vpop.f32.mrf.mxu0
  %v1495 = vadd.f32 %v1398, %v1494
  %v1496 = vpop.f32.mrf.mxu0
  %1497 = vmatprep.mubr.bf16.mxu0 0
  %1498 = vmatmul.mubr.bf16.gmra.mxu0 %v513
  %v1499 = vpop.f32.mrf.mxu0
  %v1500 = vadd.f32 %v1403, %v1499
  %v1501 = vpop.f32.mrf.mxu0
  %v1502 = vpop.f32.mrf.mxu0
  %v1503 = vadd.f32 %v1406, %v1502
  %v1504 = vpop.f32.mrf.mxu0
  %1505 = vmatprep.mubr.bf16.mxu0 0
  %1506 = vmatmul.mubr.bf16.gmra.mxu0 %v522
  %v1507 = vpop.f32.mrf.mxu0
  %v1508 = vadd.f32 %v1411, %v1507
  %v1509 = vpop.f32.mrf.mxu0
  %v1510 = vpop.f32.mrf.mxu0
  %v1511 = vadd.f32 %v1414, %v1510
  %v1512 = vpop.f32.mrf.mxu0
  %1513 = vmatprep.mubr.bf16.mxu0 0
  %1514 = vmatmul.mubr.bf16.gmra.mxu0 %v531
  %v1515 = vpop.f32.mrf.mxu0
  %v1516 = vadd.f32 %v1419, %v1515
  %v1517 = vpop.f32.mrf.mxu0
  %v1518 = vpop.f32.mrf.mxu0
  %v1519 = vadd.f32 %v1422, %v1518
  %v1520 = vpop.f32.mrf.mxu0
  %1521 = vmatprep.mubr.bf16.mxu0 0
  %1522 = vmatmul.mubr.bf16.gmra.mxu0 %v540
  %v1523 = vpop.f32.mrf.mxu0
  %v1524 = vadd.f32 %v1427, %v1523
  %v1525 = vpop.f32.mrf.mxu0
  %v1526 = vpop.f32.mrf.mxu0
  %v1527 = vadd.f32 %v1430, %v1526
  %v1528 = vpop.f32.mrf.mxu0
  %1529 = vdwg.mxu0
  %v1530 = vpack.c.bf16 %v1471, %v1468
  %v1531 = vpack.c.bf16 %v1479, %v1476
  %v1532 = vpack.c.bf16 %v1487, %v1484
  %v1533 = vpack.c.bf16 %v1495, %v1492
  %v1534 = vpack.c.bf16 %v1503, %v1500
  %v1535 = vpack.c.bf16 %v1511, %v1508
  %v1536 = vpack.c.bf16 %v1519, %v1516
  %v1537 = vpack.c.bf16 %v1527, %v1524
  %v1546 = vunpack.c.l.b16 %v1530
  %v1547 = vunpack.c.h.b16 %v1530
  %v1548 = vunpack.c.l.b16 %v1531
  %v1549 = vunpack.c.h.b16 %v1531
  %v1550 = vunpack.c.l.b16 %v1532
  %v1551 = vunpack.c.h.b16 %v1532
  %v1552 = vunpack.c.l.b16 %v1533
  %v1553 = vunpack.c.h.b16 %v1533
  %v1554 = vunpack.c.l.b16 %v1534
  %v1555 = vunpack.c.h.b16 %v1534
  %v1556 = vunpack.c.l.b16 %v1535
  %v1557 = vunpack.c.h.b16 %v1535
  %v1558 = vunpack.c.l.b16 %v1536
  %v1559 = vunpack.c.h.b16 %v1536
  %v1560 = vunpack.c.l.b16 %v1537
  %v1561 = vunpack.c.h.b16 %v1537
  %v1562 = vpack.c.b16 %v1546, %v1546
  %v1563 = vpack.c.b16 %v1547, %v1547
  %v1564 = vpack.c.b16 %v1548, %v1548
  %v1565 = vpack.c.b16 %v1549, %v1549
  %v1566 = vpack.c.b16 %v1550, %v1550
  %v1567 = vpack.c.b16 %v1551, %v1551
  %v1568 = vpack.c.b16 %v1552, %v1552
  %v1569 = vpack.c.b16 %v1553, %v1553
  %v1570 = vpack.c.b16 %v1554, %v1554
  %v1571 = vpack.c.b16 %v1555, %v1555
  %v1572 = vpack.c.b16 %v1556, %v1556
  %v1573 = vpack.c.b16 %v1557, %v1557
  %v1574 = vpack.c.b16 %v1558, %v1558
  %v1575 = vpack.c.b16 %v1559, %v1559
  %v1576 = vpack.c.b16 %v1560, %v1560
  %v1577 = vpack.c.b16 %v1561, %v1561
  %1594 = vst [vmem:[%s3] sm:$0xf] %v1562
  %1595 = vst [vmem:[%s3 + $0x4] sm:$0xf] %v1563
  %1596 = vst [vmem:[%s3 + $0x8] sm:$0xf] %v1564
  %1597 = vst [vmem:[%s3 + $0xc] sm:$0xf] %v1565
  %1598 = vst [vmem:[%s3 + $0x10] sm:$0xf] %v1566
  %1599 = vst [vmem:[%s3 + $0x14] sm:$0xf] %v1567
  %1600 = vst [vmem:[%s3 + $0x18] sm:$0xf] %v1568
  %1601 = vst [vmem:[%s3 + $0x1c] sm:$0xf] %v1569
  %1602 = vst [vmem:[%s3 + $0x20] sm:$0xf] %v1570
  %1603 = vst [vmem:[%s3 + $0x24] sm:$0xf] %v1571
  %1604 = vst [vmem:[%s3 + $0x28] sm:$0xf] %v1572
  %1605 = vst [vmem:[%s3 + $0x2c] sm:$0xf] %v1573
  %1606 = vst [vmem:[%s3 + $0x30] sm:$0xf] %v1574
  %1607 = vst [vmem:[%s3 + $0x34] sm:$0xf] %v1575
  %1608 = vst [vmem:[%s3 + $0x38] sm:$0xf] %v1576
  %1609 = vst [vmem:[%s3 + $0x3c] sm:$0xf] %v1577
  %v1610 = vadd.f32 %v1468, %v1471
  %v1611 = vadd.f32 %v1610, %v1476
  %v1612 = vadd.f32 %v1611, %v1479
  %v1613 = vadd.f32 %v1612, %v1484
  %v1614 = vadd.f32 %v1613, %v1487
  %v1615 = vadd.f32 %v1614, %v1492
  %v1616 = vadd.f32 %v1615, %v1495
  %v1617 = vadd.f32 %v1616, %v1500
  %v1618 = vadd.f32 %v1617, %v1503
  %v1619 = vadd.f32 %v1618, %v1508
  %v1620 = vadd.f32 %v1619, %v1511
  %v1621 = vadd.f32 %v1620, %v1516
  %v1622 = vadd.f32 %v1621, %v1519
  %v1623 = vadd.f32 %v1622, %v1524
  %v1624 = vadd.f32 %v1623, %v1527
  %v1625 = vrot.slane %v1624, 4
  %v1626 = vadd.f32 %v1624, %v1625
  %v1627 = vrot.slane %v1626, 2
  %v1628 = vadd.f32 %v1626, %v1627
  %v1629 = vrot.slane %v1628, 1
  %v1630 = vadd.f32 %v1628, %v1629
  %1631 = vst [vmem:[%s4] sm:$0x1] %v1630
  %v1632 = vmul.f32 %v1468, %v1468
  %v1633 = vmul.f32 %v1471, %v1471
  %v1634 = vmul.f32 %v1476, %v1476
  %v1635 = vmul.f32 %v1479, %v1479
  %v1636 = vmul.f32 %v1484, %v1484
  %v1637 = vmul.f32 %v1487, %v1487
  %v1638 = vmul.f32 %v1492, %v1492
  %v1639 = vmul.f32 %v1495, %v1495
  %v1640 = vmul.f32 %v1500, %v1500
  %v1641 = vmul.f32 %v1503, %v1503
  %v1642 = vmul.f32 %v1508, %v1508
  %v1643 = vmul.f32 %v1511, %v1511
  %v1644 = vmul.f32 %v1516, %v1516
  %v1645 = vmul.f32 %v1519, %v1519
  %v1646 = vmul.f32 %v1524, %v1524
  %v1647 = vmul.f32 %v1527, %v1527
  %v1648 = vadd.f32 %v1632, %v1633
  %v1649 = vadd.f32 %v1648, %v1634
  %v1650 = vadd.f32 %v1649, %v1635
  %v1651 = vadd.f32 %v1650, %v1636
  %v1652 = vadd.f32 %v1651, %v1637
  %v1653 = vadd.f32 %v1652, %v1638
  %v1654 = vadd.f32 %v1653, %v1639
  %v1655 = vadd.f32 %v1654, %v1640
  %v1656 = vadd.f32 %v1655, %v1641
  %v1657 = vadd.f32 %v1656, %v1642
  %v1658 = vadd.f32 %v1657, %v1643
  %v1659 = vadd.f32 %v1658, %v1644
  %v1660 = vadd.f32 %v1659, %v1645
  %v1661 = vadd.f32 %v1660, %v1646
  %v1662 = vadd.f32 %v1661, %v1647
  %v1663 = vrot.slane %v1662, 4
  %v1664 = vadd.f32 %v1662, %v1663
  %v1665 = vrot.slane %v1664, 2
  %v1666 = vadd.f32 %v1664, %v1665
  %v1667 = vrot.slane %v1666, 1
  %v1668 = vadd.f32 %v1666, %v1667
  %1669 = vst [vmem:[%s5] sm:$0x1] %v1668
  %v1670 = vld [vmem:[%s0 + $0x10] sm:$0xf]
  %v1671 = vld [vmem:[%s0 + $0x34] sm:$0xf]
  %v1672 = vld [vmem:[%s0 + $0x58] sm:$0xf]
  %v1673 = vld [vmem:[%s0 + $0x7c] sm:$0xf]
  %v1674 = vld [vmem:[%s0 + $0xa0] sm:$0xf]
  %v1675 = vld [vmem:[%s0 + $0xc4] sm:$0xf]
  %v1676 = vld [vmem:[%s0 + $0xe8] sm:$0xf]
  %v1677 = vld [vmem:[%s0 + $0x10c] sm:$0xf]
  %v1678 = vld [vmem:[%s0 + $0x130] sm:$0xf]
  %v1679 = vld [vmem:[%s0 + $0x154] sm:$0xf]
  %v1680 = vld [vmem:[%s0 + $0x178] sm:$0xf]
  %v1681 = vld [vmem:[%s0 + $0x19c] sm:$0xf]
  %v1682 = vld [vmem:[%s0 + $0x1c0] sm:$0xf]
  %v1683 = vld [vmem:[%s0 + $0x1e4] sm:$0xf]
  %v1684 = vld [vmem:[%s0 + $0x208] sm:$0xf]
  %v1685 = vld [vmem:[%s0 + $0x22c] sm:$0xf]
  %v1686 = vld [vmem:[%s2] sm:$0xf]
  %v1687 = vld [vmem:[%s2 + $0x4] sm:$0xf]
  %v1688 = vld [vmem:[%s2 + $0x8] sm:$0xf]
  %v1689 = vld [vmem:[%s2 + $0xc] sm:$0xf]
  %v1690 = vld [vmem:[%s2 + $0x10] sm:$0xf]
  %v1691 = vld [vmem:[%s2 + $0x14] sm:$0xf]
  %v1692 = vld [vmem:[%s2 + $0x18] sm:$0xf]
  %v1693 = vld [vmem:[%s2 + $0x1c] sm:$0xf]
  %v1694 = vld [vmem:[%s2 + $0x20] sm:$0xf]
  %v1695 = vld [vmem:[%s2 + $0x24] sm:$0xf]
  %v1696 = vld [vmem:[%s2 + $0x28] sm:$0xf]
  %v1697 = vld [vmem:[%s2 + $0x2c] sm:$0xf]
  %v1698 = vld [vmem:[%s2 + $0x30] sm:$0xf]
  %v1699 = vld [vmem:[%s2 + $0x34] sm:$0xf]
  %v1700 = vld [vmem:[%s2 + $0x38] sm:$0xf]
  %v1701 = vld [vmem:[%s2 + $0x3c] sm:$0xf]
  %v1718 = vunpack.c.l.b16 %v1670
  %v1719 = vunpack.c.l.b16 %v1671
  %v1720 = vunpack.c.l.b16 %v1672
  %v1721 = vunpack.c.l.b16 %v1673
  %v1722 = vunpack.c.l.b16 %v1674
  %v1723 = vunpack.c.l.b16 %v1675
  %v1724 = vunpack.c.l.b16 %v1676
  %v1725 = vunpack.c.l.b16 %v1677
  %v1726 = vunpack.c.l.b16 %v1678
  %v1727 = vunpack.c.l.b16 %v1679
  %v1728 = vunpack.c.l.b16 %v1680
  %v1729 = vunpack.c.l.b16 %v1681
  %v1730 = vunpack.c.l.b16 %v1682
  %v1731 = vunpack.c.l.b16 %v1683
  %v1732 = vunpack.c.l.b16 %v1684
  %v1733 = vunpack.c.l.b16 %v1685
  %v1734 = vpack.c.b16 %v1719, %v1718
  %v1735 = vpack.c.b16 %v1721, %v1720
  %v1736 = vpack.c.b16 %v1723, %v1722
  %v1737 = vpack.c.b16 %v1725, %v1724
  %v1738 = vpack.c.b16 %v1727, %v1726
  %v1739 = vpack.c.b16 %v1729, %v1728
  %v1740 = vpack.c.b16 %v1731, %v1730
  %v1741 = vpack.c.b16 %v1733, %v1732
  %v1766 = vunpack.c.l.b16 %v1686
  %v1767 = vunpack.c.l.b16 %v1687
  %v1768 = vunpack.c.l.b16 %v1688
  %v1769 = vunpack.c.l.b16 %v1689
  %v1770 = vunpack.c.l.b16 %v1690
  %v1771 = vunpack.c.l.b16 %v1691
  %v1772 = vunpack.c.l.b16 %v1692
  %v1773 = vunpack.c.l.b16 %v1693
  %v1774 = vunpack.c.l.b16 %v1694
  %v1775 = vunpack.c.l.b16 %v1695
  %v1776 = vunpack.c.l.b16 %v1696
  %v1777 = vunpack.c.l.b16 %v1697
  %v1778 = vunpack.c.l.b16 %v1698
  %v1779 = vunpack.c.l.b16 %v1699
  %v1780 = vunpack.c.l.b16 %v1700
  %v1781 = vunpack.c.l.b16 %v1701
  %v1782 = vpack.c.b16 %v1767, %v1766
  %v1783 = vpack.c.b16 %v1769, %v1768
  %v1784 = vpack.c.b16 %v1771, %v1770
  %v1785 = vpack.c.b16 %v1773, %v1772
  %v1786 = vpack.c.b16 %v1775, %v1774
  %v1787 = vpack.c.b16 %v1777, %v1776
  %v1788 = vpack.c.b16 %v1779, %v1778
  %v1789 = vpack.c.b16 %v1781, %v1780
  %1798 = vmatprep.subr.bf16.mxu0 0
  %1799 = vmatpush1.bf16.msra.mxu0 %v1789
  %1800 = vmatprep.subr.bf16.mxu0 0
  %1801 = vmatpush1.bf16.msra.mxu0 %v1788
  %1802 = vmatprep.subr.bf16.mxu0 0
  %1803 = vmatpush1.bf16.msra.mxu0 %v1787
  %1804 = vmatprep.subr.bf16.mxu0 0
  %1805 = vmatpush1.bf16.msra.mxu0 %v1786
  %1806 = vmatprep.subr.bf16.mxu0 0
  %1807 = vmatpush1.bf16.msra.mxu0 %v1785
  %1808 = vmatprep.subr.bf16.mxu0 0
  %1809 = vmatpush1.bf16.msra.mxu0 %v1784
  %1810 = vmatprep.subr.bf16.mxu0 0
  %1811 = vmatpush1.bf16.msra.mxu0 %v1783
  %1812 = vmatprep.subr.bf16.mxu0 0
  %1813 = vmatpush1.bf16.msra.mxu0 %v1782
  %1814 = vmatprep.subr.bf16.mxu0 0
  %1815 = vmatpush2.bf16.msra.mxu0 0
  %1816 = vmatprep.subr.bf16.mxu0 0
  %1817 = vmatpush2.bf16.msra.mxu0 0
  %1818 = vmatprep.subr.bf16.mxu0 0
  %1819 = vmatpush2.bf16.msra.mxu0 0
  %1820 = vmatprep.subr.bf16.mxu0 0
  %1821 = vmatpush2.bf16.msra.mxu0 0
  %1822 = vmatprep.subr.bf16.mxu0 0
  %1823 = vmatpush2.bf16.msra.mxu0 0
  %1824 = vmatprep.subr.bf16.mxu0 0
  %1825 = vmatpush2.bf16.msra.mxu0 0
  %1826 = vmatprep.subr.bf16.mxu0 0
  %1827 = vmatpush2.bf16.msra.mxu0 0
  %1828 = vmatprep.subr.bf16.mxu0 0
  %1829 = vmatpush2.bf16.msra.mxu0 0
  %1830 = vmatprep.mubr.bf16.mxu0 0
  %1831 = vmatmul.mubr.bf16.gmra.mxu0 %v1734
  %v1832 = vpop.f32.mrf.mxu0
  %v1833 = vadd.f32 0.0, %v1832
  %v1834 = vpop.f32.mrf.mxu0
  %v1835 = vpop.f32.mrf.mxu0
  %v1836 = vadd.f32 0.0, %v1835
  %v1837 = vpop.f32.mrf.mxu0
  %1838 = vmatprep.mubr.bf16.mxu0 0
  %1839 = vmatmul.mubr.bf16.gmra.mxu0 %v1735
  %v1840 = vpop.f32.mrf.mxu0
  %v1841 = vadd.f32 0.0, %v1840
  %v1842 = vpop.f32.mrf.mxu0
  %v1843 = vpop.f32.mrf.mxu0
  %v1844 = vadd.f32 0.0, %v1843
  %v1845 = vpop.f32.mrf.mxu0
  %1846 = vmatprep.mubr.bf16.mxu0 0
  %1847 = vmatmul.mubr.bf16.gmra.mxu0 %v1736
  %v1848 = vpop.f32.mrf.mxu0
  %v1849 = vadd.f32 0.0, %v1848
  %v1850 = vpop.f32.mrf.mxu0
  %v1851 = vpop.f32.mrf.mxu0
  %v1852 = vadd.f32 0.0, %v1851
  %v1853 = vpop.f32.mrf.mxu0
  %1854 = vmatprep.mubr.bf16.mxu0 0
  %1855 = vmatmul.mubr.bf16.gmra.mxu0 %v1737
  %v1856 = vpop.f32.mrf.mxu0
  %v1857 = vadd.f32 0.0, %v1856
  %v1858 = vpop.f32.mrf.mxu0
  %v1859 = vpop.f32.mrf.mxu0
  %v1860 = vadd.f32 0.0, %v1859
  %v1861 = vpop.f32.mrf.mxu0
  %1862 = vmatprep.mubr.bf16.mxu0 0
  %1863 = vmatmul.mubr.bf16.gmra.mxu0 %v1738
  %v1864 = vpop.f32.mrf.mxu0
  %v1865 = vadd.f32 0.0, %v1864
  %v1866 = vpop.f32.mrf.mxu0
  %v1867 = vpop.f32.mrf.mxu0
  %v1868 = vadd.f32 0.0, %v1867
  %v1869 = vpop.f32.mrf.mxu0
  %1870 = vmatprep.mubr.bf16.mxu0 0
  %1871 = vmatmul.mubr.bf16.gmra.mxu0 %v1739
  %v1872 = vpop.f32.mrf.mxu0
  %v1873 = vadd.f32 0.0, %v1872
  %v1874 = vpop.f32.mrf.mxu0
  %v1875 = vpop.f32.mrf.mxu0
  %v1876 = vadd.f32 0.0, %v1875
  %v1877 = vpop.f32.mrf.mxu0
  %1878 = vmatprep.mubr.bf16.mxu0 0
  %1879 = vmatmul.mubr.bf16.gmra.mxu0 %v1740
  %v1880 = vpop.f32.mrf.mxu0
  %v1881 = vadd.f32 0.0, %v1880
  %v1882 = vpop.f32.mrf.mxu0
  %v1883 = vpop.f32.mrf.mxu0
  %v1884 = vadd.f32 0.0, %v1883
  %v1885 = vpop.f32.mrf.mxu0
  %1886 = vmatprep.mubr.bf16.mxu0 0
  %1887 = vmatmul.mubr.bf16.gmra.mxu0 %v1741
  %v1888 = vpop.f32.mrf.mxu0
  %v1889 = vadd.f32 0.0, %v1888
  %v1890 = vpop.f32.mrf.mxu0
  %v1891 = vpop.f32.mrf.mxu0
  %v1892 = vadd.f32 0.0, %v1891
  %v1893 = vpop.f32.mrf.mxu0
  %1894 = vdwg.mxu0
  %v1895 = vpack.c.bf16 %v1836, %v1833
  %v1896 = vpack.c.bf16 %v1844, %v1841
  %v1897 = vpack.c.bf16 %v1852, %v1849
  %v1898 = vpack.c.bf16 %v1860, %v1857
  %v1899 = vpack.c.bf16 %v1868, %v1865
  %v1900 = vpack.c.bf16 %v1876, %v1873
  %v1901 = vpack.c.bf16 %v1884, %v1881
  %v1902 = vpack.c.bf16 %v1892, %v1889
  %v1911 = vunpack.c.l.b16 %v1895
  %v1912 = vunpack.c.h.b16 %v1895
  %v1913 = vunpack.c.l.b16 %v1896
  %v1914 = vunpack.c.h.b16 %v1896
  %v1915 = vunpack.c.l.b16 %v1897
  %v1916 = vunpack.c.h.b16 %v1897
  %v1917 = vunpack.c.l.b16 %v1898
  %v1918 = vunpack.c.h.b16 %v1898
  %v1919 = vunpack.c.l.b16 %v1899
  %v1920 = vunpack.c.h.b16 %v1899
  %v1921 = vunpack.c.l.b16 %v1900
  %v1922 = vunpack.c.h.b16 %v1900
  %v1923 = vunpack.c.l.b16 %v1901
  %v1924 = vunpack.c.h.b16 %v1901
  %v1925 = vunpack.c.l.b16 %v1902
  %v1926 = vunpack.c.h.b16 %v1902
  %v1927 = vpack.c.b16 %v1911, %v1911
  %v1928 = vpack.c.b16 %v1912, %v1912
  %v1929 = vpack.c.b16 %v1913, %v1913
  %v1930 = vpack.c.b16 %v1914, %v1914
  %v1931 = vpack.c.b16 %v1915, %v1915
  %v1932 = vpack.c.b16 %v1916, %v1916
  %v1933 = vpack.c.b16 %v1917, %v1917
  %v1934 = vpack.c.b16 %v1918, %v1918
  %v1935 = vpack.c.b16 %v1919, %v1919
  %v1936 = vpack.c.b16 %v1920, %v1920
  %v1937 = vpack.c.b16 %v1921, %v1921
  %v1938 = vpack.c.b16 %v1922, %v1922
  %v1939 = vpack.c.b16 %v1923, %v1923
  %v1940 = vpack.c.b16 %v1924, %v1924
  %v1941 = vpack.c.b16 %v1925, %v1925
  %v1942 = vpack.c.b16 %v1926, %v1926
  %1959 = vst [vmem:[%s6] sm:$0xf] %v1927
  %1960 = vst [vmem:[%s6 + $0x4] sm:$0xf] %v1928
  %1961 = vst [vmem:[%s6 + $0x8] sm:$0xf] %v1929
  %1962 = vst [vmem:[%s6 + $0xc] sm:$0xf] %v1930
  %1963 = vst [vmem:[%s6 + $0x10] sm:$0xf] %v1931
  %1964 = vst [vmem:[%s6 + $0x14] sm:$0xf] %v1932
  %1965 = vst [vmem:[%s6 + $0x18] sm:$0xf] %v1933
  %1966 = vst [vmem:[%s6 + $0x1c] sm:$0xf] %v1934
  %1967 = vst [vmem:[%s6 + $0x20] sm:$0xf] %v1935
  %1968 = vst [vmem:[%s6 + $0x24] sm:$0xf] %v1936
  %1969 = vst [vmem:[%s6 + $0x28] sm:$0xf] %v1937
  %1970 = vst [vmem:[%s6 + $0x2c] sm:$0xf] %v1938
  %1971 = vst [vmem:[%s6 + $0x30] sm:$0xf] %v1939
  %1972 = vst [vmem:[%s6 + $0x34] sm:$0xf] %v1940
  %1973 = vst [vmem:[%s6 + $0x38] sm:$0xf] %v1941
  %1974 = vst [vmem:[%s6 + $0x3c] sm:$0xf] %v1942
  %v1975 = vadd.f32 %v1833, %v1836
  %v1976 = vadd.f32 %v1975, %v1841
  %v1977 = vadd.f32 %v1976, %v1844
  %v1978 = vadd.f32 %v1977, %v1849
  %v1979 = vadd.f32 %v1978, %v1852
  %v1980 = vadd.f32 %v1979, %v1857
  %v1981 = vadd.f32 %v1980, %v1860
  %v1982 = vadd.f32 %v1981, %v1865
  %v1983 = vadd.f32 %v1982, %v1868
  %v1984 = vadd.f32 %v1983, %v1873
  %v1985 = vadd.f32 %v1984, %v1876
  %v1986 = vadd.f32 %v1985, %v1881
  %v1987 = vadd.f32 %v1986, %v1884
  %v1988 = vadd.f32 %v1987, %v1889
  %v1989 = vadd.f32 %v1988, %v1892
  %v1990 = vrot.slane %v1989, 4
  %v1991 = vadd.f32 %v1989, %v1990
  %v1992 = vrot.slane %v1991, 2
  %v1993 = vadd.f32 %v1991, %v1992
  %v1994 = vrot.slane %v1993, 1
  %v1995 = vadd.f32 %v1993, %v1994
  %1996 = vst [vmem:[%s7] sm:$0x1] %v1995
  %v1997 = vmul.f32 %v1833, %v1833
  %v1998 = vmul.f32 %v1836, %v1836
  %v1999 = vmul.f32 %v1841, %v1841
  %v2000 = vmul.f32 %v1844, %v1844
  %v2001 = vmul.f32 %v1849, %v1849
  %v2002 = vmul.f32 %v1852, %v1852
  %v2003 = vmul.f32 %v1857, %v1857
  %v2004 = vmul.f32 %v1860, %v1860
  %v2005 = vmul.f32 %v1865, %v1865
  %v2006 = vmul.f32 %v1868, %v1868
  %v2007 = vmul.f32 %v1873, %v1873
  %v2008 = vmul.f32 %v1876, %v1876
  %v2009 = vmul.f32 %v1881, %v1881
  %v2010 = vmul.f32 %v1884, %v1884
  %v2011 = vmul.f32 %v1889, %v1889
  %v2012 = vmul.f32 %v1892, %v1892
  %v2013 = vadd.f32 %v1997, %v1998
  %v2014 = vadd.f32 %v2013, %v1999
  %v2015 = vadd.f32 %v2014, %v2000
  %v2016 = vadd.f32 %v2015, %v2001
  %v2017 = vadd.f32 %v2016, %v2002
  %v2018 = vadd.f32 %v2017, %v2003
  %v2019 = vadd.f32 %v2018, %v2004
  %v2020 = vadd.f32 %v2019, %v2005
  %v2021 = vadd.f32 %v2020, %v2006
  %v2022 = vadd.f32 %v2021, %v2007
  %v2023 = vadd.f32 %v2022, %v2008
  %v2024 = vadd.f32 %v2023, %v2009
  %v2025 = vadd.f32 %v2024, %v2010
  %v2026 = vadd.f32 %v2025, %v2011
  %v2027 = vadd.f32 %v2026, %v2012
  %v2028 = vrot.slane %v2027, 4
  %v2029 = vadd.f32 %v2027, %v2028
  %v2030 = vrot.slane %v2029, 2
  %v2031 = vadd.f32 %v2029, %v2030
  %v2032 = vrot.slane %v2031, 1
  %v2033 = vadd.f32 %v2031, %v2032
  %2034 = vst [vmem:[%s8] sm:$0x1] %v2033
  // Predicated region
  $region14: #{resblock_forward.4} parent=0 // pred_check
    _
  $region15: #{resblock_forward.4} parent=0 // pred_check_branch
    %2036 = sbr.rel (0) target = $region17
  $region16: #{resblock_forward.4} parent=0 // pred_region
    _
  $region17: #{resblock_forward.4} parent=0 // pred_fallthru
    _
  // Predicated region
  $region18: #{resblock_forward.4} parent=0 // pred_check
    _
  $region19: #{resblock_forward.4} parent=0 // pred_check_branch
    %2038 = sbr.rel (0) target = $region21
  $region20: #{resblock_forward.4} parent=0 // pred_region
    _
  $region21: #{resblock_forward.4} parent=0 // pred_fallthru
    _
  // Predicated region
  $region22: #{resblock_forward.4} parent=0 // pred_check
    _
  $region23: #{resblock_forward.4} parent=0 // pred_check_branch
    %2040 = sbr.rel (0) target = $region25
  $region24: #{resblock_forward.4} parent=0 // pred_region
    _
  $region25: #{resblock_forward.4} parent=0 // pred_fallthru
    _
  // Predicated region
  $region26: #{resblock_forward.4} parent=0 // pred_check
    _
  $region27: #{resblock_forward.4} parent=0 // pred_check_branch
    %2042 = sbr.rel (0) target = $region29
  $region28: #{resblock_forward.4} parent=0 // pred_region
    _
  $region29: #{resblock_forward.4} parent=0 // pred_fallthru
    _
  // Predicated region
  $region30: #{resblock_forward.4} parent=0 // pred_check
    _
  $region31: #{resblock_forward.4} parent=0 // pred_check_branch
    %2044 = sbr.rel (0) target = $region33
  $region32: #{resblock_forward.4} parent=0 // pred_region
    _
  $region33: #{resblock_forward.4} parent=0 // pred_fallthru
    _
  // Predicated region
  $region34: #{resblock_forward.4} parent=0 // pred_check
    _
  $region35: #{resblock_forward.4} parent=0 // pred_check_branch
    %2046 = sbr.rel (0) target = $region37
  $region36: #{resblock_forward.4} parent=0 // pred_region
    _
  $region37: #{resblock_forward.4} parent=0 // pred_fallthru
    _
  // Predicated region
  $region38: #{resblock_forward.4} parent=0 // pred_check
    _
  $region39: #{resblock_forward.4} parent=0 // pred_check_branch
    %2048 = sbr.rel (0) target = $region41
  $region40: #{resblock_forward.4} parent=0 // pred_region
    _
  $region41: #{resblock_forward.4} parent=0 // pred_fallthru
    _
  // Predicated region
  $region42: #{resblock_forward.4} parent=0 // pred_check
    _
  $region43: #{resblock_forward.4} parent=0 // pred_check_branch
    %2050 = sbr.rel (0) target = $region45
  $region44: #{resblock_forward.4} parent=0 // pred_region
    _
  $region45: #{resblock_forward.4} parent=0 // pred_fallthru
    _
  // Predicated region
  $region46: #{resblock_forward.4} parent=0 // pred_check
    _
  $region47: #{resblock_forward.4} parent=0 // pred_check_branch
    %2052 = sbr.rel (0) target = $region49
  $region48: #{resblock_forward.4} parent=0 // pred_region
    _
  $region49: #{resblock_forward.4} parent=0 // pred_fallthru
    _
  // Predicated region
  $region50: #{resblock_forward.4} parent=0 // pred_check
    _
  $region51: #{resblock_forward.4} parent=0 // pred_check_branch
    %2054 = sbr.rel (0) target = $region53
  $region52: #{resblock_forward.4} parent=0 // pred_region
    _
  $region53: #{resblock_forward.4} parent=0 // pred_fallthru
    _
  // Predicated region
  $region54: #{resblock_forward.4} parent=0 // pred_check
    _
  $region55: #{resblock_forward.4} parent=0 // pred_check_branch
    %2056 = sbr.rel (0) target = $region57
  $region56: #{resblock_forward.4} parent=0 // pred_region
    _
  $region57: #{resblock_forward.4} parent=0 // pred_fallthru
    _
  // Predicated region
  $region58: #{resblock_forward.4} parent=0 // pred_check
    _
  $region59: #{resblock_forward.4} parent=0 // pred_check_branch
    %2058 = sbr.rel (0) target = $region61
  $region60: #{resblock_forward.4} parent=0 // pred_region
    _
  $region61: #{resblock_forward.4} parent=0 // pred_fallthru
    _

// kernel: resblock_forward.6
$region0: #{resblock_forward.6}
  #allocation0 [shape = 'u32[]', space=smem, size = 0x4, offset = 0x4, fixed_abs, tag = 'smem constant byte address 0x4 - core index']
  #allocation1 [shape = 'u32[144,128]{1,0:T(1,128)}', space=vmem, size = 0x12000, scoped, tag = 'internal scratch']
  %s0 = inlined_call_operand.vmem [shape: bf16[128,1152], index: 0, kind: input, shape index: {}]
  %s1 = inlined_call_operand.vmem [shape: bf16[1152,128], index: 1, kind: input, shape index: {}]
  %s2 = inlined_call_operand.vmem [shape: bf16[128,128], index: 2, kind: output, shape index: {0}]
  %s3 = inlined_call_operand.vmem [shape: f32[1,1,128], index: 3, kind: output, shape index: {1}]
  %s4 = inlined_call_operand.vmem [shape: f32[1,1,128], index: 4, kind: output, shape index: {2}]
  %5 = xla_tuple %s2, %s3, %s4
  %s6 = sld [smem:[#allocation0]]
  $region34: #{resblock_forward.6} parent=0
    _
  %s8 = ssub.s32 1, %s6
  %s9 = scalar_select 0, %s8, %s6
  // Predicated region
  $region2: #{resblock_forward.6} parent=0 // pred_check
    _
  $region3: #{resblock_forward.6} parent=0 // pred_check_branch
    %11 = sbr.rel (0) target = $region5
  $region4: #{resblock_forward.6} parent=0 // pred_region
    _
  $region5: #{resblock_forward.6} parent=0 // pred_fallthru
    _
  // Predicated region
  $region6: #{resblock_forward.6} parent=0 // pred_check
    _
  $region7: #{resblock_forward.6} parent=0 // pred_check_branch
    %13 = sbr.rel (0) target = $region9
  $region8: #{resblock_forward.6} parent=0 // pred_region
    _
  $region9: #{resblock_forward.6} parent=0 // pred_fallthru
    _
  %v15 = vld [vmem:[%s0] sm:$0xff]
  %v16 = vld [vmem:[%s0 + $0x8] sm:$0xff]
  %v17 = vld [vmem:[%s0 + $0x10] sm:$0xff]
  %v18 = vld [vmem:[%s0 + $0x18] sm:$0xff]
  %v19 = vld [vmem:[%s0 + $0x20] sm:$0xf]
  %v20 = vld [vmem:[%s0 + $0x24] sm:$0xff]
  %v21 = vld [vmem:[%s0 + $0x2c] sm:$0xff]
  %v22 = vld [vmem:[%s0 + $0x34] sm:$0xff]
  %v23 = vld [vmem:[%s0 + $0x3c] sm:$0xff]
  %v24 = vld [vmem:[%s0 + $0x44] sm:$0xf]
  %v25 = vld [vmem:[%s0 + $0x48] sm:$0xff]
  %v26 = vld [vmem:[%s0 + $0x50] sm:$0xff]
  %v27 = vld [vmem:[%s0 + $0x58] sm:$0xff]
  %v28 = vld [vmem:[%s0 + $0x60] sm:$0xff]
  %v29 = vld [vmem:[%s0 + $0x68] sm:$0xf]
  %v30 = vld [vmem:[%s0 + $0x6c] sm:$0xff]
  %v31 = vld [vmem:[%s0 + $0x74] sm:$0xff]
  %v32 = vld [vmem:[%s0 + $0x7c] sm:$0xff]
  %v33 = vld [vmem:[%s0 + $0x84] sm:$0xff]
  %v34 = vld [vmem:[%s0 + $0x8c] sm:$0xf]
  %v35 = vld [vmem:[%s0 + $0x90] sm:$0xff]
  %v36 = vld [vmem:[%s0 + $0x98] sm:$0xff]
  %v37 = vld [vmem:[%s0 + $0xa0] sm:$0xff]
  %v38 = vld [vmem:[%s0 + $0xa8] sm:$0xff]
  %v39 = vld [vmem:[%s0 + $0xb0] sm:$0xf]
  %v40 = vld [vmem:[%s0 + $0xb4] sm:$0xff]
  %v41 = vld [vmem:[%s0 + $0xbc] sm:$0xff]
  %v42 = vld [vmem:[%s0 + $0xc4] sm:$0xff]
  %v43 = vld [vmem:[%s0 + $0xcc] sm:$0xff]
  %v44 = vld [vmem:[%s0 + $0xd4] sm:$0xf]
  %v45 = vld [vmem:[%s0 + $0xd8] sm:$0xff]
  %v46 = vld [vmem:[%s0 + $0xe0] sm:$0xff]
  %v47 = vld [vmem:[%s0 + $0xe8] sm:$0xff]
  %v48 = vld [vmem:[%s0 + $0xf0] sm:$0xff]
  %v49 = vld [vmem:[%s0 + $0xf8] sm:$0xf]
  %v50 = vld [vmem:[%s0 + $0xfc] sm:$0xff]
  %v51 = vld [vmem:[%s0 + $0x104] sm:$0xff]
  %v52 = vld [vmem:[%s0 + $0x10c] sm:$0xff]
  %v53 = vld [vmem:[%s0 + $0x114] sm:$0xff]
  %v54 = vld [vmem:[%s0 + $0x11c] sm:$0xf]
  %v55 = vld [vmem:[%s0 + $0x120] sm:$0xff]
  %v56 = vld [vmem:[%s0 + $0x128] sm:$0xff]
  %v57 = vld [vmem:[%s0 + $0x130] sm:$0xff]
  %v58 = vld [vmem:[%s0 + $0x138] sm:$0xff]
  %v59 = vld [vmem:[%s0 + $0x140] sm:$0xf]
  %v60 = vld [vmem:[%s0 + $0x144] sm:$0xff]
  %v61 = vld [vmem:[%s0 + $0x14c] sm:$0xff]
  %v62 = vld [vmem:[%s0 + $0x154] sm:$0xff]
  %v63 = vld [vmem:[%s0 + $0x15c] sm:$0xff]
  %v64 = vld [vmem:[%s0 + $0x164] sm:$0xf]
  %v65 = vld [vmem:[%s0 + $0x168] sm:$0xff]
  %v66 = vld [vmem:[%s0 + $0x170] sm:$0xff]
  %v67 = vld [vmem:[%s0 + $0x178] sm:$0xff]
  %v68 = vld [vmem:[%s0 + $0x180] sm:$0xff]
  %v69 = vld [vmem:[%s0 + $0x188] sm:$0xf]
  %v70 = vld [vmem:[%s0 + $0x18c] sm:$0xff]
  %v71 = vld [vmem:[%s0 + $0x194] sm:$0xff]
  %v72 = vld [vmem:[%s0 + $0x19c] sm:$0xff]
  %v73 = vld [vmem:[%s0 + $0x1a4] sm:$0xff]
  %v74 = vld [vmem:[%s0 + $0x1ac] sm:$0xf]
  %v75 = vld [vmem:[%s0 + $0x1b0] sm:$0xff]
  %v76 = vld [vmem:[%s0 + $0x1b8] sm:$0xff]
  %v77 = vld [vmem:[%s0 + $0x1c0] sm:$0xff]
  %v78 = vld [vmem:[%s0 + $0x1c8] sm:$0xff]
  %v79 = vld [vmem:[%s0 + $0x1d0] sm:$0xf]
  %v80 = vld [vmem:[%s0 + $0x1d4] sm:$0xff]
  %v81 = vld [vmem:[%s0 + $0x1dc] sm:$0xff]
  %v82 = vld [vmem:[%s0 + $0x1e4] sm:$0xff]
  %v83 = vld [vmem:[%s0 + $0x1ec] sm:$0xff]
  %v84 = vld [vmem:[%s0 + $0x1f4] sm:$0xf]
  %v85 = vld [vmem:[%s0 + $0x1f8] sm:$0xff]
  %v86 = vld [vmem:[%s0 + $0x200] sm:$0xff]
  %v87 = vld [vmem:[%s0 + $0x208] sm:$0xff]
  %v88 = vld [vmem:[%s0 + $0x210] sm:$0xff]
  %v89 = vld [vmem:[%s0 + $0x218] sm:$0xf]
  %v90 = vld [vmem:[%s0 + $0x21c] sm:$0xff]
  %v91 = vld [vmem:[%s0 + $0x224] sm:$0xff]
  %v92 = vld [vmem:[%s0 + $0x22c] sm:$0xff]
  %v93 = vld [vmem:[%s0 + $0x234] sm:$0xff]
  %v94 = vld [vmem:[%s0 + $0x23c] sm:$0xf]
  %v95 = vld [vmem:[%s1] sm:$0xf]
  %v96 = vld [vmem:[%s1 + $0x4] sm:$0xf]
  %v97 = vld [vmem:[%s1 + $0x8] sm:$0xf]
  %v98 = vld [vmem:[%s1 + $0xc] sm:$0xf]
  %v99 = vld [vmem:[%s1 + $0x10] sm:$0xf]
  %v100 = vld [vmem:[%s1 + $0x14] sm:$0xf]
  %v101 = vld [vmem:[%s1 + $0x18] sm:$0xf]
  %v102 = vld [vmem:[%s1 + $0x1c] sm:$0xf]
  %v103 = vld [vmem:[%s1 + $0x20] sm:$0xf]
  %v104 = vld [vmem:[%s1 + $0x24] sm:$0xf]
  %v105 = vld [vmem:[%s1 + $0x28] sm:$0xf]
  %v106 = vld [vmem:[%s1 + $0x2c] sm:$0xf]
  %v107 = vld [vmem:[%s1 + $0x30] sm:$0xf]
  %v108 = vld [vmem:[%s1 + $0x34] sm:$0xf]
  %v109 = vld [vmem:[%s1 + $0x38] sm:$0xf]
  %v110 = vld [vmem:[%s1 + $0x3c] sm:$0xf]
  %v111 = vld [vmem:[%s1 + $0x40] sm:$0xf]
  %v112 = vld [vmem:[%s1 + $0x44] sm:$0xf]
  %v113 = vld [vmem:[%s1 + $0x48] sm:$0xf]
  %v114 = vld [vmem:[%s1 + $0x4c] sm:$0xf]
  %v115 = vld [vmem:[%s1 + $0x50] sm:$0xf]
  %v116 = vld [vmem:[%s1 + $0x54] sm:$0xf]
  %v117 = vld [vmem:[%s1 + $0x58] sm:$0xf]
  %v118 = vld [vmem:[%s1 + $0x5c] sm:$0xf]
  %v119 = vld [vmem:[%s1 + $0x60] sm:$0xf]
  %v120 = vld [vmem:[%s1 + $0x64] sm:$0xf]
  %v121 = vld [vmem:[%s1 + $0x68] sm:$0xf]
  %v122 = vld [vmem:[%s1 + $0x6c] sm:$0xf]
  %v123 = vld [vmem:[%s1 + $0x70] sm:$0xf]
  %v124 = vld [vmem:[%s1 + $0x74] sm:$0xf]
  %v125 = vld [vmem:[%s1 + $0x78] sm:$0xf]
  %v126 = vld [vmem:[%s1 + $0x7c] sm:$0xf]
  %v127 = vld [vmem:[%s1 + $0x80] sm:$0xf]
  %v128 = vld [vmem:[%s1 + $0x84] sm:$0xf]
  %v129 = vld [vmem:[%s1 + $0x88] sm:$0xf]
  %v130 = vld [vmem:[%s1 + $0x8c] sm:$0xf]
  %v131 = vld [vmem:[%s1 + $0x90] sm:$0xf]
  %v132 = vld [vmem:[%s1 + $0x94] sm:$0xf]
  %v133 = vld [vmem:[%s1 + $0x98] sm:$0xf]
  %v134 = vld [vmem:[%s1 + $0x9c] sm:$0xf]
  %v135 = vld [vmem:[%s1 + $0xa0] sm:$0xf]
  %v136 = vld [vmem:[%s1 + $0xa4] sm:$0xf]
  %v137 = vld [vmem:[%s1 + $0xa8] sm:$0xf]
  %v138 = vld [vmem:[%s1 + $0xac] sm:$0xf]
  %v139 = vld [vmem:[%s1 + $0xb0] sm:$0xf]
  %v140 = vld [vmem:[%s1 + $0xb4] sm:$0xf]
  %v141 = vld [vmem:[%s1 + $0xb8] sm:$0xf]
  %v142 = vld [vmem:[%s1 + $0xbc] sm:$0xf]
  %v143 = vld [vmem:[%s1 + $0xc0] sm:$0xf]
  %v144 = vld [vmem:[%s1 + $0xc4] sm:$0xf]
  %v145 = vld [vmem:[%s1 + $0xc8] sm:$0xf]
  %v146 = vld [vmem:[%s1 + $0xcc] sm:$0xf]
  %v147 = vld [vmem:[%s1 + $0xd0] sm:$0xf]
  %v148 = vld [vmem:[%s1 + $0xd4] sm:$0xf]
  %v149 = vld [vmem:[%s1 + $0xd8] sm:$0xf]
  %v150 = vld [vmem:[%s1 + $0xdc] sm:$0xf]
  %v151 = vld [vmem:[%s1 + $0xe0] sm:$0xf]
  %v152 = vld [vmem:[%s1 + $0xe4] sm:$0xf]
  %v153 = vld [vmem:[%s1 + $0xe8] sm:$0xf]
  %v154 = vld [vmem:[%s1 + $0xec] sm:$0xf]
  %v155 = vld [vmem:[%s1 + $0xf0] sm:$0xf]
  %v156 = vld [vmem:[%s1 + $0xf4] sm:$0xf]
  %v157 = vld [vmem:[%s1 + $0xf8] sm:$0xf]
  %v158 = vld [vmem:[%s1 + $0xfc] sm:$0xf]
  %v159 = vld [vmem:[%s1 + $0x100] sm:$0xf]
  %v160 = vld [vmem:[%s1 + $0x104] sm:$0xf]
  %v161 = vld [vmem:[%s1 + $0x108] sm:$0xf]
  %v162 = vld [vmem:[%s1 + $0x10c] sm:$0xf]
  %v163 = vld [vmem:[%s1 + $0x110] sm:$0xf]
  %v164 = vld [vmem:[%s1 + $0x114] sm:$0xf]
  %v165 = vld [vmem:[%s1 + $0x118] sm:$0xf]
  %v166 = vld [vmem:[%s1 + $0x11c] sm:$0xf]
  %v167 = vld [vmem:[%s1 + $0x120] sm:$0xf]
  %v168 = vld [vmem:[%s1 + $0x124] sm:$0xf]
  %v169 = vld [vmem:[%s1 + $0x128] sm:$0xf]
  %v170 = vld [vmem:[%s1 + $0x12c] sm:$0xf]
  %v171 = vld [vmem:[%s1 + $0x130] sm:$0xf]
  %v172 = vld [vmem:[%s1 + $0x134] sm:$0xf]
  %v173 = vld [vmem:[%s1 + $0x138] sm:$0xf]
  %v174 = vld [vmem:[%s1 + $0x13c] sm:$0xf]
  %v175 = vld [vmem:[%s1 + $0x140] sm:$0xf]
  %v176 = vld [vmem:[%s1 + $0x144] sm:$0xf]
  %v177 = vld [vmem:[%s1 + $0x148] sm:$0xf]
  %v178 = vld [vmem:[%s1 + $0x14c] sm:$0xf]
  %v179 = vld [vmem:[%s1 + $0x150] sm:$0xf]
  %v180 = vld [vmem:[%s1 + $0x154] sm:$0xf]
  %v181 = vld [vmem:[%s1 + $0x158] sm:$0xf]
  %v182 = vld [vmem:[%s1 + $0x15c] sm:$0xf]
  %v183 = vld [vmem:[%s1 + $0x160] sm:$0xf]
  %v184 = vld [vmem:[%s1 + $0x164] sm:$0xf]
  %v185 = vld [vmem:[%s1 + $0x168] sm:$0xf]
  %v186 = vld [vmem:[%s1 + $0x16c] sm:$0xf]
  %v187 = vld [vmem:[%s1 + $0x170] sm:$0xf]
  %v188 = vld [vmem:[%s1 + $0x174] sm:$0xf]
  %v189 = vld [vmem:[%s1 + $0x178] sm:$0xf]
  %v190 = vld [vmem:[%s1 + $0x17c] sm:$0xf]
  %v191 = vld [vmem:[%s1 + $0x180] sm:$0xf]
  %v192 = vld [vmem:[%s1 + $0x184] sm:$0xf]
  %v193 = vld [vmem:[%s1 + $0x188] sm:$0xf]
  %v194 = vld [vmem:[%s1 + $0x18c] sm:$0xf]
  %v195 = vld [vmem:[%s1 + $0x190] sm:$0xf]
  %v196 = vld [vmem:[%s1 + $0x194] sm:$0xf]
  %v197 = vld [vmem:[%s1 + $0x198] sm:$0xf]
  %v198 = vld [vmem:[%s1 + $0x19c] sm:$0xf]
  %v199 = vld [vmem:[%s1 + $0x1a0] sm:$0xf]
  %v200 = vld [vmem:[%s1 + $0x1a4] sm:$0xf]
  %v201 = vld [vmem:[%s1 + $0x1a8] sm:$0xf]
  %v202 = vld [vmem:[%s1 + $0x1ac] sm:$0xf]
  %v203 = vld [vmem:[%s1 + $0x1b0] sm:$0xf]
  %v204 = vld [vmem:[%s1 + $0x1b4] sm:$0xf]
  %v205 = vld [vmem:[%s1 + $0x1b8] sm:$0xf]
  %v206 = vld [vmem:[%s1 + $0x1bc] sm:$0xf]
  %v207 = vld [vmem:[%s1 + $0x1c0] sm:$0xf]
  %v208 = vld [vmem:[%s1 + $0x1c4] sm:$0xf]
  %v209 = vld [vmem:[%s1 + $0x1c8] sm:$0xf]
  %v210 = vld [vmem:[%s1 + $0x1cc] sm:$0xf]
  %v211 = vld [vmem:[%s1 + $0x1d0] sm:$0xf]
  %v212 = vld [vmem:[%s1 + $0x1d4] sm:$0xf]
  %v213 = vld [vmem:[%s1 + $0x1d8] sm:$0xf]
  %v214 = vld [vmem:[%s1 + $0x1dc] sm:$0xf]
  %v215 = vld [vmem:[%s1 + $0x1e0] sm:$0xf]
  %v216 = vld [vmem:[%s1 + $0x1e4] sm:$0xf]
  %v217 = vld [vmem:[%s1 + $0x1e8] sm:$0xf]
  %v218 = vld [vmem:[%s1 + $0x1ec] sm:$0xf]
  %v219 = vld [vmem:[%s1 + $0x1f0] sm:$0xf]
  %v220 = vld [vmem:[%s1 + $0x1f4] sm:$0xf]
  %v221 = vld [vmem:[%s1 + $0x1f8] sm:$0xf]
  %v222 = vld [vmem:[%s1 + $0x1fc] sm:$0xf]
  %v223 = vld [vmem:[%s1 + $0x200] sm:$0xf]
  %v224 = vld [vmem:[%s1 + $0x204] sm:$0xf]
  %v225 = vld [vmem:[%s1 + $0x208] sm:$0xf]
  %v226 = vld [vmem:[%s1 + $0x20c] sm:$0xf]
  %v227 = vld [vmem:[%s1 + $0x210] sm:$0xf]
  %v228 = vld [vmem:[%s1 + $0x214] sm:$0xf]
  %v229 = vld [vmem:[%s1 + $0x218] sm:$0xf]
  %v230 = vld [vmem:[%s1 + $0x21c] sm:$0xf]
  %v231 = vld [vmem:[%s1 + $0x220] sm:$0xf]
  %v232 = vld [vmem:[%s1 + $0x224] sm:$0xf]
  %v233 = vld [vmem:[%s1 + $0x228] sm:$0xf]
  %v234 = vld [vmem:[%s1 + $0x22c] sm:$0xf]
  %v235 = vld [vmem:[%s1 + $0x230] sm:$0xf]
  %v236 = vld [vmem:[%s1 + $0x234] sm:$0xf]
  %v237 = vld [vmem:[%s1 + $0x238] sm:$0xf]
  %v238 = vld [vmem:[%s1 + $0x23c] sm:$0xf]
  %v319 = vunpack.c.l.b16 %v15
  %v320 = vunpack.c.h.b16 %v15
  %v321 = vunpack.c.l.b16 %v16
  %v322 = vunpack.c.h.b16 %v16
  %v323 = vunpack.c.l.b16 %v17
  %v324 = vunpack.c.h.b16 %v17
  %v325 = vunpack.c.l.b16 %v18
  %v326 = vunpack.c.h.b16 %v18
  %v327 = vunpack.c.l.b16 %v19
  %v328 = vunpack.c.l.b16 %v20
  %v329 = vunpack.c.h.b16 %v20
  %v330 = vunpack.c.l.b16 %v21
  %v331 = vunpack.c.h.b16 %v21
  %v332 = vunpack.c.l.b16 %v22
  %v333 = vunpack.c.h.b16 %v22
  %v334 = vunpack.c.l.b16 %v23
  %v335 = vunpack.c.h.b16 %v23
  %v336 = vunpack.c.l.b16 %v24
  %v337 = vunpack.c.l.b16 %v25
  %v338 = vunpack.c.h.b16 %v25
  %v339 = vunpack.c.l.b16 %v26
  %v340 = vunpack.c.h.b16 %v26
  %v341 = vunpack.c.l.b16 %v27
  %v342 = vunpack.c.h.b16 %v27
  %v343 = vunpack.c.l.b16 %v28
  %v344 = vunpack.c.h.b16 %v28
  %v345 = vunpack.c.l.b16 %v29
  %v346 = vunpack.c.l.b16 %v30
  %v347 = vunpack.c.h.b16 %v30
  %v348 = vunpack.c.l.b16 %v31
  %v349 = vunpack.c.h.b16 %v31
  %v350 = vunpack.c.l.b16 %v32
  %v351 = vunpack.c.h.b16 %v32
  %v352 = vunpack.c.l.b16 %v33
  %v353 = vunpack.c.h.b16 %v33
  %v354 = vunpack.c.l.b16 %v34
  %v355 = vunpack.c.l.b16 %v35
  %v356 = vunpack.c.h.b16 %v35
  %v357 = vunpack.c.l.b16 %v36
  %v358 = vunpack.c.h.b16 %v36
  %v359 = vunpack.c.l.b16 %v37
  %v360 = vunpack.c.h.b16 %v37
  %v361 = vunpack.c.l.b16 %v38
  %v362 = vunpack.c.h.b16 %v38
  %v363 = vunpack.c.l.b16 %v39
  %v364 = vunpack.c.l.b16 %v40
  %v365 = vunpack.c.h.b16 %v40
  %v366 = vunpack.c.l.b16 %v41
  %v367 = vunpack.c.h.b16 %v41
  %v368 = vunpack.c.l.b16 %v42
  %v369 = vunpack.c.h.b16 %v42
  %v370 = vunpack.c.l.b16 %v43
  %v371 = vunpack.c.h.b16 %v43
  %v372 = vunpack.c.l.b16 %v44
  %v373 = vunpack.c.l.b16 %v45
  %v374 = vunpack.c.h.b16 %v45
  %v375 = vunpack.c.l.b16 %v46
  %v376 = vunpack.c.h.b16 %v46
  %v377 = vunpack.c.l.b16 %v47
  %v378 = vunpack.c.h.b16 %v47
  %v379 = vunpack.c.l.b16 %v48
  %v380 = vunpack.c.h.b16 %v48
  %v381 = vunpack.c.l.b16 %v49
  %v382 = vunpack.c.l.b16 %v50
  %v383 = vunpack.c.h.b16 %v50
  %v384 = vunpack.c.l.b16 %v51
  %v385 = vunpack.c.h.b16 %v51
  %v386 = vunpack.c.l.b16 %v52
  %v387 = vunpack.c.h.b16 %v52
  %v388 = vunpack.c.l.b16 %v53
  %v389 = vunpack.c.h.b16 %v53
  %v390 = vunpack.c.l.b16 %v54
  %v391 = vunpack.c.l.b16 %v55
  %v392 = vunpack.c.h.b16 %v55
  %v393 = vunpack.c.l.b16 %v56
  %v394 = vunpack.c.h.b16 %v56
  %v395 = vunpack.c.l.b16 %v57
  %v396 = vunpack.c.h.b16 %v57
  %v397 = vunpack.c.l.b16 %v58
  %v398 = vunpack.c.h.b16 %v58
  %v399 = vunpack.c.l.b16 %v59
  %v400 = vunpack.c.l.b16 %v60
  %v401 = vunpack.c.h.b16 %v60
  %v402 = vunpack.c.l.b16 %v61
  %v403 = vunpack.c.h.b16 %v61
  %v404 = vunpack.c.l.b16 %v62
  %v405 = vunpack.c.h.b16 %v62
  %v406 = vunpack.c.l.b16 %v63
  %v407 = vunpack.c.h.b16 %v63
  %v408 = vunpack.c.l.b16 %v64
  %v409 = vunpack.c.l.b16 %v65
  %v410 = vunpack.c.h.b16 %v65
  %v411 = vunpack.c.l.b16 %v66
  %v412 = vunpack.c.h.b16 %v66
  %v413 = vunpack.c.l.b16 %v67
  %v414 = vunpack.c.h.b16 %v67
  %v415 = vunpack.c.l.b16 %v68
  %v416 = vunpack.c.h.b16 %v68
  %v417 = vunpack.c.l.b16 %v69
  %v418 = vunpack.c.l.b16 %v70
  %v419 = vunpack.c.h.b16 %v70
  %v420 = vunpack.c.l.b16 %v71
  %v421 = vunpack.c.h.b16 %v71
  %v422 = vunpack.c.l.b16 %v72
  %v423 = vunpack.c.h.b16 %v72
  %v424 = vunpack.c.l.b16 %v73
  %v425 = vunpack.c.h.b16 %v73
  %v426 = vunpack.c.l.b16 %v74
  %v427 = vunpack.c.l.b16 %v75
  %v428 = vunpack.c.h.b16 %v75
  %v429 = vunpack.c.l.b16 %v76
  %v430 = vunpack.c.h.b16 %v76
  %v431 = vunpack.c.l.b16 %v77
  %v432 = vunpack.c.h.b16 %v77
  %v433 = vunpack.c.l.b16 %v78
  %v434 = vunpack.c.h.b16 %v78
  %v435 = vunpack.c.l.b16 %v79
  %v436 = vunpack.c.l.b16 %v80
  %v437 = vunpack.c.h.b16 %v80
  %v438 = vunpack.c.l.b16 %v81
  %v439 = vunpack.c.h.b16 %v81
  %v440 = vunpack.c.l.b16 %v82
  %v441 = vunpack.c.h.b16 %v82
  %v442 = vunpack.c.l.b16 %v83
  %v443 = vunpack.c.h.b16 %v83
  %v444 = vunpack.c.l.b16 %v84
  %v445 = vunpack.c.l.b16 %v85
  %v446 = vunpack.c.h.b16 %v85
  %v447 = vunpack.c.l.b16 %v86
  %v448 = vunpack.c.h.b16 %v86
  %v449 = vunpack.c.l.b16 %v87
  %v450 = vunpack.c.h.b16 %v87
  %v451 = vunpack.c.l.b16 %v88
  %v452 = vunpack.c.h.b16 %v88
  %v453 = vunpack.c.l.b16 %v89
  %v454 = vunpack.c.l.b16 %v90
  %v455 = vunpack.c.h.b16 %v90
  %v456 = vunpack.c.l.b16 %v91
  %v457 = vunpack.c.h.b16 %v91
  %v458 = vunpack.c.l.b16 %v92
  %v459 = vunpack.c.h.b16 %v92
  %v460 = vunpack.c.l.b16 %v93
  %v461 = vunpack.c.h.b16 %v93
  %v462 = vunpack.c.l.b16 %v94
  %v463 = vpack.c.b16 %v328, %v319
  %v464 = vpack.c.b16 %v329, %v320
  %v465 = vpack.c.b16 %v330, %v321
  %v466 = vpack.c.b16 %v331, %v322
  %v467 = vpack.c.b16 %v332, %v323
  %v468 = vpack.c.b16 %v333, %v324
  %v469 = vpack.c.b16 %v334, %v325
  %v470 = vpack.c.b16 %v335, %v326
  %v471 = vpack.c.b16 %v336, %v327
  %v472 = vpack.c.b16 %v346, %v337
  %v473 = vpack.c.b16 %v347, %v338
  %v474 = vpack.c.b16 %v348, %v339
  %v475 = vpack.c.b16 %v349, %v340
  %v476 = vpack.c.b16 %v350, %v341
  %v477 = vpack.c.b16 %v351, %v342
  %v478 = vpack.c.b16 %v352, %v343
  %v479 = vpack.c.b16 %v353, %v344
  %v480 = vpack.c.b16 %v354, %v345
  %v481 = vpack.c.b16 %v364, %v355
  %v482 = vpack.c.b16 %v365, %v356
  %v483 = vpack.c.b16 %v366, %v357
  %v484 = vpack.c.b16 %v367, %v358
  %v485 = vpack.c.b16 %v368, %v359
  %v486 = vpack.c.b16 %v369, %v360
  %v487 = vpack.c.b16 %v370, %v361
  %v488 = vpack.c.b16 %v371, %v362
  %v489 = vpack.c.b16 %v372, %v363
  %v490 = vpack.c.b16 %v382, %v373
  %v491 = vpack.c.b16 %v383, %v374
  %v492 = vpack.c.b16 %v384, %v375
  %v493 = vpack.c.b16 %v385, %v376
  %v494 = vpack.c.b16 %v386, %v377
  %v495 = vpack.c.b16 %v387, %v378
  %v496 = vpack.c.b16 %v388, %v379
  %v497 = vpack.c.b16 %v389, %v380
  %v498 = vpack.c.b16 %v390, %v381
  %v499 = vpack.c.b16 %v400, %v391
  %v500 = vpack.c.b16 %v401, %v392
  %v501 = vpack.c.b16 %v402, %v393
  %v502 = vpack.c.b16 %v403, %v394
  %v503 = vpack.c.b16 %v404, %v395
  %v504 = vpack.c.b16 %v405, %v396
  %v505 = vpack.c.b16 %v406, %v397
  %v506 = vpack.c.b16 %v407, %v398
  %v507 = vpack.c.b16 %v408, %v399
  %v508 = vpack.c.b16 %v418, %v409
  %v509 = vpack.c.b16 %v419, %v410
  %v510 = vpack.c.b16 %v420, %v411
  %v511 = vpack.c.b16 %v421, %v412
  %v512 = vpack.c.b16 %v422, %v413
  %v513 = vpack.c.b16 %v423, %v414
  %v514 = vpack.c.b16 %v424, %v415
  %v515 = vpack.c.b16 %v425, %v416
  %v516 = vpack.c.b16 %v426, %v417
  %v517 = vpack.c.b16 %v436, %v427
  %v518 = vpack.c.b16 %v437, %v428
  %v519 = vpack.c.b16 %v438, %v429
  %v520 = vpack.c.b16 %v439, %v430
  %v521 = vpack.c.b16 %v440, %v431
  %v522 = vpack.c.b16 %v441, %v432
  %v523 = vpack.c.b16 %v442, %v433
  %v524 = vpack.c.b16 %v443, %v434
  %v525 = vpack.c.b16 %v444, %v435
  %v526 = vpack.c.b16 %v454, %v445
  %v527 = vpack.c.b16 %v455, %v446
  %v528 = vpack.c.b16 %v456, %v447
  %v529 = vpack.c.b16 %v457, %v448
  %v530 = vpack.c.b16 %v458, %v449
  %v531 = vpack.c.b16 %v459, %v450
  %v532 = vpack.c.b16 %v460, %v451
  %v533 = vpack.c.b16 %v461, %v452
  %v534 = vpack.c.b16 %v462, %v453
  %v751 = vunpack.c.l.b16 %v95
  %v752 = vunpack.c.l.b16 %v96
  %v753 = vunpack.c.l.b16 %v97
  %v754 = vunpack.c.l.b16 %v98
  %v755 = vunpack.c.l.b16 %v99
  %v756 = vunpack.c.l.b16 %v100
  %v757 = vunpack.c.l.b16 %v101
  %v758 = vunpack.c.l.b16 %v102
  %v759 = vunpack.c.l.b16 %v103
  %v760 = vunpack.c.l.b16 %v104
  %v761 = vunpack.c.l.b16 %v105
  %v762 = vunpack.c.l.b16 %v106
  %v763 = vunpack.c.l.b16 %v107
  %v764 = vunpack.c.l.b16 %v108
  %v765 = vunpack.c.l.b16 %v109
  %v766 = vunpack.c.l.b16 %v110
  %v767 = vunpack.c.l.b16 %v111
  %v768 = vunpack.c.l.b16 %v112
  %v769 = vunpack.c.l.b16 %v113
  %v770 = vunpack.c.l.b16 %v114
  %v771 = vunpack.c.l.b16 %v115
  %v772 = vunpack.c.l.b16 %v116
  %v773 = vunpack.c.l.b16 %v117
  %v774 = vunpack.c.l.b16 %v118
  %v775 = vunpack.c.l.b16 %v119
  %v776 = vunpack.c.l.b16 %v120
  %v777 = vunpack.c.l.b16 %v121
  %v778 = vunpack.c.l.b16 %v122
  %v779 = vunpack.c.l.b16 %v123
  %v780 = vunpack.c.l.b16 %v124
  %v781 = vunpack.c.l.b16 %v125
  %v782 = vunpack.c.l.b16 %v126
  %v783 = vunpack.c.l.b16 %v127
  %v784 = vunpack.c.l.b16 %v128
  %v785 = vunpack.c.l.b16 %v129
  %v786 = vunpack.c.l.b16 %v130
  %v787 = vunpack.c.l.b16 %v131
  %v788 = vunpack.c.l.b16 %v132
  %v789 = vunpack.c.l.b16 %v133
  %v790 = vunpack.c.l.b16 %v134
  %v791 = vunpack.c.l.b16 %v135
  %v792 = vunpack.c.l.b16 %v136
  %v793 = vunpack.c.l.b16 %v137
  %v794 = vunpack.c.l.b16 %v138
  %v795 = vunpack.c.l.b16 %v139
  %v796 = vunpack.c.l.b16 %v140
  %v797 = vunpack.c.l.b16 %v141
  %v798 = vunpack.c.l.b16 %v142
  %v799 = vunpack.c.l.b16 %v143
  %v800 = vunpack.c.l.b16 %v144
  %v801 = vunpack.c.l.b16 %v145
  %v802 = vunpack.c.l.b16 %v146
  %v803 = vunpack.c.l.b16 %v147
  %v804 = vunpack.c.l.b16 %v148
  %v805 = vunpack.c.l.b16 %v149
  %v806 = vunpack.c.l.b16 %v150
  %v807 = vunpack.c.l.b16 %v151
  %v808 = vunpack.c.l.b16 %v152
  %v809 = vunpack.c.l.b16 %v153
  %v810 = vunpack.c.l.b16 %v154
  %v811 = vunpack.c.l.b16 %v155
  %v812 = vunpack.c.l.b16 %v156
  %v813 = vunpack.c.l.b16 %v157
  %v814 = vunpack.c.l.b16 %v158
  %v815 = vunpack.c.l.b16 %v159
  %v816 = vunpack.c.l.b16 %v160
  %v817 = vunpack.c.l.b16 %v161
  %v818 = vunpack.c.l.b16 %v162
  %v819 = vunpack.c.l.b16 %v163
  %v820 = vunpack.c.l.b16 %v164
  %v821 = vunpack.c.l.b16 %v165
  %v822 = vunpack.c.l.b16 %v166
  %v823 = vunpack.c.l.b16 %v167
  %v824 = vunpack.c.l.b16 %v168
  %v825 = vunpack.c.l.b16 %v169
  %v826 = vunpack.c.l.b16 %v170
  %v827 = vunpack.c.l.b16 %v171
  %v828 = vunpack.c.l.b16 %v172
  %v829 = vunpack.c.l.b16 %v173
  %v830 = vunpack.c.l.b16 %v174
  %v831 = vunpack.c.l.b16 %v175
  %v832 = vunpack.c.l.b16 %v176
  %v833 = vunpack.c.l.b16 %v177
  %v834 = vunpack.c.l.b16 %v178
  %v835 = vunpack.c.l.b16 %v179
  %v836 = vunpack.c.l.b16 %v180
  %v837 = vunpack.c.l.b16 %v181
  %v838 = vunpack.c.l.b16 %v182
  %v839 = vunpack.c.l.b16 %v183
  %v840 = vunpack.c.l.b16 %v184
  %v841 = vunpack.c.l.b16 %v185
  %v842 = vunpack.c.l.b16 %v186
  %v843 = vunpack.c.l.b16 %v187
  %v844 = vunpack.c.l.b16 %v188
  %v845 = vunpack.c.l.b16 %v189
  %v846 = vunpack.c.l.b16 %v190
  %v847 = vunpack.c.l.b16 %v191
  %v848 = vunpack.c.l.b16 %v192
  %v849 = vunpack.c.l.b16 %v193
  %v850 = vunpack.c.l.b16 %v194
  %v851 = vunpack.c.l.b16 %v195
  %v852 = vunpack.c.l.b16 %v196
  %v853 = vunpack.c.l.b16 %v197
  %v854 = vunpack.c.l.b16 %v198
  %v855 = vunpack.c.l.b16 %v199
  %v856 = vunpack.c.l.b16 %v200
  %v857 = vunpack.c.l.b16 %v201
  %v858 = vunpack.c.l.b16 %v202
  %v859 = vunpack.c.l.b16 %v203
  %v860 = vunpack.c.l.b16 %v204
  %v861 = vunpack.c.l.b16 %v205
  %v862 = vunpack.c.l.b16 %v206
  %v863 = vunpack.c.l.b16 %v207
  %v864 = vunpack.c.l.b16 %v208
  %v865 = vunpack.c.l.b16 %v209
  %v866 = vunpack.c.l.b16 %v210
  %v867 = vunpack.c.l.b16 %v211
  %v868 = vunpack.c.l.b16 %v212
  %v869 = vunpack.c.l.b16 %v213
  %v870 = vunpack.c.l.b16 %v214
  %v871 = vunpack.c.l.b16 %v215
  %v872 = vunpack.c.l.b16 %v216
  %v873 = vunpack.c.l.b16 %v217
  %v874 = vunpack.c.l.b16 %v218
  %v875 = vunpack.c.l.b16 %v219
  %v876 = vunpack.c.l.b16 %v220
  %v877 = vunpack.c.l.b16 %v221
  %v878 = vunpack.c.l.b16 %v222
  %v879 = vunpack.c.l.b16 %v223
  %v880 = vunpack.c.l.b16 %v224
  %v881 = vunpack.c.l.b16 %v225
  %v882 = vunpack.c.l.b16 %v226
  %v883 = vunpack.c.l.b16 %v227
  %v884 = vunpack.c.l.b16 %v228
  %v885 = vunpack.c.l.b16 %v229
  %v886 = vunpack.c.l.b16 %v230
  %v887 = vunpack.c.l.b16 %v231
  %v888 = vunpack.c.l.b16 %v232
  %v889 = vunpack.c.l.b16 %v233
  %v890 = vunpack.c.l.b16 %v234
  %v891 = vunpack.c.l.b16 %v235
  %v892 = vunpack.c.l.b16 %v236
  %v893 = vunpack.c.l.b16 %v237
  %v894 = vunpack.c.l.b16 %v238
  %v895 = vpack.c.b16 %v752, %v751
  %v896 = vpack.c.b16 %v754, %v753
  %v897 = vpack.c.b16 %v756, %v755
  %v898 = vpack.c.b16 %v758, %v757
  %v899 = vpack.c.b16 %v760, %v759
  %v900 = vpack.c.b16 %v762, %v761
  %v901 = vpack.c.b16 %v764, %v763
  %v902 = vpack.c.b16 %v766, %v765
  %v903 = vpack.c.b16 %v768, %v767
  %v904 = vpack.c.b16 %v770, %v769
  %v905 = vpack.c.b16 %v772, %v771
  %v906 = vpack.c.b16 %v774, %v773
  %v907 = vpack.c.b16 %v776, %v775
  %v908 = vpack.c.b16 %v778, %v777
  %v909 = vpack.c.b16 %v780, %v779
  %v910 = vpack.c.b16 %v782, %v781
  %v911 = vpack.c.b16 %v784, %v783
  %v912 = vpack.c.b16 %v786, %v785
  %v913 = vpack.c.b16 %v788, %v787
  %v914 = vpack.c.b16 %v790, %v789
  %v915 = vpack.c.b16 %v792, %v791
  %v916 = vpack.c.b16 %v794, %v793
  %v917 = vpack.c.b16 %v796, %v795
  %v918 = vpack.c.b16 %v798, %v797
  %v919 = vpack.c.b16 %v800, %v799
  %v920 = vpack.c.b16 %v802, %v801
  %v921 = vpack.c.b16 %v804, %v803
  %v922 = vpack.c.b16 %v806, %v805
  %v923 = vpack.c.b16 %v808, %v807
  %v924 = vpack.c.b16 %v810, %v809
  %v925 = vpack.c.b16 %v812, %v811
  %v926 = vpack.c.b16 %v814, %v813
  %v927 = vpack.c.b16 %v816, %v815
  %v928 = vpack.c.b16 %v818, %v817
  %v929 = vpack.c.b16 %v820, %v819
  %v930 = vpack.c.b16 %v822, %v821
  %v931 = vpack.c.b16 %v824, %v823
  %v932 = vpack.c.b16 %v826, %v825
  %v933 = vpack.c.b16 %v828, %v827
  %v934 = vpack.c.b16 %v830, %v829
  %v935 = vpack.c.b16 %v832, %v831
  %v936 = vpack.c.b16 %v834, %v833
  %v937 = vpack.c.b16 %v836, %v835
  %v938 = vpack.c.b16 %v838, %v837
  %v939 = vpack.c.b16 %v840, %v839
  %v940 = vpack.c.b16 %v842, %v841
  %v941 = vpack.c.b16 %v844, %v843
  %v942 = vpack.c.b16 %v846, %v845
  %v943 = vpack.c.b16 %v848, %v847
  %v944 = vpack.c.b16 %v850, %v849
  %v945 = vpack.c.b16 %v852, %v851
  %v946 = vpack.c.b16 %v854, %v853
  %v947 = vpack.c.b16 %v856, %v855
  %v948 = vpack.c.b16 %v858, %v857
  %v949 = vpack.c.b16 %v860, %v859
  %v950 = vpack.c.b16 %v862, %v861
  %v951 = vpack.c.b16 %v864, %v863
  %v952 = vpack.c.b16 %v866, %v865
  %v953 = vpack.c.b16 %v868, %v867
  %v954 = vpack.c.b16 %v870, %v869
  %v955 = vpack.c.b16 %v872, %v871
  %v956 = vpack.c.b16 %v874, %v873
  %v957 = vpack.c.b16 %v876, %v875
  %v958 = vpack.c.b16 %v878, %v877
  %v959 = vpack.c.b16 %v880, %v879
  %v960 = vpack.c.b16 %v882, %v881
  %v961 = vpack.c.b16 %v884, %v883
  %v962 = vpack.c.b16 %v886, %v885
  %v963 = vpack.c.b16 %v888, %v887
  %v964 = vpack.c.b16 %v890, %v889
  %v965 = vpack.c.b16 %v892, %v891
  %v966 = vpack.c.b16 %v894, %v893
  %1039 = vmatprep.subr.bf16.mxu0 0
  %1040 = vmatpush1.bf16.msra.mxu0 %v902
  %1041 = vmatprep.subr.bf16.mxu0 0
  %1042 = vmatpush1.bf16.msra.mxu0 %v901
  %1043 = vmatprep.subr.bf16.mxu0 0
  %1044 = vmatpush1.bf16.msra.mxu0 %v900
  %1045 = vmatprep.subr.bf16.mxu0 0
  %1046 = vmatpush1.bf16.msra.mxu0 %v899
  %1047 = vmatprep.subr.bf16.mxu0 0
  %1048 = vmatpush1.bf16.msra.mxu0 %v898
  %1049 = vmatprep.subr.bf16.mxu0 0
  %1050 = vmatpush1.bf16.msra.mxu0 %v897
  %1051 = vmatprep.subr.bf16.mxu0 0
  %1052 = vmatpush1.bf16.msra.mxu0 %v896
  %1053 = vmatprep.subr.bf16.mxu0 0
  %1054 = vmatpush1.bf16.msra.mxu0 %v895
  %1055 = vmatprep.subr.bf16.mxu0 0
  %1056 = vmatpush2.bf16.msra.mxu0 %v910
  %1057 = vmatprep.subr.bf16.mxu0 0
  %1058 = vmatpush2.bf16.msra.mxu0 %v909
  %1059 = vmatprep.subr.bf16.mxu0 0
  %1060 = vmatpush2.bf16.msra.mxu0 %v908
  %1061 = vmatprep.subr.bf16.mxu0 0
  %1062 = vmatpush2.bf16.msra.mxu0 %v907
  %1063 = vmatprep.subr.bf16.mxu0 0
  %1064 = vmatpush2.bf16.msra.mxu0 %v906
  %1065 = vmatprep.subr.bf16.mxu0 0
  %1066 = vmatpush2.bf16.msra.mxu0 %v905
  %1067 = vmatprep.subr.bf16.mxu0 0
  %1068 = vmatpush2.bf16.msra.mxu0 %v904
  %1069 = vmatprep.subr.bf16.mxu0 0
  %1070 = vmatpush2.bf16.msra.mxu0 %v903
  %1071 = vmatprep.mubr.bf16.mxu0 %v464
  %1072 = vmatmul.mubr.bf16.gmra.mxu0 %v463
  %v1073 = vpop.f32.mrf.mxu0
  %v1074 = vadd.f32 0.0, %v1073
  %v1075 = vpop.f32.mrf.mxu0
  %v1076 = vpop.f32.mrf.mxu0
  %v1077 = vadd.f32 0.0, %v1076
  %v1078 = vpop.f32.mrf.mxu0
  %1079 = vmatprep.mubr.bf16.mxu0 %v473
  %1080 = vmatmul.mubr.bf16.gmra.mxu0 %v472
  %v1081 = vpop.f32.mrf.mxu0
  %v1082 = vadd.f32 0.0, %v1081
  %v1083 = vpop.f32.mrf.mxu0
  %v1084 = vpop.f32.mrf.mxu0
  %v1085 = vadd.f32 0.0, %v1084
  %v1086 = vpop.f32.mrf.mxu0
  %1087 = vmatprep.mubr.bf16.mxu0 %v482
  %1088 = vmatmul.mubr.bf16.gmra.mxu0 %v481
  %v1089 = vpop.f32.mrf.mxu0
  %v1090 = vadd.f32 0.0, %v1089
  %v1091 = vpop.f32.mrf.mxu0
  %v1092 = vpop.f32.mrf.mxu0
  %v1093 = vadd.f32 0.0, %v1092
  %v1094 = vpop.f32.mrf.mxu0
  %1095 = vmatprep.mubr.bf16.mxu0 %v491
  %1096 = vmatmul.mubr.bf16.gmra.mxu0 %v490
  %v1097 = vpop.f32.mrf.mxu0
  %v1098 = vadd.f32 0.0, %v1097
  %v1099 = vpop.f32.mrf.mxu0
  %v1100 = vpop.f32.mrf.mxu0
  %v1101 = vadd.f32 0.0, %v1100
  %v1102 = vpop.f32.mrf.mxu0
  %1103 = vmatprep.mubr.bf16.mxu0 %v500
  %1104 = vmatmul.mubr.bf16.gmra.mxu0 %v499
  %v1105 = vpop.f32.mrf.mxu0
  %v1106 = vadd.f32 0.0, %v1105
  %v1107 = vpop.f32.mrf.mxu0
  %v1108 = vpop.f32.mrf.mxu0
  %v1109 = vadd.f32 0.0, %v1108
  %v1110 = vpop.f32.mrf.mxu0
  %1111 = vmatprep.mubr.bf16.mxu0 %v509
  %1112 = vmatmul.mubr.bf16.gmra.mxu0 %v508
  %v1113 = vpop.f32.mrf.mxu0
  %v1114 = vadd.f32 0.0, %v1113
  %v1115 = vpop.f32.mrf.mxu0
  %v1116 = vpop.f32.mrf.mxu0
  %v1117 = vadd.f32 0.0, %v1116
  %v1118 = vpop.f32.mrf.mxu0
  %1119 = vmatprep.mubr.bf16.mxu0 %v518
  %1120 = vmatmul.mubr.bf16.gmra.mxu0 %v517
  %v1121 = vpop.f32.mrf.mxu0
  %v1122 = vadd.f32 0.0, %v1121
  %v1123 = vpop.f32.mrf.mxu0
  %v1124 = vpop.f32.mrf.mxu0
  %v1125 = vadd.f32 0.0, %v1124
  %v1126 = vpop.f32.mrf.mxu0
  %1127 = vmatprep.mubr.bf16.mxu0 %v527
  %1128 = vmatmul.mubr.bf16.gmra.mxu0 %v526
  %v1129 = vpop.f32.mrf.mxu0
  %v1130 = vadd.f32 0.0, %v1129
  %v1131 = vpop.f32.mrf.mxu0
  %v1132 = vpop.f32.mrf.mxu0
  %v1133 = vadd.f32 0.0, %v1132
  %v1134 = vpop.f32.mrf.mxu0
  %1135 = vdwg.mxu0
  %1136 = vmatprep.subr.bf16.mxu0 0
  %1137 = vmatpush1.bf16.msra.mxu0 %v918
  %1138 = vmatprep.subr.bf16.mxu0 0
  %1139 = vmatpush1.bf16.msra.mxu0 %v917
  %1140 = vmatprep.subr.bf16.mxu0 0
  %1141 = vmatpush1.bf16.msra.mxu0 %v916
  %1142 = vmatprep.subr.bf16.mxu0 0
  %1143 = vmatpush1.bf16.msra.mxu0 %v915
  %1144 = vmatprep.subr.bf16.mxu0 0
  %1145 = vmatpush1.bf16.msra.mxu0 %v914
  %1146 = vmatprep.subr.bf16.mxu0 0
  %1147 = vmatpush1.bf16.msra.mxu0 %v913
  %1148 = vmatprep.subr.bf16.mxu0 0
  %1149 = vmatpush1.bf16.msra.mxu0 %v912
  %1150 = vmatprep.subr.bf16.mxu0 0
  %1151 = vmatpush1.bf16.msra.mxu0 %v911
  %1152 = vmatprep.subr.bf16.mxu0 0
  %1153 = vmatpush2.bf16.msra.mxu0 %v926
  %1154 = vmatprep.subr.bf16.mxu0 0
  %1155 = vmatpush2.bf16.msra.mxu0 %v925
  %1156 = vmatprep.subr.bf16.mxu0 0
  %1157 = vmatpush2.bf16.msra.mxu0 %v924
  %1158 = vmatprep.subr.bf16.mxu0 0
  %1159 = vmatpush2.bf16.msra.mxu0 %v923
  %1160 = vmatprep.subr.bf16.mxu0 0
  %1161 = vmatpush2.bf16.msra.mxu0 %v922
  %1162 = vmatprep.subr.bf16.mxu0 0
  %1163 = vmatpush2.bf16.msra.mxu0 %v921
  %1164 = vmatprep.subr.bf16.mxu0 0
  %1165 = vmatpush2.bf16.msra.mxu0 %v920
  %1166 = vmatprep.subr.bf16.mxu0 0
  %1167 = vmatpush2.bf16.msra.mxu0 %v919
  %1168 = vmatprep.mubr.bf16.mxu0 %v466
  %1169 = vmatmul.mubr.bf16.gmra.mxu0 %v465
  %v1170 = vpop.f32.mrf.mxu0
  %v1171 = vadd.f32 %v1074, %v1170
  %v1172 = vpop.f32.mrf.mxu0
  %v1173 = vpop.f32.mrf.mxu0
  %v1174 = vadd.f32 %v1077, %v1173
  %v1175 = vpop.f32.mrf.mxu0
  %1176 = vmatprep.mubr.bf16.mxu0 %v475
  %1177 = vmatmul.mubr.bf16.gmra.mxu0 %v474
  %v1178 = vpop.f32.mrf.mxu0
  %v1179 = vadd.f32 %v1082, %v1178
  %v1180 = vpop.f32.mrf.mxu0
  %v1181 = vpop.f32.mrf.mxu0
  %v1182 = vadd.f32 %v1085, %v1181
  %v1183 = vpop.f32.mrf.mxu0
  %1184 = vmatprep.mubr.bf16.mxu0 %v484
  %1185 = vmatmul.mubr.bf16.gmra.mxu0 %v483
  %v1186 = vpop.f32.mrf.mxu0
  %v1187 = vadd.f32 %v1090, %v1186
  %v1188 = vpop.f32.mrf.mxu0
  %v1189 = vpop.f32.mrf.mxu0
  %v1190 = vadd.f32 %v1093, %v1189
  %v1191 = vpop.f32.mrf.mxu0
  %1192 = vmatprep.mubr.bf16.mxu0 %v493
  %1193 = vmatmul.mubr.bf16.gmra.mxu0 %v492
  %v1194 = vpop.f32.mrf.mxu0
  %v1195 = vadd.f32 %v1098, %v1194
  %v1196 = vpop.f32.mrf.mxu0
  %v1197 = vpop.f32.mrf.mxu0
  %v1198 = vadd.f32 %v1101, %v1197
  %v1199 = vpop.f32.mrf.mxu0
  %1200 = vmatprep.mubr.bf16.mxu0 %v502
  %1201 = vmatmul.mubr.bf16.gmra.mxu0 %v501
  %v1202 = vpop.f32.mrf.mxu0
  %v1203 = vadd.f32 %v1106, %v1202
  %v1204 = vpop.f32.mrf.mxu0
  %v1205 = vpop.f32.mrf.mxu0
  %v1206 = vadd.f32 %v1109, %v1205
  %v1207 = vpop.f32.mrf.mxu0
  %1208 = vmatprep.mubr.bf16.mxu0 %v511
  %1209 = vmatmul.mubr.bf16.gmra.mxu0 %v510
  %v1210 = vpop.f32.mrf.mxu0
  %v1211 = vadd.f32 %v1114, %v1210
  %v1212 = vpop.f32.mrf.mxu0
  %v1213 = vpop.f32.mrf.mxu0
  %v1214 = vadd.f32 %v1117, %v1213
  %v1215 = vpop.f32.mrf.mxu0
  %1216 = vmatprep.mubr.bf16.mxu0 %v520
  %1217 = vmatmul.mubr.bf16.gmra.mxu0 %v519
  %v1218 = vpop.f32.mrf.mxu0
  %v1219 = vadd.f32 %v1122, %v1218
  %v1220 = vpop.f32.mrf.mxu0
  %v1221 = vpop.f32.mrf.mxu0
  %v1222 = vadd.f32 %v1125, %v1221
  %v1223 = vpop.f32.mrf.mxu0
  %1224 = vmatprep.mubr.bf16.mxu0 %v529
  %1225 = vmatmul.mubr.bf16.gmra.mxu0 %v528
  %v1226 = vpop.f32.mrf.mxu0
  %v1227 = vadd.f32 %v1130, %v1226
  %v1228 = vpop.f32.mrf.mxu0
  %v1229 = vpop.f32.mrf.mxu0
  %v1230 = vadd.f32 %v1133, %v1229
  %v1231 = vpop.f32.mrf.mxu0
  %1232 = vdwg.mxu0
  %1233 = vmatprep.subr.bf16.mxu0 0
  %1234 = vmatpush1.bf16.msra.mxu0 %v934
  %1235 = vmatprep.subr.bf16.mxu0 0
  %1236 = vmatpush1.bf16.msra.mxu0 %v933
  %1237 = vmatprep.subr.bf16.mxu0 0
  %1238 = vmatpush1.bf16.msra.mxu0 %v932
  %1239 = vmatprep.subr.bf16.mxu0 0
  %1240 = vmatpush1.bf16.msra.mxu0 %v931
  %1241 = vmatprep.subr.bf16.mxu0 0
  %1242 = vmatpush1.bf16.msra.mxu0 %v930
  %1243 = vmatprep.subr.bf16.mxu0 0
  %1244 = vmatpush1.bf16.msra.mxu0 %v929
  %1245 = vmatprep.subr.bf16.mxu0 0
  %1246 = vmatpush1.bf16.msra.mxu0 %v928
  %1247 = vmatprep.subr.bf16.mxu0 0
  %1248 = vmatpush1.bf16.msra.mxu0 %v927
  %1249 = vmatprep.subr.bf16.mxu0 0
  %1250 = vmatpush2.bf16.msra.mxu0 %v942
  %1251 = vmatprep.subr.bf16.mxu0 0
  %1252 = vmatpush2.bf16.msra.mxu0 %v941
  %1253 = vmatprep.subr.bf16.mxu0 0
  %1254 = vmatpush2.bf16.msra.mxu0 %v940
  %1255 = vmatprep.subr.bf16.mxu0 0
  %1256 = vmatpush2.bf16.msra.mxu0 %v939
  %1257 = vmatprep.subr.bf16.mxu0 0
  %1258 = vmatpush2.bf16.msra.mxu0 %v938
  %1259 = vmatprep.subr.bf16.mxu0 0
  %1260 = vmatpush2.bf16.msra.mxu0 %v937
  %1261 = vmatprep.subr.bf16.mxu0 0
  %1262 = vmatpush2.bf16.msra.mxu0 %v936
  %1263 = vmatprep.subr.bf16.mxu0 0
  %1264 = vmatpush2.bf16.msra.mxu0 %v935
  %1265 = vmatprep.mubr.bf16.mxu0 %v468
  %1266 = vmatmul.mubr.bf16.gmra.mxu0 %v467
  %v1267 = vpop.f32.mrf.mxu0
  %v1268 = vadd.f32 %v1171, %v1267
  %v1269 = vpop.f32.mrf.mxu0
  %v1270 = vpop.f32.mrf.mxu0
  %v1271 = vadd.f32 %v1174, %v1270
  %v1272 = vpop.f32.mrf.mxu0
  %1273 = vmatprep.mubr.bf16.mxu0 %v477
  %1274 = vmatmul.mubr.bf16.gmra.mxu0 %v476
  %v1275 = vpop.f32.mrf.mxu0
  %v1276 = vadd.f32 %v1179, %v1275
  %v1277 = vpop.f32.mrf.mxu0
  %v1278 = vpop.f32.mrf.mxu0
  %v1279 = vadd.f32 %v1182, %v1278
  %v1280 = vpop.f32.mrf.mxu0
  %1281 = vmatprep.mubr.bf16.mxu0 %v486
  %1282 = vmatmul.mubr.bf16.gmra.mxu0 %v485
  %v1283 = vpop.f32.mrf.mxu0
  %v1284 = vadd.f32 %v1187, %v1283
  %v1285 = vpop.f32.mrf.mxu0
  %v1286 = vpop.f32.mrf.mxu0
  %v1287 = vadd.f32 %v1190, %v1286
  %v1288 = vpop.f32.mrf.mxu0
  %1289 = vmatprep.mubr.bf16.mxu0 %v495
  %1290 = vmatmul.mubr.bf16.gmra.mxu0 %v494
  %v1291 = vpop.f32.mrf.mxu0
  %v1292 = vadd.f32 %v1195, %v1291
  %v1293 = vpop.f32.mrf.mxu0
  %v1294 = vpop.f32.mrf.mxu0
  %v1295 = vadd.f32 %v1198, %v1294
  %v1296 = vpop.f32.mrf.mxu0
  %1297 = vmatprep.mubr.bf16.mxu0 %v504
  %1298 = vmatmul.mubr.bf16.gmra.mxu0 %v503
  %v1299 = vpop.f32.mrf.mxu0
  %v1300 = vadd.f32 %v1203, %v1299
  %v1301 = vpop.f32.mrf.mxu0
  %v1302 = vpop.f32.mrf.mxu0
  %v1303 = vadd.f32 %v1206, %v1302
  %v1304 = vpop.f32.mrf.mxu0
  %1305 = vmatprep.mubr.bf16.mxu0 %v513
  %1306 = vmatmul.mubr.bf16.gmra.mxu0 %v512
  %v1307 = vpop.f32.mrf.mxu0
  %v1308 = vadd.f32 %v1211, %v1307
  %v1309 = vpop.f32.mrf.mxu0
  %v1310 = vpop.f32.mrf.mxu0
  %v1311 = vadd.f32 %v1214, %v1310
  %v1312 = vpop.f32.mrf.mxu0
  %1313 = vmatprep.mubr.bf16.mxu0 %v522
  %1314 = vmatmul.mubr.bf16.gmra.mxu0 %v521
  %v1315 = vpop.f32.mrf.mxu0
  %v1316 = vadd.f32 %v1219, %v1315
  %v1317 = vpop.f32.mrf.mxu0
  %v1318 = vpop.f32.mrf.mxu0
  %v1319 = vadd.f32 %v1222, %v1318
  %v1320 = vpop.f32.mrf.mxu0
  %1321 = vmatprep.mubr.bf16.mxu0 %v531
  %1322 = vmatmul.mubr.bf16.gmra.mxu0 %v530
  %v1323 = vpop.f32.mrf.mxu0
  %v1324 = vadd.f32 %v1227, %v1323
  %v1325 = vpop.f32.mrf.mxu0
  %v1326 = vpop.f32.mrf.mxu0
  %v1327 = vadd.f32 %v1230, %v1326
  %v1328 = vpop.f32.mrf.mxu0
  %1329 = vdwg.mxu0
  %1330 = vmatprep.subr.bf16.mxu0 0
  %1331 = vmatpush1.bf16.msra.mxu0 %v950
  %1332 = vmatprep.subr.bf16.mxu0 0
  %1333 = vmatpush1.bf16.msra.mxu0 %v949
  %1334 = vmatprep.subr.bf16.mxu0 0
  %1335 = vmatpush1.bf16.msra.mxu0 %v948
  %1336 = vmatprep.subr.bf16.mxu0 0
  %1337 = vmatpush1.bf16.msra.mxu0 %v947
  %1338 = vmatprep.subr.bf16.mxu0 0
  %1339 = vmatpush1.bf16.msra.mxu0 %v946
  %1340 = vmatprep.subr.bf16.mxu0 0
  %1341 = vmatpush1.bf16.msra.mxu0 %v945
  %1342 = vmatprep.subr.bf16.mxu0 0
  %1343 = vmatpush1.bf16.msra.mxu0 %v944
  %1344 = vmatprep.subr.bf16.mxu0 0
  %1345 = vmatpush1.bf16.msra.mxu0 %v943
  %1346 = vmatprep.subr.bf16.mxu0 0
  %1347 = vmatpush2.bf16.msra.mxu0 %v958
  %1348 = vmatprep.subr.bf16.mxu0 0
  %1349 = vmatpush2.bf16.msra.mxu0 %v957
  %1350 = vmatprep.subr.bf16.mxu0 0
  %1351 = vmatpush2.bf16.msra.mxu0 %v956
  %1352 = vmatprep.subr.bf16.mxu0 0
  %1353 = vmatpush2.bf16.msra.mxu0 %v955
  %1354 = vmatprep.subr.bf16.mxu0 0
  %1355 = vmatpush2.bf16.msra.mxu0 %v954
  %1356 = vmatprep.subr.bf16.mxu0 0
  %1357 = vmatpush2.bf16.msra.mxu0 %v953
  %1358 = vmatprep.subr.bf16.mxu0 0
  %1359 = vmatpush2.bf16.msra.mxu0 %v952
  %1360 = vmatprep.subr.bf16.mxu0 0
  %1361 = vmatpush2.bf16.msra.mxu0 %v951
  %1362 = vmatprep.mubr.bf16.mxu0 %v470
  %1363 = vmatmul.mubr.bf16.gmra.mxu0 %v469
  %v1364 = vpop.f32.mrf.mxu0
  %v1365 = vadd.f32 %v1268, %v1364
  %v1366 = vpop.f32.mrf.mxu0
  %v1367 = vpop.f32.mrf.mxu0
  %v1368 = vadd.f32 %v1271, %v1367
  %v1369 = vpop.f32.mrf.mxu0
  %1370 = vmatprep.mubr.bf16.mxu0 %v479
  %1371 = vmatmul.mubr.bf16.gmra.mxu0 %v478
  %v1372 = vpop.f32.mrf.mxu0
  %v1373 = vadd.f32 %v1276, %v1372
  %v1374 = vpop.f32.mrf.mxu0
  %v1375 = vpop.f32.mrf.mxu0
  %v1376 = vadd.f32 %v1279, %v1375
  %v1377 = vpop.f32.mrf.mxu0
  %1378 = vmatprep.mubr.bf16.mxu0 %v488
  %1379 = vmatmul.mubr.bf16.gmra.mxu0 %v487
  %v1380 = vpop.f32.mrf.mxu0
  %v1381 = vadd.f32 %v1284, %v1380
  %v1382 = vpop.f32.mrf.mxu0
  %v1383 = vpop.f32.mrf.mxu0
  %v1384 = vadd.f32 %v1287, %v1383
  %v1385 = vpop.f32.mrf.mxu0
  %1386 = vmatprep.mubr.bf16.mxu0 %v497
  %1387 = vmatmul.mubr.bf16.gmra.mxu0 %v496
  %v1388 = vpop.f32.mrf.mxu0
  %v1389 = vadd.f32 %v1292, %v1388
  %v1390 = vpop.f32.mrf.mxu0
  %v1391 = vpop.f32.mrf.mxu0
  %v1392 = vadd.f32 %v1295, %v1391
  %v1393 = vpop.f32.mrf.mxu0
  %1394 = vmatprep.mubr.bf16.mxu0 %v506
  %1395 = vmatmul.mubr.bf16.gmra.mxu0 %v505
  %v1396 = vpop.f32.mrf.mxu0
  %v1397 = vadd.f32 %v1300, %v1396
  %v1398 = vpop.f32.mrf.mxu0
  %v1399 = vpop.f32.mrf.mxu0
  %v1400 = vadd.f32 %v1303, %v1399
  %v1401 = vpop.f32.mrf.mxu0
  %1402 = vmatprep.mubr.bf16.mxu0 %v515
  %1403 = vmatmul.mubr.bf16.gmra.mxu0 %v514
  %v1404 = vpop.f32.mrf.mxu0
  %v1405 = vadd.f32 %v1308, %v1404
  %v1406 = vpop.f32.mrf.mxu0
  %v1407 = vpop.f32.mrf.mxu0
  %v1408 = vadd.f32 %v1311, %v1407
  %v1409 = vpop.f32.mrf.mxu0
  %1410 = vmatprep.mubr.bf16.mxu0 %v524
  %1411 = vmatmul.mubr.bf16.gmra.mxu0 %v523
  %v1412 = vpop.f32.mrf.mxu0
  %v1413 = vadd.f32 %v1316, %v1412
  %v1414 = vpop.f32.mrf.mxu0
  %v1415 = vpop.f32.mrf.mxu0
  %v1416 = vadd.f32 %v1319, %v1415
  %v1417 = vpop.f32.mrf.mxu0
  %1418 = vmatprep.mubr.bf16.mxu0 %v533
  %1419 = vmatmul.mubr.bf16.gmra.mxu0 %v532
  %v1420 = vpop.f32.mrf.mxu0
  %v1421 = vadd.f32 %v1324, %v1420
  %v1422 = vpop.f32.mrf.mxu0
  %v1423 = vpop.f32.mrf.mxu0
  %v1424 = vadd.f32 %v1327, %v1423
  %v1425 = vpop.f32.mrf.mxu0
  %1426 = vdwg.mxu0
  %1427 = vmatprep.subr.bf16.mxu0 0
  %1428 = vmatpush1.bf16.msra.mxu0 %v966
  %1429 = vmatprep.subr.bf16.mxu0 0
  %1430 = vmatpush1.bf16.msra.mxu0 %v965
  %1431 = vmatprep.subr.bf16.mxu0 0
  %1432 = vmatpush1.bf16.msra.mxu0 %v964
  %1433 = vmatprep.subr.bf16.mxu0 0
  %1434 = vmatpush1.bf16.msra.mxu0 %v963
  %1435 = vmatprep.subr.bf16.mxu0 0
  %1436 = vmatpush1.bf16.msra.mxu0 %v962
  %1437 = vmatprep.subr.bf16.mxu0 0
  %1438 = vmatpush1.bf16.msra.mxu0 %v961
  %1439 = vmatprep.subr.bf16.mxu0 0
  %1440 = vmatpush1.bf16.msra.mxu0 %v960
  %1441 = vmatprep.subr.bf16.mxu0 0
  %1442 = vmatpush1.bf16.msra.mxu0 %v959
  %1443 = vmatprep.subr.bf16.mxu0 0
  %1444 = vmatpush2.bf16.msra.mxu0 0
  %1445 = vmatprep.subr.bf16.mxu0 0
  %1446 = vmatpush2.bf16.msra.mxu0 0
  %1447 = vmatprep.subr.bf16.mxu0 0
  %1448 = vmatpush2.bf16.msra.mxu0 0
  %1449 = vmatprep.subr.bf16.mxu0 0
  %1450 = vmatpush2.bf16.msra.mxu0 0
  %1451 = vmatprep.subr.bf16.mxu0 0
  %1452 = vmatpush2.bf16.msra.mxu0 0
  %1453 = vmatprep.subr.bf16.mxu0 0
  %1454 = vmatpush2.bf16.msra.mxu0 0
  %1455 = vmatprep.subr.bf16.mxu0 0
  %1456 = vmatpush2.bf16.msra.mxu0 0
  %1457 = vmatprep.subr.bf16.mxu0 0
  %1458 = vmatpush2.bf16.msra.mxu0 0
  %1459 = vmatprep.mubr.bf16.mxu0 0
  %1460 = vmatmul.mubr.bf16.gmra.mxu0 %v471
  %v1461 = vpop.f32.mrf.mxu0
  %v1462 = vadd.f32 %v1365, %v1461
  %v1463 = vpop.f32.mrf.mxu0
  %v1464 = vpop.f32.mrf.mxu0
  %v1465 = vadd.f32 %v1368, %v1464
  %v1466 = vpop.f32.mrf.mxu0
  %1467 = vmatprep.mubr.bf16.mxu0 0
  %1468 = vmatmul.mubr.bf16.gmra.mxu0 %v480
  %v1469 = vpop.f32.mrf.mxu0
  %v1470 = vadd.f32 %v1373, %v1469
  %v1471 = vpop.f32.mrf.mxu0
  %v1472 = vpop.f32.mrf.mxu0
  %v1473 = vadd.f32 %v1376, %v1472
  %v1474 = vpop.f32.mrf.mxu0
  %1475 = vmatprep.mubr.bf16.mxu0 0
  %1476 = vmatmul.mubr.bf16.gmra.mxu0 %v489
  %v1477 = vpop.f32.mrf.mxu0
  %v1478 = vadd.f32 %v1381, %v1477
  %v1479 = vpop.f32.mrf.mxu0
  %v1480 = vpop.f32.mrf.mxu0
  %v1481 = vadd.f32 %v1384, %v1480
  %v1482 = vpop.f32.mrf.mxu0
  %1483 = vmatprep.mubr.bf16.mxu0 0
  %1484 = vmatmul.mubr.bf16.gmra.mxu0 %v498
  %v1485 = vpop.f32.mrf.mxu0
  %v1486 = vadd.f32 %v1389, %v1485
  %v1487 = vpop.f32.mrf.mxu0
  %v1488 = vpop.f32.mrf.mxu0
  %v1489 = vadd.f32 %v1392, %v1488
  %v1490 = vpop.f32.mrf.mxu0
  %1491 = vmatprep.mubr.bf16.mxu0 0
  %1492 = vmatmul.mubr.bf16.gmra.mxu0 %v507
  %v1493 = vpop.f32.mrf.mxu0
  %v1494 = vadd.f32 %v1397, %v1493
  %v1495 = vpop.f32.mrf.mxu0
  %v1496 = vpop.f32.mrf.mxu0
  %v1497 = vadd.f32 %v1400, %v1496
  %v1498 = vpop.f32.mrf.mxu0
  %1499 = vmatprep.mubr.bf16.mxu0 0
  %1500 = vmatmul.mubr.bf16.gmra.mxu0 %v516
  %v1501 = vpop.f32.mrf.mxu0
  %v1502 = vadd.f32 %v1405, %v1501
  %v1503 = vpop.f32.mrf.mxu0
  %v1504 = vpop.f32.mrf.mxu0
  %v1505 = vadd.f32 %v1408, %v1504
  %v1506 = vpop.f32.mrf.mxu0
  %1507 = vmatprep.mubr.bf16.mxu0 0
  %1508 = vmatmul.mubr.bf16.gmra.mxu0 %v525
  %v1509 = vpop.f32.mrf.mxu0
  %v1510 = vadd.f32 %v1413, %v1509
  %v1511 = vpop.f32.mrf.mxu0
  %v1512 = vpop.f32.mrf.mxu0
  %v1513 = vadd.f32 %v1416, %v1512
  %v1514 = vpop.f32.mrf.mxu0
  %1515 = vmatprep.mubr.bf16.mxu0 0
  %1516 = vmatmul.mubr.bf16.gmra.mxu0 %v534
  %v1517 = vpop.f32.mrf.mxu0
  %v1518 = vadd.f32 %v1421, %v1517
  %v1519 = vpop.f32.mrf.mxu0
  %v1520 = vpop.f32.mrf.mxu0
  %v1521 = vadd.f32 %v1424, %v1520
  %v1522 = vpop.f32.mrf.mxu0
  %1523 = vdwg.mxu0
  %v1524 = vpack.c.bf16 %v1465, %v1462
  %v1525 = vpack.c.bf16 %v1473, %v1470
  %v1526 = vpack.c.bf16 %v1481, %v1478
  %v1527 = vpack.c.bf16 %v1489, %v1486
  %v1528 = vpack.c.bf16 %v1497, %v1494
  %v1529 = vpack.c.bf16 %v1505, %v1502
  %v1530 = vpack.c.bf16 %v1513, %v1510
  %v1531 = vpack.c.bf16 %v1521, %v1518
  %v1540 = vunpack.c.l.b16 %v1524
  %v1541 = vunpack.c.h.b16 %v1524
  %v1542 = vunpack.c.l.b16 %v1525
  %v1543 = vunpack.c.h.b16 %v1525
  %v1544 = vunpack.c.l.b16 %v1526
  %v1545 = vunpack.c.h.b16 %v1526
  %v1546 = vunpack.c.l.b16 %v1527
  %v1547 = vunpack.c.h.b16 %v1527
  %v1548 = vunpack.c.l.b16 %v1528
  %v1549 = vunpack.c.h.b16 %v1528
  %v1550 = vunpack.c.l.b16 %v1529
  %v1551 = vunpack.c.h.b16 %v1529
  %v1552 = vunpack.c.l.b16 %v1530
  %v1553 = vunpack.c.h.b16 %v1530
  %v1554 = vunpack.c.l.b16 %v1531
  %v1555 = vunpack.c.h.b16 %v1531
  %v1556 = vpack.c.b16 %v1540, %v1540
  %v1557 = vpack.c.b16 %v1541, %v1541
  %v1558 = vpack.c.b16 %v1542, %v1542
  %v1559 = vpack.c.b16 %v1543, %v1543
  %v1560 = vpack.c.b16 %v1544, %v1544
  %v1561 = vpack.c.b16 %v1545, %v1545
  %v1562 = vpack.c.b16 %v1546, %v1546
  %v1563 = vpack.c.b16 %v1547, %v1547
  %v1564 = vpack.c.b16 %v1548, %v1548
  %v1565 = vpack.c.b16 %v1549, %v1549
  %v1566 = vpack.c.b16 %v1550, %v1550
  %v1567 = vpack.c.b16 %v1551, %v1551
  %v1568 = vpack.c.b16 %v1552, %v1552
  %v1569 = vpack.c.b16 %v1553, %v1553
  %v1570 = vpack.c.b16 %v1554, %v1554
  %v1571 = vpack.c.b16 %v1555, %v1555
  %1588 = vst [vmem:[%s2] sm:$0xf] %v1556
  %1589 = vst [vmem:[%s2 + $0x4] sm:$0xf] %v1557
  %1590 = vst [vmem:[%s2 + $0x8] sm:$0xf] %v1558
  %1591 = vst [vmem:[%s2 + $0xc] sm:$0xf] %v1559
  %1592 = vst [vmem:[%s2 + $0x10] sm:$0xf] %v1560
  %1593 = vst [vmem:[%s2 + $0x14] sm:$0xf] %v1561
  %1594 = vst [vmem:[%s2 + $0x18] sm:$0xf] %v1562
  %1595 = vst [vmem:[%s2 + $0x1c] sm:$0xf] %v1563
  %1596 = vst [vmem:[%s2 + $0x20] sm:$0xf] %v1564
  %1597 = vst [vmem:[%s2 + $0x24] sm:$0xf] %v1565
  %1598 = vst [vmem:[%s2 + $0x28] sm:$0xf] %v1566
  %1599 = vst [vmem:[%s2 + $0x2c] sm:$0xf] %v1567
  %1600 = vst [vmem:[%s2 + $0x30] sm:$0xf] %v1568
  %1601 = vst [vmem:[%s2 + $0x34] sm:$0xf] %v1569
  %1602 = vst [vmem:[%s2 + $0x38] sm:$0xf] %v1570
  %1603 = vst [vmem:[%s2 + $0x3c] sm:$0xf] %v1571
  %v1604 = vadd.f32 %v1462, %v1465
  %v1605 = vadd.f32 %v1604, %v1470
  %v1606 = vadd.f32 %v1605, %v1473
  %v1607 = vadd.f32 %v1606, %v1478
  %v1608 = vadd.f32 %v1607, %v1481
  %v1609 = vadd.f32 %v1608, %v1486
  %v1610 = vadd.f32 %v1609, %v1489
  %v1611 = vadd.f32 %v1610, %v1494
  %v1612 = vadd.f32 %v1611, %v1497
  %v1613 = vadd.f32 %v1612, %v1502
  %v1614 = vadd.f32 %v1613, %v1505
  %v1615 = vadd.f32 %v1614, %v1510
  %v1616 = vadd.f32 %v1615, %v1513
  %v1617 = vadd.f32 %v1616, %v1518
  %v1618 = vadd.f32 %v1617, %v1521
  %v1619 = vrot.slane %v1618, 4
  %v1620 = vadd.f32 %v1618, %v1619
  %v1621 = vrot.slane %v1620, 2
  %v1622 = vadd.f32 %v1620, %v1621
  %v1623 = vrot.slane %v1622, 1
  %v1624 = vadd.f32 %v1622, %v1623
  %1625 = vst [vmem:[%s3] sm:$0x1] %v1624
  %v1626 = vmul.f32 %v1462, %v1462
  %v1627 = vmul.f32 %v1465, %v1465
  %v1628 = vmul.f32 %v1470, %v1470
  %v1629 = vmul.f32 %v1473, %v1473
  %v1630 = vmul.f32 %v1478, %v1478
  %v1631 = vmul.f32 %v1481, %v1481
  %v1632 = vmul.f32 %v1486, %v1486
  %v1633 = vmul.f32 %v1489, %v1489
  %v1634 = vmul.f32 %v1494, %v1494
  %v1635 = vmul.f32 %v1497, %v1497
  %v1636 = vmul.f32 %v1502, %v1502
  %v1637 = vmul.f32 %v1505, %v1505
  %v1638 = vmul.f32 %v1510, %v1510
  %v1639 = vmul.f32 %v1513, %v1513
  %v1640 = vmul.f32 %v1518, %v1518
  %v1641 = vmul.f32 %v1521, %v1521
  %v1642 = vadd.f32 %v1626, %v1627
  %v1643 = vadd.f32 %v1642, %v1628
  %v1644 = vadd.f32 %v1643, %v1629
  %v1645 = vadd.f32 %v1644, %v1630
  %v1646 = vadd.f32 %v1645, %v1631
  %v1647 = vadd.f32 %v1646, %v1632
  %v1648 = vadd.f32 %v1647, %v1633
  %v1649 = vadd.f32 %v1648, %v1634
  %v1650 = vadd.f32 %v1649, %v1635
  %v1651 = vadd.f32 %v1650, %v1636
  %v1652 = vadd.f32 %v1651, %v1637
  %v1653 = vadd.f32 %v1652, %v1638
  %v1654 = vadd.f32 %v1653, %v1639
  %v1655 = vadd.f32 %v1654, %v1640
  %v1656 = vadd.f32 %v1655, %v1641
  %v1657 = vrot.slane %v1656, 4
  %v1658 = vadd.f32 %v1656, %v1657
  %v1659 = vrot.slane %v1658, 2
  %v1660 = vadd.f32 %v1658, %v1659
  %v1661 = vrot.slane %v1660, 1
  %v1662 = vadd.f32 %v1660, %v1661
  %1663 = vst [vmem:[%s4] sm:$0x1] %v1662
  // Predicated region
  $region10: #{resblock_forward.6} parent=0 // pred_check
    _
  $region11: #{resblock_forward.6} parent=0 // pred_check_branch
    %1665 = sbr.rel (0) target = $region13
  $region12: #{resblock_forward.6} parent=0 // pred_region
    _
  $region13: #{resblock_forward.6} parent=0 // pred_fallthru
    _
  // Predicated region
  $region14: #{resblock_forward.6} parent=0 // pred_check
    _
  $region15: #{resblock_forward.6} parent=0 // pred_check_branch
    %1667 = sbr.rel (0) target = $region17
  $region16: #{resblock_forward.6} parent=0 // pred_region
    _
  $region17: #{resblock_forward.6} parent=0 // pred_fallthru
    _
  // Predicated region
  $region18: #{resblock_forward.6} parent=0 // pred_check
    _
  $region19: #{resblock_forward.6} parent=0 // pred_check_branch
    %1669 = sbr.rel (0) target = $region21
  $region20: #{resblock_forward.6} parent=0 // pred_region
    _
  $region21: #{resblock_forward.6} parent=0 // pred_fallthru
    _
  // Predicated region
  $region22: #{resblock_forward.6} parent=0 // pred_check
    _
  $region23: #{resblock_forward.6} parent=0 // pred_check_branch
    %1671 = sbr.rel (0) target = $region25
  $region24: #{resblock_forward.6} parent=0 // pred_region
    _
  $region25: #{resblock_forward.6} parent=0 // pred_fallthru
    _
  // Predicated region
  $region26: #{resblock_forward.6} parent=0 // pred_check
    _
  $region27: #{resblock_forward.6} parent=0 // pred_check_branch
    %1673 = sbr.rel (0) target = $region29
  $region28: #{resblock_forward.6} parent=0 // pred_region
    _
  $region29: #{resblock_forward.6} parent=0 // pred_fallthru
    _
  // Predicated region
  $region30: #{resblock_forward.6} parent=0 // pred_check
    _
  $region31: #{resblock_forward.6} parent=0 // pred_check_branch
    %1675 = sbr.rel (0) target = $region33
  $region32: #{resblock_forward.6} parent=0 // pred_region
    _
  $region33: #{resblock_forward.6} parent=0 // pred_fallthru
    _

</llo_original>
